<compile_context>
chip_gen: v7x
topology: tpu7x:2x2x1
jax: 0.10.0
libtpu: 0.0.40
codegen_flags: <defaults>
</compile_context>

<pallas_src>
import functools
import math

import jax
import jax.numpy as jnp
from jax.experimental import pallas as pl
from jax.experimental.pallas import tpu as pltpu

# ----------------------------- configuration --------------------------------
VOCAB = 40            # phoneme vocab (0 = pad)
D_MODEL = 32          # encoder_hidden
N_LAYERS = 2          # encoder_layer
N_HEAD = 2
D_K = 16              # per-head dim (N_HEAD * D_K == D_MODEL)
D_INNER = 64          # conv_filter_size in FFT block
FFT_K = 9             # FFT-block conv kernel size
VP_FILTER = 32        # variance predictor filter size
VP_K = 3              # variance predictor conv kernel size
N_BINS = 16           # pitch quantization bins
N_SPEAKERS = 4
N_SENTIMENTS = 3
MAX_SEQ_LEN = 16
MAX_PHONE_DUR = 32    # static cap used only for the frame-mask width (avoids host sync)

B = 2                 # batch
T = 8                 # text_len_max
ACT_LANES = 128       # lane width of the packed activation slab


# ----------------------------- in-kernel helpers -----------------------------
def _mdot(a, b):
    """MXU matmul: bf16 inputs, f32 accumulation."""
    return jnp.dot(a.astype(jnp.bfloat16), b.astype(jnp.bfloat16),
                   preferred_element_type=jnp.float32)


def _dot_qkT(a, b):
    """a @ b.T without materializing a transpose (contract the last dims)."""
    return jax.lax.dot_general(
        a.astype(jnp.bfloat16), b.astype(jnp.bfloat16),
        dimension_numbers=(((1,), (1,)), ((), ())),
        preferred_element_type=jnp.float32)


def _layernorm(x, g, b):
    mean = jnp.mean(x, axis=-1, keepdims=True)
    var = jnp.mean(jnp.square(x - mean), axis=-1, keepdims=True)
    return (x - mean) * jax.lax.rsqrt(var + 1e-5) * g + b


def _ln_two_groups(h, g, b, m0, m1, n):
    """LayerNorm over two independent lane groups (masks m0/m1), each of size n."""
    inv = 1.0 / float(n)
    mu = (jnp.sum(h * m0, -1, keepdims=True) * m0 +
          jnp.sum(h * m1, -1, keepdims=True) * m1) * inv
    d = h - mu
    var = (jnp.sum(d * d * m0, -1, keepdims=True) * m0 +
           jnp.sum(d * d * m1, -1, keepdims=True) * m1) * inv
    return d * jax.lax.rsqrt(var + 1e-5) * g + b


def _shift_rows(x, o):
    """y[i] = x[i + o] (cyclic over rows); out-of-range rows are masked by caller."""
    if o == 0:
        return x
    return pltpu.roll(x, shift=(-o) % x.shape[0], axis=0)


def _im2col(x, k, tap_mask):
    """'same' conv taps concatenated along lanes: (BT, C) -> (BT, k*C)."""
    pad = (k - 1) // 2
    cols = []
    for j in range(k):
        cols.append(_shift_rows(x, j - pad) * tap_mask[:, j:j + 1])
    return jnp.concatenate(cols, axis=-1)


# ------------------------------ fused kernel ---------------------------------
def _prosody_kernel(act_ref, w_ref, p_ref, out_ref, *, woff, poff,
                    p_control, e_control):
    f32 = jnp.float32
    bt = act_ref.shape[0]

    def W(name):                                 # bf16 matmul-weight slab view
        r0, r, c = woff[name]
        return w_ref[pl.ds(r0, r), pl.ds(0, c)]

    def P(name):                                 # f32 bias / LN / misc slab view
        r0, r, c = poff[name]
        return p_ref[pl.ds(r0, r), pl.ds(0, c)]

    # --- unpack the single activation slab (lane layout mirrors _build_act_slab) ---
    a_bias = 2 * D_MODEL
    a_keep = a_bias + bt
    a_m9 = a_keep + 1
    a_m3 = a_m9 + FFT_K
    x = act_ref[:, pl.ds(0, D_MODEL)]                     # (BT, D)
    spk = act_ref[:, pl.ds(D_MODEL, D_MODEL)]             # (BT, D)
    attn_bias = act_ref[:, pl.ds(a_bias, bt)]             # (BT, BT) block-diag additive mask
    keep = act_ref[:, pl.ds(a_keep, 1)]                   # (BT, 1)  1 valid / 0 pad
    m9 = act_ref[:, pl.ds(a_m9, FFT_K)]                   # (BT, 9)  conv tap validity
    m3 = act_ref[:, pl.ds(a_m3, VP_K)]                    # (BT, 3)

    scale = 1.0 / math.sqrt(D_K)

    # ---------------- encoder: N_LAYERS FFT blocks ----------------
    for l in range(N_LAYERS):
        # --- multi-head self-attention, fused QKV + fused out-projection ---
        residual = x
        qkv = _mdot(x, W(f"wqkv{l}")) + P(f"bqkv{l}")     # (BT, 3*H*D_K)
        heads = []
        for hd in range(N_HEAD):
            qh = qkv[:, hd * D_K:(hd + 1) * D_K]
            kh = qkv[:, N_HEAD * D_K + hd * D_K:N_HEAD * D_K + (hd + 1) * D_K]
            vh = qkv[:, 2 * N_HEAD * D_K + hd * D_K:2 * N_HEAD * D_K + (hd + 1) * D_K]
            s = _dot_qkT(qh, kh) * scale + attn_bias
            s = s - jnp.max(s, axis=-1, keepdims=True)
            prob = jnp.exp(s)
            prob = prob * pl.reciprocal(jnp.sum(prob, axis=-1, keepdims=True), approx=True)
            heads.append(_mdot(prob, vh))                 # (BT, D_K)
        ctx = jnp.concatenate(heads, axis=-1)             # (BT, D)
        attn = _mdot(ctx, W(f"wo{l}")) + P(f"bo{l}")
        x = _layernorm(attn + residual, P(f"ln1g{l}"), P(f"ln1b{l}")) * keep

        # --- position-wise FFN: conv(k=9) -> ReLU -> conv(k=1), im2col on MXU ---
        residual = x
        h1 = jnp.maximum(_mdot(_im2col(x, FFT_K, m9), W(f"fw1{l}")) + P(f"fb1{l}"), 0.0)
        h2 = _mdot(h1, W(f"fw2{l}")) + P(f"fb2{l}")
        x = _layernorm(h2 + residual, P(f"ln2g{l}"), P(f"ln2b{l}")) * keep

    # ---------------- speaker + sentiment embedding add ----------------
    x = x + spk

    # ---------------- duration + pitch predictors (stacked along lanes) ----------------
    lane = jax.lax.broadcasted_iota(jnp.int32, (1, 2 * VP_FILTER), 1)
    m_dur = (lane < VP_FILTER).astype(f32)                # lanes 0..31 -> duration
    m_pit = 1.0 - m_dur                                   # lanes 32..63 -> pitch

    hdp = jnp.maximum(_mdot(_im2col(x, VP_K, m3), W("dp_c1")) + P("dp_c1_b"), 0.0)
    hdp = _ln_two_groups(hdp, P("dp_ln1_g"), P("dp_ln1_b"), m_dur, m_pit, VP_FILTER)
    hdp = jnp.maximum(_mdot(_im2col(hdp, VP_K, m3), W("dp_c2")) + P("dp_c2_b"), 0.0)
    hdp = _ln_two_groups(hdp, P("dp_ln2_g"), P("dp_ln2_b"), m_dur, m_pit, VP_FILTER)
    hlin = hdp * P("dp_lin_w")
    log_d = (jnp.sum(hlin * m_dur, -1, keepdims=True) + P("dp_lin_b_dur")) * keep
    pitch = (jnp.sum(hlin * m_pit, -1, keepdims=True) + P("dp_lin_b_pit")) * keep * p_control

    # ---------------- pitch bucketize + embedding gather (one-hot MXU matmul) ----------------
    cnt = jnp.sum((pitch > P("pitch_bins")).astype(f32), axis=-1, keepdims=True)  # (BT,1)
    bin_idx = jax.lax.broadcasted_iota(jnp.int32, (bt, N_BINS), 1).astype(f32)
    onehot = (bin_idx == cnt).astype(f32)
    x = x + _mdot(onehot, W("pitch_emb"))

    # ---------------- energy predictor ----------------
    he = jnp.maximum(_mdot(_im2col(x, VP_K, m3), W("e_c1")) + P("e_c1_b"), 0.0)
    he = _layernorm(he, P("e_ln1_g"), P("e_ln1_b"))
    he = jnp.maximum(_mdot(_im2col(he, VP_K, m3), W("e_c2")) + P("e_c2_b"), 0.0)
    he = _layernorm(he, P("e_ln2_g"), P("e_ln2_b"))
    energy = (jnp.sum(he * P("e_lin_w"), -1, keepdims=True) + P("e_lin_b")) * keep * e_control
    # TODO(synk): energy-embedding add skipped — it only feeds the adaptor output that
    # ProsodyPredictor discards.

    out_ref[...] = jnp.concatenate([log_d, pitch, energy], axis=-1)   # (BT, 3)


# ------------------------------ pallas_call wrapper ---------------------------
def prosody_fused(packed, act_slab, p_control, e_control):
    bt = act_slab.shape[0]
    kernel = functools.partial(
        _prosody_kernel, woff=packed["woff"], poff=packed["poff"],
        p_control=float(p_control), e_control=float(e_control))
    vmem = pl.BlockSpec(memory_space=pltpu.MemorySpace.VMEM)   # whole array resident in VMEM
    return pl.pallas_call(
        kernel,
        out_shape=jax.ShapeDtypeStruct((bt, 3), jnp.float32),
        in_specs=[vmem, vmem, vmem],
        out_specs=vmem,
    )(act_slab, packed["w_slab"], packed["p_slab"])


# ------------------------------ host-side glue --------------------------------
def get_mask_from_lengths(lengths, max_len):
    ids = jnp.arange(int(max_len))[None, :]
    return ids >= lengths[:, None]           # True == padded position


def _build_act_slab(x_in, spk_sent, attn_bias, keep, m9, m3):
    act = jnp.concatenate([x_in, spk_sent, attn_bias, keep, m9, m3], axis=-1)
    pad = ACT_LANES - act.shape[-1]
    return jnp.pad(act, ((0, 0), (0, pad))).astype(jnp.float32)


def prosody_predictor_forward(packed, texts, text_lens, text_len_max,
                              speakers, sentiments,
                              p_control=1.0, e_control=1.0, d_control=1.0):
    b, t = texts.shape
    text_masks = get_mask_from_lengths(text_lens, text_len_max)          # (B,T), True = pad

    item = jnp.repeat(jnp.arange(b), t)                                  # (BT,)
    pos = jnp.tile(jnp.arange(t), b)                                     # (BT,)
    valid = pos < text_lens[item]                                        # (BT,) bool
    keep = valid.astype(jnp.float32)[:, None]                            # (BT,1)
    same_item = item[:, None] == item[None, :]
    attn_bias = jnp.where(same_item & valid[None, :], 0.0, -1e9).astype(jnp.float32)

    # embedding gathers + positional table (host glue)
    x_in = (packed["word_emb"][texts] + packed["pos_enc"][None, :t, :]).reshape(b * t, D_MODEL)
    spk_sent = packed["speaker_emb"][speakers] + packed["sentiment_emb"][sentiments]
    spk_sent = jnp.repeat(spk_sent, t, axis=0)                           # (BT, D)

    act = _build_act_slab(x_in, spk_sent, attn_bias, keep, packed["m9"], packed["m3"])
    preds = prosody_fused(packed, act, p_control, e_control).reshape(b, t, 3)
    log_d = preds[..., 0]
    pitch_pred = preds[..., 1]
    energy_pred = preds[..., 2]

    duration_rounded = jnp.maximum(jnp.round(jnp.exp(log_d) - 1.0) * d_control, 0.0)
    frame_lens = jnp.sum(duration_rounded.astype(jnp.int32), axis=1)
    # Static frame-mask width: removes the device->host sync / shape-dependent retrace that
    # int(jnp.max(frame_lens)) would cost.
    frame_masks = get_mask_from_lengths(frame_lens, t * MAX_PHONE_DUR)
    # TODO(synk): LengthRegulator expansion (data-dependent gather) skipped — its expanded
    # output is discarded by ProsodyPredictor; only frame lens / masks are consumed.

    return {
        'pitch_predictions': pitch_pred,
        'energy_predictions': energy_pred,
        'log_duration_predictions': log_d,
        'duration_rounded': duration_rounded,
        'text_masks': text_masks,
        'text_lens': text_lens,
        'frame_mask': frame_masks,
    }


# ------------------------------ parameter packing -----------------------------
def _pack_slab(entries, dtype, lanes=ACT_LANES, row_align=8):
    """Pack a list of (name, 2-D array) into one (rows, lanes) slab; record offsets."""
    offs = {}
    total = 0
    for name, a in entries:
        r, c = a.shape
        offs[name] = (total, r, c)
        total += ((r + row_align - 1) // row_align) * row_align
    slab = jnp.zeros((total, lanes), dtype)
    for name, a in entries:
        r0, r, c = offs[name]
        slab = slab.at[r0:r0 + r, :c].set(a.astype(dtype))
    return slab, offs


def _block_diag2(a, b):
    z_top = jnp.zeros((a.shape[0], b.shape[1]), a.dtype)
    z_bot = jnp.zeros((b.shape[0], a.shape[1]), a.dtype)
    return jnp.concatenate([jnp.concatenate([a, z_top], axis=1),
                            jnp.concatenate([z_bot, b], axis=1)], axis=0)


def _tap_masks(b, t, k):
    """(B*T, k) validity of each 'same'-conv tap (zero padding at per-item boundaries)."""
    pad = (k - 1) // 2
    pos = jnp.tile(jnp.arange(t), b)[:, None]
    off = jnp.arange(k)[None, :] - pad
    src = pos + off
    return ((src >= 0) & (src < t)).astype(jnp.float32)


def pack_params(params, b, t):
    enc, vp = params['enc'], params['vp']
    w_entries, p_entries = [], []

    for l in range(N_LAYERS):
        wqkv = jnp.concatenate([enc['w_qkv'][l, s, h]
                                for s in range(3) for h in range(N_HEAD)], axis=1)   # (D, 96)
        bqkv = jnp.concatenate([enc['b_qkv'][l, s, h]
                                for s in range(3) for h in range(N_HEAD)], axis=1)   # (1, 96)
        wo = jnp.concatenate([enc['w_o'][l, h] for h in range(N_HEAD)], axis=0)      # (D, D)
        w_entries += [
            (f"wqkv{l}", wqkv),
            (f"wo{l}", wo),
            (f"fw1{l}", enc['ffn_w1'][l].reshape(FFT_K * D_MODEL, D_INNER)),
            (f"fw2{l}", enc['ffn_w2'][l]),
        ]
        p_entries += [
            (f"bqkv{l}", bqkv), (f"bo{l}", enc['b_o'][l]),
            (f"ln1g{l}", enc['ln1_g'][l]), (f"ln1b{l}", enc['ln1_b'][l]),
            (f"fb1{l}", enc['ffn_b1'][l]), (f"fb2{l}", enc['ffn_b2'][l]),
            (f"ln2g{l}", enc['ln2_g'][l]), (f"ln2b{l}", enc['ln2_b'][l]),
        ]

    c1w, c2w = vp['c1_w'], vp['c2_w']
    # duration (idx 0) + pitch (idx 1) predictors stacked along output features
    dp_c1 = jnp.concatenate(
        [jnp.concatenate([c1w[0, j], c1w[1, j]], axis=1) for j in range(VP_K)], axis=0)   # (3D, 2F)
    dp_c2 = jnp.concatenate(
        [_block_diag2(c2w[0, j], c2w[1, j]) for j in range(VP_K)], axis=0)                # (3*2F, 2F)
    e_c1 = jnp.concatenate([c1w[2, j] for j in range(VP_K)], axis=0)                       # (3D, F)
    e_c2 = jnp.concatenate([c2w[2, j] for j in range(VP_K)], axis=0)                       # (3F, F)
    w_entries += [("dp_c1", dp_c1), ("dp_c2", dp_c2),
                  ("e_c1", e_c1), ("e_c2", e_c2),
                  ("pitch_emb", params['pitch_emb'])]

    def cat_dp(a):
        return jnp.concatenate([a[0], a[1]], axis=-1)

    p_entries += [
        ("dp_c1_b", cat_dp(vp['c1_b'])), ("dp_ln1_g", cat_dp(vp['ln1_g'])),
        ("dp_ln1_b", cat_dp(vp['ln1_b'])), ("dp_c2_b", cat_dp(vp['c2_b'])),
        ("dp_ln2_g", cat_dp(vp['ln2_g'])), ("dp_ln2_b", cat_dp(vp['ln2_b'])),
        ("dp_lin_w", cat_dp(vp['lin_w'])),
        ("dp_lin_b_dur", vp['lin_b'][0]), ("dp_lin_b_pit", vp['lin_b'][1]),
        ("e_c1_b", vp['c1_b'][2]), ("e_ln1_g", vp['ln1_g'][2]), ("e_ln1_b", vp['ln1_b'][2]),
        ("e_c2_b", vp['c2_b'][2]), ("e_ln2_g", vp['ln2_g'][2]), ("e_ln2_b", vp['ln2_b'][2]),
        ("e_lin_w", vp['lin_w'][2]), ("e_lin_b", vp['lin_b'][2]),
        ("pitch_bins", params['pitch_bins']),
    ]

    w_slab, woff = _pack_slab(w_entries, jnp.bfloat16)      # MXU weights, cast once
    p_slab, poff = _pack_slab(p_entries, jnp.float32)       # biases / LN / bins, f32

    return {
        'w_slab': w_slab, 'woff': woff,
        'p_slab': p_slab, 'poff': poff,
        'm9': _tap_masks(b, t, FFT_K), 'm3': _tap_masks(b, t, VP_K),
        'word_emb': params['word_emb'], 'pos_enc': params['pos_enc'],
        'speaker_emb': params['speaker_emb'], 'sentiment_emb': params['sentiment_emb'],
    }


# ------------------------------ parameter init --------------------------------
class _KeyGen:
    def __init__(self, key):
        self.key = key

    def __call__(self):
        self.key, sub = jax.random.split(self.key)
        return sub


def _sinusoid_table(n_position, d_model):
    pos = jnp.arange(n_position, dtype=jnp.float32)[:, None]
    i = jnp.arange(d_model)[None, :]
    angle = pos / jnp.power(10000.0, (2.0 * (i // 2)) / d_model)
    return jnp.where(i % 2 == 0, jnp.sin(angle), jnp.cos(angle)).astype(jnp.float32)


def init_params(key):
    kg = _KeyGen(key)

    def rnd(shape):
        return jax.random.normal(kg(), shape, jnp.float32) * 0.02

    p = {}
    p['word_emb'] = rnd((VOCAB, D_MODEL)).at[0].set(0.0)     # padding_idx = 0
    p['pos_enc'] = _sinusoid_table(MAX_SEQ_LEN + 1, D_MODEL)

    p['enc'] = {
        'w_qkv': rnd((N_LAYERS, 3, N_HEAD, D_MODEL, D_K)),
        'b_qkv': jnp.zeros((N_LAYERS, 3, N_HEAD, 1, D_K), jnp.float32),
        'w_o': rnd((N_LAYERS, N_HEAD, D_K, D_MODEL)),
        'b_o': jnp.zeros((N_LAYERS, 1, D_MODEL), jnp.float32),
        'ln1_g': jnp.ones((N_LAYERS, 1, D_MODEL), jnp.float32),
        'ln1_b': jnp.zeros((N_LAYERS, 1, D_MODEL), jnp.float32),
        'ffn_w1': rnd((N_LAYERS, FFT_K, D_MODEL, D_INNER)),
        'ffn_b1': jnp.zeros((N_LAYERS, 1, D_INNER), jnp.float32),
        'ffn_w2': rnd((N_LAYERS, D_INNER, D_MODEL)),          # kernel-1 conv == matmul
        'ffn_b2': jnp.zeros((N_LAYERS, 1, D_MODEL), jnp.float32),
        'ln2_g': jnp.ones((N_LAYERS, 1, D_MODEL), jnp.float32),
        'ln2_b': jnp.zeros((N_LAYERS, 1, D_MODEL), jnp.float32),
    }

    p['speaker_emb'] = rnd((N_SPEAKERS, D_MODEL))
    p['sentiment_emb'] = rnd((N_SENTIMENTS, D_MODEL))

    # variance predictors stacked: 0 = duration, 1 = pitch, 2 = energy
    p['vp'] = {
        'c1_w': rnd((3, VP_K, D_MODEL, VP_FILTER)),
        'c1_b': jnp.zeros((3, 1, VP_FILTER), jnp.float32),
        'ln1_g': jnp.ones((3, 1, VP_FILTER), jnp.float32),
        'ln1_b': jnp.zeros((3, 1, VP_FILTER), jnp.float32),
        'c2_w': rnd((3, VP_K, VP_FILTER, VP_FILTER)),
        'c2_b': jnp.zeros((3, 1, VP_FILTER), jnp.float32),
        'ln2_g': jnp.ones((3, 1, VP_FILTER), jnp.float32),
        'ln2_b': jnp.zeros((3, 1, VP_FILTER), jnp.float32),
        'lin_w': rnd((3, 1, VP_FILTER)),
        # duration predictor output bias ~0.7 -> ~1 frame / phoneme at init
        'lin_b': jnp.zeros((3, 1, 1), jnp.float32).at[0, 0, 0].set(0.7),
    }

    p['pitch_emb'] = rnd((N_BINS, D_MODEL))
    p['pitch_bins'] = jnp.linspace(-1.0, 1.0, N_BINS - 1)[None, :]
    # (energy embedding table/bins omitted: they only affect the discarded adaptor output)
    return p


# ----------------------------------- main ------------------------------------
if __name__ == "__main__":
    key = jax.random.PRNGKey(0)
    k_param, k_text = jax.random.split(key)

    params = init_params(k_param)
    packed = pack_params(params, B, T)           # one-time slab packing (bf16 cast hoisted)

    text_lens = jnp.array([T, T - 2], dtype=jnp.int32)
    texts = jax.random.randint(k_text, (B, T), 1, VOCAB, dtype=jnp.int32)
    pad_mask = jnp.arange(T)[None, :] >= text_lens[:, None]
    texts = jnp.where(pad_mask, 0, texts)                    # pad index = 0
    speakers = jnp.array([0, 2], dtype=jnp.int32)
    sentiments = jnp.array([1, 0], dtype=jnp.int32)

    out = prosody_predictor_forward(
        packed, texts, text_lens, T, speakers, sentiments,
        p_control=1.0, e_control=1.0, d_control=1.0)

    jax.block_until_ready(out)
    assert bool(jnp.all(jnp.isfinite(out['log_duration_predictions'])))
    assert bool(jnp.all(jnp.isfinite(out['pitch_predictions'])))
    assert bool(jnp.all(jnp.isfinite(out['energy_predictions'])))
    print("KERNEL_OK")
</pallas_src>

<mosaic_0001>
module attributes {stable_mosaic.version = 11 : i64} {
  func.func @_prosody_kernel(%arg0: memref<16x128xf32, #tpu.memory_space<vmem>>, %arg1: memref<1328x128xbf16, #tpu.memory_space<vmem>>, %arg2: memref<272x128xf32, #tpu.memory_space<vmem>>, %arg3: memref<16x3xf32, #tpu.memory_space<vmem>>) attributes {dimension_semantics = [], scalar_prefetch = 0 : i64, scratch_operands = 0 : i64, tpu.core_type = #tpu.core_type<tc>} {
    %c0 = arith.constant 0 : index
    %c0_0 = arith.constant 0 : index
    %0 = vector.load %arg0[%c0, %c0_0] : memref<16x128xf32, #tpu.memory_space<vmem>>, vector<16x32xf32>
    %c0_1 = arith.constant 0 : index
    %c32 = arith.constant 32 : index
    %1 = vector.load %arg0[%c0_1, %c32] : memref<16x128xf32, #tpu.memory_space<vmem>>, vector<16x32xf32>
    %c0_2 = arith.constant 0 : index
    %c64 = arith.constant 64 : index
    %2 = vector.load %arg0[%c0_2, %c64] : memref<16x128xf32, #tpu.memory_space<vmem>>, vector<16x16xf32>
    %c0_3 = arith.constant 0 : index
    %c80 = arith.constant 80 : index
    %3 = vector.load %arg0[%c0_3, %c80] : memref<16x128xf32, #tpu.memory_space<vmem>>, vector<16x1xf32>
    %c0_4 = arith.constant 0 : index
    %c81 = arith.constant 81 : index
    %4 = vector.load %arg0[%c0_4, %c81] : memref<16x128xf32, #tpu.memory_space<vmem>>, vector<16x9xf32>
    %c0_5 = arith.constant 0 : index
    %c90 = arith.constant 90 : index
    %5 = vector.load %arg0[%c0_5, %c90] : memref<16x128xf32, #tpu.memory_space<vmem>>, vector<16x3xf32>
    %c0_6 = arith.constant 0 : index
    %c0_7 = arith.constant 0 : index
    %6 = vector.load %arg1[%c0_6, %c0_7] : memref<1328x128xbf16, #tpu.memory_space<vmem>>, vector<32x96xbf16>
    %7 = arith.truncf %0 : vector<16x32xf32> to vector<16x32xbf16>
    %cst = arith.constant dense<0.000000e+00> : vector<16x96xf32>
    %8 = tpu.matmul %7, %6, %cst {dimension_numbers = #tpu.dot_dimension_numbers<[1], [0], [0], [1], [0, 0, 1, 1], [], []>} : vector<16x32xbf16>, vector<32x96xbf16>, vector<16x96xf32> -> vector<16x96xf32>
    %c0_8 = arith.constant 0 : index
    %c0_9 = arith.constant 0 : index
    %9 = vector.load %arg2[%c0_8, %c0_9] : memref<272x128xf32, #tpu.memory_space<vmem>>, vector<1x96xf32>
    %10 = vector.broadcast %9 : vector<1x96xf32> to vector<16x96xf32>
    %11 = arith.addf %8, %10 : vector<16x96xf32>
    %12 = vector.extract_strided_slice %11 {offsets = [0, 0], sizes = [16, 16], strides = [1, 1]} : vector<16x96xf32> to vector<16x16xf32>
    %13 = vector.extract_strided_slice %11 {offsets = [0, 32], sizes = [16, 16], strides = [1, 1]} : vector<16x96xf32> to vector<16x16xf32>
    %14 = vector.extract_strided_slice %11 {offsets = [0, 64], sizes = [16, 16], strides = [1, 1]} : vector<16x96xf32> to vector<16x16xf32>
    %15 = arith.truncf %12 : vector<16x16xf32> to vector<16x16xbf16>
    %16 = arith.truncf %13 : vector<16x16xf32> to vector<16x16xbf16>
    %cst_10 = arith.constant dense<0.000000e+00> : vector<16x16xf32>
    %17 = tpu.matmul %15, %16, %cst_10 {dimension_numbers = #tpu.dot_dimension_numbers<[1], [1], [0], [0], [0, 0, 1, 0], [], []>} : vector<16x16xbf16>, vector<16x16xbf16>, vector<16x16xf32> -> vector<16x16xf32>
    %cst_11 = arith.constant 2.500000e-01 : f32
    %18 = vector.broadcast %cst_11 : f32 to vector<16x16xf32>
    %19 = arith.mulf %17, %18 : vector<16x16xf32>
    %20 = arith.addf %19, %2 : vector<16x16xf32>
    %cst_12 = arith.constant dense<0xFF800000> : vector<16xf32>
    %21 = vector.multi_reduction <maximumf>, %20, %cst_12 [1] : vector<16x16xf32> to vector<16xf32>
    %22 = vector.shape_cast %21 : vector<16xf32> to vector<16x1xf32>
    %23 = vector.broadcast %22 : vector<16x1xf32> to vector<16x16xf32>
    %24 = arith.subf %20, %23 : vector<16x16xf32>
    %25 = math.exp %24 : vector<16x16xf32>
    %cst_13 = arith.constant dense<0.000000e+00> : vector<16xf32>
    %26 = vector.multi_reduction <add>, %25, %cst_13 [1] : vector<16x16xf32> to vector<16xf32>
    %27 = vector.shape_cast %26 : vector<16xf32> to vector<16x1xf32>
    %28 = tpu.reciprocal %27 {approx = true} : vector<16x1xf32> -> vector<16x1xf32>
    %29 = vector.broadcast %28 : vector<16x1xf32> to vector<16x16xf32>
    %30 = arith.mulf %25, %29 : vector<16x16xf32>
    %31 = arith.truncf %30 : vector<16x16xf32> to vector<16x16xbf16>
    %32 = arith.truncf %14 : vector<16x16xf32> to vector<16x16xbf16>
    %cst_14 = arith.constant dense<0.000000e+00> : vector<16x16xf32>
    %33 = tpu.matmul %31, %32, %cst_14 {dimension_numbers = #tpu.dot_dimension_numbers<[1], [0], [0], [1], [0, 0, 1, 1], [], []>} : vector<16x16xbf16>, vector<16x16xbf16>, vector<16x16xf32> -> vector<16x16xf32>
    %34 = vector.extract_strided_slice %11 {offsets = [0, 16], sizes = [16, 16], strides = [1, 1]} : vector<16x96xf32> to vector<16x16xf32>
    %35 = vector.extract_strided_slice %11 {offsets = [0, 48], sizes = [16, 16], strides = [1, 1]} : vector<16x96xf32> to vector<16x16xf32>
    %36 = vector.extract_strided_slice %11 {offsets = [0, 80], sizes = [16, 16], strides = [1, 1]} : vector<16x96xf32> to vector<16x16xf32>
    %37 = arith.truncf %34 : vector<16x16xf32> to vector<16x16xbf16>
    %38 = arith.truncf %35 : vector<16x16xf32> to vector<16x16xbf16>
    %cst_15 = arith.constant dense<0.000000e+00> : vector<16x16xf32>
    %39 = tpu.matmul %37, %38, %cst_15 {dimension_numbers = #tpu.dot_dimension_numbers<[1], [1], [0], [0], [0, 0, 1, 0], [], []>} : vector<16x16xbf16>, vector<16x16xbf16>, vector<16x16xf32> -> vector<16x16xf32>
    %cst_16 = arith.constant 2.500000e-01 : f32
    %40 = vector.broadcast %cst_16 : f32 to vector<16x16xf32>
    %41 = arith.mulf %39, %40 : vector<16x16xf32>
    %42 = arith.addf %41, %2 : vector<16x16xf32>
    %cst_17 = arith.constant dense<0xFF800000> : vector<16xf32>
    %43 = vector.multi_reduction <maximumf>, %42, %cst_17 [1] : vector<16x16xf32> to vector<16xf32>
    %44 = vector.shape_cast %43 : vector<16xf32> to vector<16x1xf32>
    %45 = vector.broadcast %44 : vector<16x1xf32> to vector<16x16xf32>
    %46 = arith.subf %42, %45 : vector<16x16xf32>
    %47 = math.exp %46 : vector<16x16xf32>
    %cst_18 = arith.constant dense<0.000000e+00> : vector<16xf32>
    %48 = vector.multi_reduction <add>, %47, %cst_18 [1] : vector<16x16xf32> to vector<16xf32>
    %49 = vector.shape_cast %48 : vector<16xf32> to vector<16x1xf32>
    %50 = tpu.reciprocal %49 {approx = true} : vector<16x1xf32> -> vector<16x1xf32>
    %51 = vector.broadcast %50 : vector<16x1xf32> to vector<16x16xf32>
    %52 = arith.mulf %47, %51 : vector<16x16xf32>
    %53 = arith.truncf %52 : vector<16x16xf32> to vector<16x16xbf16>
    %54 = arith.truncf %36 : vector<16x16xf32> to vector<16x16xbf16>
    %cst_19 = arith.constant dense<0.000000e+00> : vector<16x16xf32>
    %55 = tpu.matmul %53, %54, %cst_19 {dimension_numbers = #tpu.dot_dimension_numbers<[1], [0], [0], [1], [0, 0, 1, 1], [], []>} : vector<16x16xbf16>, vector<16x16xbf16>, vector<16x16xf32> -> vector<16x16xf32>
    %56 = tpu.concatenate %33, %55 in 1 : vector<16x16xf32>, vector<16x16xf32> -> vector<16x32xf32>
    %c32_20 = arith.constant 32 : index
    %c0_21 = arith.constant 0 : index
    %57 = vector.load %arg1[%c32_20, %c0_21] : memref<1328x128xbf16, #tpu.memory_space<vmem>>, vector<32x32xbf16>
    %58 = arith.truncf %56 : vector<16x32xf32> to vector<16x32xbf16>
    %cst_22 = arith.constant dense<0.000000e+00> : vector<16x32xf32>
    %59 = tpu.matmul %58, %57, %cst_22 {dimension_numbers = #tpu.dot_dimension_numbers<[1], [0], [0], [1], [0, 0, 1, 1], [], []>} : vector<16x32xbf16>, vector<32x32xbf16>, vector<16x32xf32> -> vector<16x32xf32>
    %c8 = arith.constant 8 : index
    %c0_23 = arith.constant 0 : index
    %60 = vector.load %arg2[%c8, %c0_23] : memref<272x128xf32, #tpu.memory_space<vmem>>, vector<1x32xf32>
    %61 = vector.broadcast %60 : vector<1x32xf32> to vector<16x32xf32>
    %62 = arith.addf %59, %61 : vector<16x32xf32>
    %63 = arith.addf %62, %0 : vector<16x32xf32>
    %c16 = arith.constant 16 : index
    %c0_24 = arith.constant 0 : index
    %64 = vector.load %arg2[%c16, %c0_24] : memref<272x128xf32, #tpu.memory_space<vmem>>, vector<1x32xf32>
    %c24 = arith.constant 24 : index
    %c0_25 = arith.constant 0 : index
    %65 = vector.load %arg2[%c24, %c0_25] : memref<272x128xf32, #tpu.memory_space<vmem>>, vector<1x32xf32>
    %cst_26 = arith.constant dense<0.000000e+00> : vector<16xf32>
    %66 = vector.multi_reduction <add>, %63, %cst_26 [1] : vector<16x32xf32> to vector<16xf32>
    %67 = vector.shape_cast %66 : vector<16xf32> to vector<16x1xf32>
    %cst_27 = arith.constant 3.200000e+01 : f32
    %68 = vector.broadcast %cst_27 : f32 to vector<16x1xf32>
    %69 = arith.divf %67, %68 : vector<16x1xf32>
    %70 = vector.broadcast %69 : vector<16x1xf32> to vector<16x32xf32>
    %71 = arith.subf %63, %70 : vector<16x32xf32>
    %72 = arith.mulf %71, %71 : vector<16x32xf32>
    %cst_28 = arith.constant dense<0.000000e+00> : vector<16xf32>
    %73 = vector.multi_reduction <add>, %72, %cst_28 [1] : vector<16x32xf32> to vector<16xf32>
    %74 = vector.shape_cast %73 : vector<16xf32> to vector<16x1xf32>
    %cst_29 = arith.constant 3.200000e+01 : f32
    %75 = vector.broadcast %cst_29 : f32 to vector<16x1xf32>
    %76 = arith.divf %74, %75 : vector<16x1xf32>
    %77 = vector.broadcast %69 : vector<16x1xf32> to vector<16x32xf32>
    %78 = arith.subf %63, %77 : vector<16x32xf32>
    %cst_30 = arith.constant 9.99999974E-6 : f32
    %79 = vector.broadcast %cst_30 : f32 to vector<16x1xf32>
    %80 = arith.addf %76, %79 : vector<16x1xf32>
    %81 = math.rsqrt %80 : vector<16x1xf32>
    %82 = vector.broadcast %81 : vector<16x1xf32> to vector<16x32xf32>
    %83 = arith.mulf %78, %82 : vector<16x32xf32>
    %84 = vector.broadcast %64 : vector<1x32xf32> to vector<16x32xf32>
    %85 = arith.mulf %83, %84 : vector<16x32xf32>
    %86 = vector.broadcast %65 : vector<1x32xf32> to vector<16x32xf32>
    %87 = arith.addf %85, %86 : vector<16x32xf32>
    %88 = vector.broadcast %3 : vector<16x1xf32> to vector<16x32xf32>
    %89 = arith.mulf %87, %88 : vector<16x32xf32>
    %c4_i32 = arith.constant 4 : i32
    %90 = tpu.dynamic_rotate %89 by %c4_i32 dim 0 : vector<16x32xf32>, i32 -> vector<16x32xf32>
    %91 = vector.extract_strided_slice %4 {offsets = [0, 0], sizes = [16, 1], strides = [1, 1]} : vector<16x9xf32> to vector<16x1xf32>
    %92 = vector.broadcast %91 : vector<16x1xf32> to vector<16x32xf32>
    %93 = arith.mulf %90, %92 : vector<16x32xf32>
    %c3_i32 = arith.constant 3 : i32
    %94 = tpu.dynamic_rotate %89 by %c3_i32 dim 0 : vector<16x32xf32>, i32 -> vector<16x32xf32>
    %95 = vector.extract_strided_slice %4 {offsets = [0, 1], sizes = [16, 1], strides = [1, 1]} : vector<16x9xf32> to vector<16x1xf32>
    %96 = vector.broadcast %95 : vector<16x1xf32> to vector<16x32xf32>
    %97 = arith.mulf %94, %96 : vector<16x32xf32>
    %c2_i32 = arith.constant 2 : i32
    %98 = tpu.dynamic_rotate %89 by %c2_i32 dim 0 : vector<16x32xf32>, i32 -> vector<16x32xf32>
    %99 = vector.extract_strided_slice %4 {offsets = [0, 2], sizes = [16, 1], strides = [1, 1]} : vector<16x9xf32> to vector<16x1xf32>
    %100 = vector.broadcast %99 : vector<16x1xf32> to vector<16x32xf32>
    %101 = arith.mulf %98, %100 : vector<16x32xf32>
    %c1_i32 = arith.constant 1 : i32
    %102 = tpu.dynamic_rotate %89 by %c1_i32 dim 0 : vector<16x32xf32>, i32 -> vector<16x32xf32>
    %103 = vector.extract_strided_slice %4 {offsets = [0, 3], sizes = [16, 1], strides = [1, 1]} : vector<16x9xf32> to vector<16x1xf32>
    %104 = vector.broadcast %103 : vector<16x1xf32> to vector<16x32xf32>
    %105 = arith.mulf %102, %104 : vector<16x32xf32>
    %106 = vector.extract_strided_slice %4 {offsets = [0, 4], sizes = [16, 1], strides = [1, 1]} : vector<16x9xf32> to vector<16x1xf32>
    %107 = vector.broadcast %106 : vector<16x1xf32> to vector<16x32xf32>
    %108 = arith.mulf %89, %107 : vector<16x32xf32>
    %c15_i32 = arith.constant 15 : i32
    %109 = tpu.dynamic_rotate %89 by %c15_i32 dim 0 : vector<16x32xf32>, i32 -> vector<16x32xf32>
    %110 = vector.extract_strided_slice %4 {offsets = [0, 5], sizes = [16, 1], strides = [1, 1]} : vector<16x9xf32> to vector<16x1xf32>
    %111 = vector.broadcast %110 : vector<16x1xf32> to vector<16x32xf32>
    %112 = arith.mulf %109, %111 : vector<16x32xf32>
    %c14_i32 = arith.constant 14 : i32
    %113 = tpu.dynamic_rotate %89 by %c14_i32 dim 0 : vector<16x32xf32>, i32 -> vector<16x32xf32>
    %114 = vector.extract_strided_slice %4 {offsets = [0, 6], sizes = [16, 1], strides = [1, 1]} : vector<16x9xf32> to vector<16x1xf32>
    %115 = vector.broadcast %114 : vector<16x1xf32> to vector<16x32xf32>
    %116 = arith.mulf %113, %115 : vector<16x32xf32>
    %c13_i32 = arith.constant 13 : i32
    %117 = tpu.dynamic_rotate %89 by %c13_i32 dim 0 : vector<16x32xf32>, i32 -> vector<16x32xf32>
    %118 = vector.extract_strided_slice %4 {offsets = [0, 7], sizes = [16, 1], strides = [1, 1]} : vector<16x9xf32> to vector<16x1xf32>
    %119 = vector.broadcast %118 : vector<16x1xf32> to vector<16x32xf32>
    %120 = arith.mulf %117, %119 : vector<16x32xf32>
    %c12_i32 = arith.constant 12 : i32
    %121 = tpu.dynamic_rotate %89 by %c12_i32 dim 0 : vector<16x32xf32>, i32 -> vector<16x32xf32>
    %122 = vector.extract_strided_slice %4 {offsets = [0, 8], sizes = [16, 1], strides = [1, 1]} : vector<16x9xf32> to vector<16x1xf32>
    %123 = vector.broadcast %122 : vector<16x1xf32> to vector<16x32xf32>
    %124 = arith.mulf %121, %123 : vector<16x32xf32>
    %125 = tpu.concatenate %93, %97, %101, %105, %108, %112, %116, %120, %124 in 1 : vector<16x32xf32>, vector<16x32xf32>, vector<16x32xf32>, vector<16x32xf32>, vector<16x32xf32>, vector<16x32xf32>, vector<16x32xf32>, vector<16x32xf32>, vector<16x32xf32> -> vector<16x288xf32>
    %c64_31 = arith.constant 64 : index
    %c0_32 = arith.constant 0 : index
    %126 = vector.load %arg1[%c64_31, %c0_32] : memref<1328x128xbf16, #tpu.memory_space<vmem>>, vector<288x64xbf16>
    %127 = arith.truncf %125 : vector<16x288xf32> to vector<16x288xbf16>
    %cst_33 = arith.constant dense<0.000000e+00> : vector<16x64xf32>
    %128 = tpu.matmul %127, %126, %cst_33 {dimension_numbers = #tpu.dot_dimension_numbers<[1], [0], [0], [1], [0, 0, 1, 1], [], []>} : vector<16x288xbf16>, vector<288x64xbf16>, vector<16x64xf32> -> vector<16x64xf32>
    %c32_34 = arith.constant 32 : index
    %c0_35 = arith.constant 0 : index
    %129 = vector.load %arg2[%c32_34, %c0_35] : memref<272x128xf32, #tpu.memory_space<vmem>>, vector<1x64xf32>
    %130 = vector.broadcast %129 : vector<1x64xf32> to vector<16x64xf32>
    %131 = arith.addf %128, %130 : vector<16x64xf32>
    %cst_36 = arith.constant 0.000000e+00 : f32
    %132 = vector.broadcast %cst_36 : f32 to vector<16x64xf32>
    %133 = arith.maximumf %131, %132 : vector<16x64xf32>
    %c352 = arith.constant 352 : index
    %c0_37 = arith.constant 0 : index
    %134 = vector.load %arg1[%c352, %c0_37] : memref<1328x128xbf16, #tpu.memory_space<vmem>>, vector<64x32xbf16>
    %135 = arith.truncf %133 : vector<16x64xf32> to vector<16x64xbf16>
    %cst_38 = arith.constant dense<0.000000e+00> : vector<16x32xf32>
    %136 = tpu.matmul %135, %134, %cst_38 {dimension_numbers = #tpu.dot_dimension_numbers<[1], [0], [0], [1], [0, 0, 1, 1], [], []>} : vector<16x64xbf16>, vector<64x32xbf16>, vector<16x32xf32> -> vector<16x32xf32>
    %c40 = arith.constant 40 : index
    %c0_39 = arith.constant 0 : index
    %137 = vector.load %arg2[%c40, %c0_39] : memref<272x128xf32, #tpu.memory_space<vmem>>, vector<1x32xf32>
    %138 = vector.broadcast %137 : vector<1x32xf32> to vector<16x32xf32>
    %139 = arith.addf %136, %138 : vector<16x32xf32>
    %140 = arith.addf %139, %89 : vector<16x32xf32>
    %c48 = arith.constant 48 : index
    %c0_40 = arith.constant 0 : index
    %141 = vector.load %arg2[%c48, %c0_40] : memref<272x128xf32, #tpu.memory_space<vmem>>, vector<1x32xf32>
    %c56 = arith.constant 56 : index
    %c0_41 = arith.constant 0 : index
    %142 = vector.load %arg2[%c56, %c0_41] : memref<272x128xf32, #tpu.memory_space<vmem>>, vector<1x32xf32>
    %cst_42 = arith.constant dense<0.000000e+00> : vector<16xf32>
    %143 = vector.multi_reduction <add>, %140, %cst_42 [1] : vector<16x32xf32> to vector<16xf32>
    %144 = vector.shape_cast %143 : vector<16xf32> to vector<16x1xf32>
    %cst_43 = arith.constant 3.200000e+01 : f32
    %145 = vector.broadcast %cst_43 : f32 to vector<16x1xf32>
    %146 = arith.divf %144, %145 : vector<16x1xf32>
    %147 = vector.broadcast %146 : vector<16x1xf32> to vector<16x32xf32>
    %148 = arith.subf %140, %147 : vector<16x32xf32>
    %149 = arith.mulf %148, %148 : vector<16x32xf32>
    %cst_44 = arith.constant dense<0.000000e+00> : vector<16xf32>
    %150 = vector.multi_reduction <add>, %149, %cst_44 [1] : vector<16x32xf32> to vector<16xf32>
    %151 = vector.shape_cast %150 : vector<16xf32> to vector<16x1xf32>
    %cst_45 = arith.constant 3.200000e+01 : f32
    %152 = vector.broadcast %cst_45 : f32 to vector<16x1xf32>
    %153 = arith.divf %151, %152 : vector<16x1xf32>
    %154 = vector.broadcast %146 : vector<16x1xf32> to vector<16x32xf32>
    %155 = arith.subf %140, %154 : vector<16x32xf32>
    %cst_46 = arith.constant 9.99999974E-6 : f32
    %156 = vector.broadcast %cst_46 : f32 to vector<16x1xf32>
    %157 = arith.addf %153, %156 : vector<16x1xf32>
    %158 = math.rsqrt %157 : vector<16x1xf32>
    %159 = vector.broadcast %158 : vector<16x1xf32> to vector<16x32xf32>
    %160 = arith.mulf %155, %159 : vector<16x32xf32>
    %161 = vector.broadcast %141 : vector<1x32xf32> to vector<16x32xf32>
    %162 = arith.mulf %160, %161 : vector<16x32xf32>
    %163 = vector.broadcast %142 : vector<1x32xf32> to vector<16x32xf32>
    %164 = arith.addf %162, %163 : vector<16x32xf32>
    %165 = vector.broadcast %3 : vector<16x1xf32> to vector<16x32xf32>
    %166 = arith.mulf %164, %165 : vector<16x32xf32>
    %c416 = arith.constant 416 : index
    %c0_47 = arith.constant 0 : index
    %167 = vector.load %arg1[%c416, %c0_47] : memref<1328x128xbf16, #tpu.memory_space<vmem>>, vector<32x96xbf16>
    %168 = arith.truncf %166 : vector<16x32xf32> to vector<16x32xbf16>
    %cst_48 = arith.constant dense<0.000000e+00> : vector<16x96xf32>
    %169 = tpu.matmul %168, %167, %cst_48 {dimension_numbers = #tpu.dot_dimension_numbers<[1], [0], [0], [1], [0, 0, 1, 1], [], []>} : vector<16x32xbf16>, vector<32x96xbf16>, vector<16x96xf32> -> vector<16x96xf32>
    %c64_49 = arith.constant 64 : index
    %c0_50 = arith.constant 0 : index
    %170 = vector.load %arg2[%c64_49, %c0_50] : memref<272x128xf32, #tpu.memory_space<vmem>>, vector<1x96xf32>
    %171 = vector.broadcast %170 : vector<1x96xf32> to vector<16x96xf32>
    %172 = arith.addf %169, %171 : vector<16x96xf32>
    %173 = vector.extract_strided_slice %172 {offsets = [0, 0], sizes = [16, 16], strides = [1, 1]} : vector<16x96xf32> to vector<16x16xf32>
    %174 = vector.extract_strided_slice %172 {offsets = [0, 32], sizes = [16, 16], strides = [1, 1]} : vector<16x96xf32> to vector<16x16xf32>
    %175 = vector.extract_strided_slice %172 {offsets = [0, 64], sizes = [16, 16], strides = [1, 1]} : vector<16x96xf32> to vector<16x16xf32>
    %176 = arith.truncf %173 : vector<16x16xf32> to vector<16x16xbf16>
    %177 = arith.truncf %174 : vector<16x16xf32> to vector<16x16xbf16>
    %cst_51 = arith.constant dense<0.000000e+00> : vector<16x16xf32>
    %178 = tpu.matmul %176, %177, %cst_51 {dimension_numbers = #tpu.dot_dimension_numbers<[1], [1], [0], [0], [0, 0, 1, 0], [], []>} : vector<16x16xbf16>, vector<16x16xbf16>, vector<16x16xf32> -> vector<16x16xf32>
    %cst_52 = arith.constant 2.500000e-01 : f32
    %179 = vector.broadcast %cst_52 : f32 to vector<16x16xf32>
    %180 = arith.mulf %178, %179 : vector<16x16xf32>
    %181 = arith.addf %180, %2 : vector<16x16xf32>
    %cst_53 = arith.constant dense<0xFF800000> : vector<16xf32>
    %182 = vector.multi_reduction <maximumf>, %181, %cst_53 [1] : vector<16x16xf32> to vector<16xf32>
    %183 = vector.shape_cast %182 : vector<16xf32> to vector<16x1xf32>
    %184 = vector.broadcast %183 : vector<16x1xf32> to vector<16x16xf32>
    %185 = arith.subf %181, %184 : vector<16x16xf32>
    %186 = math.exp %185 : vector<16x16xf32>
    %cst_54 = arith.constant dense<0.000000e+00> : vector<16xf32>
    %187 = vector.multi_reduction <add>, %186, %cst_54 [1] : vector<16x16xf32> to vector<16xf32>
    %188 = vector.shape_cast %187 : vector<16xf32> to vector<16x1xf32>
    %189 = tpu.reciprocal %188 {approx = true} : vector<16x1xf32> -> vector<16x1xf32>
    %190 = vector.broadcast %189 : vector<16x1xf32> to vector<16x16xf32>
    %191 = arith.mulf %186, %190 : vector<16x16xf32>
    %192 = arith.truncf %191 : vector<16x16xf32> to vector<16x16xbf16>
    %193 = arith.truncf %175 : vector<16x16xf32> to vector<16x16xbf16>
    %cst_55 = arith.constant dense<0.000000e+00> : vector<16x16xf32>
    %194 = tpu.matmul %192, %193, %cst_55 {dimension_numbers = #tpu.dot_dimension_numbers<[1], [0], [0], [1], [0, 0, 1, 1], [], []>} : vector<16x16xbf16>, vector<16x16xbf16>, vector<16x16xf32> -> vector<16x16xf32>
    %195 = vector.extract_strided_slice %172 {offsets = [0, 16], sizes = [16, 16], strides = [1, 1]} : vector<16x96xf32> to vector<16x16xf32>
    %196 = vector.extract_strided_slice %172 {offsets = [0, 48], sizes = [16, 16], strides = [1, 1]} : vector<16x96xf32> to vector<16x16xf32>
    %197 = vector.extract_strided_slice %172 {offsets = [0, 80], sizes = [16, 16], strides = [1, 1]} : vector<16x96xf32> to vector<16x16xf32>
    %198 = arith.truncf %195 : vector<16x16xf32> to vector<16x16xbf16>
    %199 = arith.truncf %196 : vector<16x16xf32> to vector<16x16xbf16>
    %cst_56 = arith.constant dense<0.000000e+00> : vector<16x16xf32>
    %200 = tpu.matmul %198, %199, %cst_56 {dimension_numbers = #tpu.dot_dimension_numbers<[1], [1], [0], [0], [0, 0, 1, 0], [], []>} : vector<16x16xbf16>, vector<16x16xbf16>, vector<16x16xf32> -> vector<16x16xf32>
    %cst_57 = arith.constant 2.500000e-01 : f32
    %201 = vector.broadcast %cst_57 : f32 to vector<16x16xf32>
    %202 = arith.mulf %200, %201 : vector<16x16xf32>
    %203 = arith.addf %202, %2 : vector<16x16xf32>
    %cst_58 = arith.constant dense<0xFF800000> : vector<16xf32>
    %204 = vector.multi_reduction <maximumf>, %203, %cst_58 [1] : vector<16x16xf32> to vector<16xf32>
    %205 = vector.shape_cast %204 : vector<16xf32> to vector<16x1xf32>
    %206 = vector.broadcast %205 : vector<16x1xf32> to vector<16x16xf32>
    %207 = arith.subf %203, %206 : vector<16x16xf32>
    %208 = math.exp %207 : vector<16x16xf32>
    %cst_59 = arith.constant dense<0.000000e+00> : vector<16xf32>
    %209 = vector.multi_reduction <add>, %208, %cst_59 [1] : vector<16x16xf32> to vector<16xf32>
    %210 = vector.shape_cast %209 : vector<16xf32> to vector<16x1xf32>
    %211 = tpu.reciprocal %210 {approx = true} : vector<16x1xf32> -> vector<16x1xf32>
    %212 = vector.broadcast %211 : vector<16x1xf32> to vector<16x16xf32>
    %213 = arith.mulf %208, %212 : vector<16x16xf32>
    %214 = arith.truncf %213 : vector<16x16xf32> to vector<16x16xbf16>
    %215 = arith.truncf %197 : vector<16x16xf32> to vector<16x16xbf16>
    %cst_60 = arith.constant dense<0.000000e+00> : vector<16x16xf32>
    %216 = tpu.matmul %214, %215, %cst_60 {dimension_numbers = #tpu.dot_dimension_numbers<[1], [0], [0], [1], [0, 0, 1, 1], [], []>} : vector<16x16xbf16>, vector<16x16xbf16>, vector<16x16xf32> -> vector<16x16xf32>
    %217 = tpu.concatenate %194, %216 in 1 : vector<16x16xf32>, vector<16x16xf32> -> vector<16x32xf32>
    %c448 = arith.constant 448 : index
    %c0_61 = arith.constant 0 : index
    %218 = vector.load %arg1[%c448, %c0_61] : memref<1328x128xbf16, #tpu.memory_space<vmem>>, vector<32x32xbf16>
    %219 = arith.truncf %217 : vector<16x32xf32> to vector<16x32xbf16>
    %cst_62 = arith.constant dense<0.000000e+00> : vector<16x32xf32>
    %220 = tpu.matmul %219, %218, %cst_62 {dimension_numbers = #tpu.dot_dimension_numbers<[1], [0], [0], [1], [0, 0, 1, 1], [], []>} : vector<16x32xbf16>, vector<32x32xbf16>, vector<16x32xf32> -> vector<16x32xf32>
    %c72 = arith.constant 72 : index
    %c0_63 = arith.constant 0 : index
    %221 = vector.load %arg2[%c72, %c0_63] : memref<272x128xf32, #tpu.memory_space<vmem>>, vector<1x32xf32>
    %222 = vector.broadcast %221 : vector<1x32xf32> to vector<16x32xf32>
    %223 = arith.addf %220, %222 : vector<16x32xf32>
    %224 = arith.addf %223, %166 : vector<16x32xf32>
    %c80_64 = arith.constant 80 : index
    %c0_65 = arith.constant 0 : index
    %225 = vector.load %arg2[%c80_64, %c0_65] : memref<272x128xf32, #tpu.memory_space<vmem>>, vector<1x32xf32>
    %c88 = arith.constant 88 : index
    %c0_66 = arith.constant 0 : index
    %226 = vector.load %arg2[%c88, %c0_66] : memref<272x128xf32, #tpu.memory_space<vmem>>, vector<1x32xf32>
    %cst_67 = arith.constant dense<0.000000e+00> : vector<16xf32>
    %227 = vector.multi_reduction <add>, %224, %cst_67 [1] : vector<16x32xf32> to vector<16xf32>
    %228 = vector.shape_cast %227 : vector<16xf32> to vector<16x1xf32>
    %cst_68 = arith.constant 3.200000e+01 : f32
    %229 = vector.broadcast %cst_68 : f32 to vector<16x1xf32>
    %230 = arith.divf %228, %229 : vector<16x1xf32>
    %231 = vector.broadcast %230 : vector<16x1xf32> to vector<16x32xf32>
    %232 = arith.subf %224, %231 : vector<16x32xf32>
    %233 = arith.mulf %232, %232 : vector<16x32xf32>
    %cst_69 = arith.constant dense<0.000000e+00> : vector<16xf32>
    %234 = vector.multi_reduction <add>, %233, %cst_69 [1] : vector<16x32xf32> to vector<16xf32>
    %235 = vector.shape_cast %234 : vector<16xf32> to vector<16x1xf32>
    %cst_70 = arith.constant 3.200000e+01 : f32
    %236 = vector.broadcast %cst_70 : f32 to vector<16x1xf32>
    %237 = arith.divf %235, %236 : vector<16x1xf32>
    %238 = vector.broadcast %230 : vector<16x1xf32> to vector<16x32xf32>
    %239 = arith.subf %224, %238 : vector<16x32xf32>
    %cst_71 = arith.constant 9.99999974E-6 : f32
    %240 = vector.broadcast %cst_71 : f32 to vector<16x1xf32>
    %241 = arith.addf %237, %240 : vector<16x1xf32>
    %242 = math.rsqrt %241 : vector<16x1xf32>
    %243 = vector.broadcast %242 : vector<16x1xf32> to vector<16x32xf32>
    %244 = arith.mulf %239, %243 : vector<16x32xf32>
    %245 = vector.broadcast %225 : vector<1x32xf32> to vector<16x32xf32>
    %246 = arith.mulf %244, %245 : vector<16x32xf32>
    %247 = vector.broadcast %226 : vector<1x32xf32> to vector<16x32xf32>
    %248 = arith.addf %246, %247 : vector<16x32xf32>
    %249 = vector.broadcast %3 : vector<16x1xf32> to vector<16x32xf32>
    %250 = arith.mulf %248, %249 : vector<16x32xf32>
    %c4_i32_72 = arith.constant 4 : i32
    %251 = tpu.dynamic_rotate %250 by %c4_i32_72 dim 0 : vector<16x32xf32>, i32 -> vector<16x32xf32>
    %252 = vector.extract_strided_slice %4 {offsets = [0, 0], sizes = [16, 1], strides = [1, 1]} : vector<16x9xf32> to vector<16x1xf32>
    %253 = vector.broadcast %252 : vector<16x1xf32> to vector<16x32xf32>
    %254 = arith.mulf %251, %253 : vector<16x32xf32>
    %c3_i32_73 = arith.constant 3 : i32
    %255 = tpu.dynamic_rotate %250 by %c3_i32_73 dim 0 : vector<16x32xf32>, i32 -> vector<16x32xf32>
    %256 = vector.extract_strided_slice %4 {offsets = [0, 1], sizes = [16, 1], strides = [1, 1]} : vector<16x9xf32> to vector<16x1xf32>
    %257 = vector.broadcast %256 : vector<16x1xf32> to vector<16x32xf32>
    %258 = arith.mulf %255, %257 : vector<16x32xf32>
    %c2_i32_74 = arith.constant 2 : i32
    %259 = tpu.dynamic_rotate %250 by %c2_i32_74 dim 0 : vector<16x32xf32>, i32 -> vector<16x32xf32>
    %260 = vector.extract_strided_slice %4 {offsets = [0, 2], sizes = [16, 1], strides = [1, 1]} : vector<16x9xf32> to vector<16x1xf32>
    %261 = vector.broadcast %260 : vector<16x1xf32> to vector<16x32xf32>
    %262 = arith.mulf %259, %261 : vector<16x32xf32>
    %c1_i32_75 = arith.constant 1 : i32
    %263 = tpu.dynamic_rotate %250 by %c1_i32_75 dim 0 : vector<16x32xf32>, i32 -> vector<16x32xf32>
    %264 = vector.extract_strided_slice %4 {offsets = [0, 3], sizes = [16, 1], strides = [1, 1]} : vector<16x9xf32> to vector<16x1xf32>
    %265 = vector.broadcast %264 : vector<16x1xf32> to vector<16x32xf32>
    %266 = arith.mulf %263, %265 : vector<16x32xf32>
    %267 = vector.extract_strided_slice %4 {offsets = [0, 4], sizes = [16, 1], strides = [1, 1]} : vector<16x9xf32> to vector<16x1xf32>
    %268 = vector.broadcast %267 : vector<16x1xf32> to vector<16x32xf32>
    %269 = arith.mulf %250, %268 : vector<16x32xf32>
    %c15_i32_76 = arith.constant 15 : i32
    %270 = tpu.dynamic_rotate %250 by %c15_i32_76 dim 0 : vector<16x32xf32>, i32 -> vector<16x32xf32>
    %271 = vector.extract_strided_slice %4 {offsets = [0, 5], sizes = [16, 1], strides = [1, 1]} : vector<16x9xf32> to vector<16x1xf32>
    %272 = vector.broadcast %271 : vector<16x1xf32> to vector<16x32xf32>
    %273 = arith.mulf %270, %272 : vector<16x32xf32>
    %c14_i32_77 = arith.constant 14 : i32
    %274 = tpu.dynamic_rotate %250 by %c14_i32_77 dim 0 : vector<16x32xf32>, i32 -> vector<16x32xf32>
    %275 = vector.extract_strided_slice %4 {offsets = [0, 6], sizes = [16, 1], strides = [1, 1]} : vector<16x9xf32> to vector<16x1xf32>
    %276 = vector.broadcast %275 : vector<16x1xf32> to vector<16x32xf32>
    %277 = arith.mulf %274, %276 : vector<16x32xf32>
    %c13_i32_78 = arith.constant 13 : i32
    %278 = tpu.dynamic_rotate %250 by %c13_i32_78 dim 0 : vector<16x32xf32>, i32 -> vector<16x32xf32>
    %279 = vector.extract_strided_slice %4 {offsets = [0, 7], sizes = [16, 1], strides = [1, 1]} : vector<16x9xf32> to vector<16x1xf32>
    %280 = vector.broadcast %279 : vector<16x1xf32> to vector<16x32xf32>
    %281 = arith.mulf %278, %280 : vector<16x32xf32>
    %c12_i32_79 = arith.constant 12 : i32
    %282 = tpu.dynamic_rotate %250 by %c12_i32_79 dim 0 : vector<16x32xf32>, i32 -> vector<16x32xf32>
    %283 = vector.extract_strided_slice %4 {offsets = [0, 8], sizes = [16, 1], strides = [1, 1]} : vector<16x9xf32> to vector<16x1xf32>
    %284 = vector.broadcast %283 : vector<16x1xf32> to vector<16x32xf32>
    %285 = arith.mulf %282, %284 : vector<16x32xf32>
    %286 = tpu.concatenate %254, %258, %262, %266, %269, %273, %277, %281, %285 in 1 : vector<16x32xf32>, vector<16x32xf32>, vector<16x32xf32>, vector<16x32xf32>, vector<16x32xf32>, vector<16x32xf32>, vector<16x32xf32>, vector<16x32xf32>, vector<16x32xf32> -> vector<16x288xf32>
    %c480 = arith.constant 480 : index
    %c0_80 = arith.constant 0 : index
    %287 = vector.load %arg1[%c480, %c0_80] : memref<1328x128xbf16, #tpu.memory_space<vmem>>, vector<288x64xbf16>
    %288 = arith.truncf %286 : vector<16x288xf32> to vector<16x288xbf16>
    %cst_81 = arith.constant dense<0.000000e+00> : vector<16x64xf32>
    %289 = tpu.matmul %288, %287, %cst_81 {dimension_numbers = #tpu.dot_dimension_numbers<[1], [0], [0], [1], [0, 0, 1, 1], [], []>} : vector<16x288xbf16>, vector<288x64xbf16>, vector<16x64xf32> -> vector<16x64xf32>
    %c96 = arith.constant 96 : index
    %c0_82 = arith.constant 0 : index
    %290 = vector.load %arg2[%c96, %c0_82] : memref<272x128xf32, #tpu.memory_space<vmem>>, vector<1x64xf32>
    %291 = vector.broadcast %290 : vector<1x64xf32> to vector<16x64xf32>
    %292 = arith.addf %289, %291 : vector<16x64xf32>
    %cst_83 = arith.constant 0.000000e+00 : f32
    %293 = vector.broadcast %cst_83 : f32 to vector<16x64xf32>
    %294 = arith.maximumf %292, %293 : vector<16x64xf32>
    %c768 = arith.constant 768 : index
    %c0_84 = arith.constant 0 : index
    %295 = vector.load %arg1[%c768, %c0_84] : memref<1328x128xbf16, #tpu.memory_space<vmem>>, vector<64x32xbf16>
    %296 = arith.truncf %294 : vector<16x64xf32> to vector<16x64xbf16>
    %cst_85 = arith.constant dense<0.000000e+00> : vector<16x32xf32>
    %297 = tpu.matmul %296, %295, %cst_85 {dimension_numbers = #tpu.dot_dimension_numbers<[1], [0], [0], [1], [0, 0, 1, 1], [], []>} : vector<16x64xbf16>, vector<64x32xbf16>, vector<16x32xf32> -> vector<16x32xf32>
    %c104 = arith.constant 104 : index
    %c0_86 = arith.constant 0 : index
    %298 = vector.load %arg2[%c104, %c0_86] : memref<272x128xf32, #tpu.memory_space<vmem>>, vector<1x32xf32>
    %299 = vector.broadcast %298 : vector<1x32xf32> to vector<16x32xf32>
    %300 = arith.addf %297, %299 : vector<16x32xf32>
    %301 = arith.addf %300, %250 : vector<16x32xf32>
    %c112 = arith.constant 112 : index
    %c0_87 = arith.constant 0 : index
    %302 = vector.load %arg2[%c112, %c0_87] : memref<272x128xf32, #tpu.memory_space<vmem>>, vector<1x32xf32>
    %c120 = arith.constant 120 : index
    %c0_88 = arith.constant 0 : index
    %303 = vector.load %arg2[%c120, %c0_88] : memref<272x128xf32, #tpu.memory_space<vmem>>, vector<1x32xf32>
    %cst_89 = arith.constant dense<0.000000e+00> : vector<16xf32>
    %304 = vector.multi_reduction <add>, %301, %cst_89 [1] : vector<16x32xf32> to vector<16xf32>
    %305 = vector.shape_cast %304 : vector<16xf32> to vector<16x1xf32>
    %cst_90 = arith.constant 3.200000e+01 : f32
    %306 = vector.broadcast %cst_90 : f32 to vector<16x1xf32>
    %307 = arith.divf %305, %306 : vector<16x1xf32>
    %308 = vector.broadcast %307 : vector<16x1xf32> to vector<16x32xf32>
    %309 = arith.subf %301, %308 : vector<16x32xf32>
    %310 = arith.mulf %309, %309 : vector<16x32xf32>
    %cst_91 = arith.constant dense<0.000000e+00> : vector<16xf32>
    %311 = vector.multi_reduction <add>, %310, %cst_91 [1] : vector<16x32xf32> to vector<16xf32>
    %312 = vector.shape_cast %311 : vector<16xf32> to vector<16x1xf32>
    %cst_92 = arith.constant 3.200000e+01 : f32
    %313 = vector.broadcast %cst_92 : f32 to vector<16x1xf32>
    %314 = arith.divf %312, %313 : vector<16x1xf32>
    %315 = vector.broadcast %307 : vector<16x1xf32> to vector<16x32xf32>
    %316 = arith.subf %301, %315 : vector<16x32xf32>
    %cst_93 = arith.constant 9.99999974E-6 : f32
    %317 = vector.broadcast %cst_93 : f32 to vector<16x1xf32>
    %318 = arith.addf %314, %317 : vector<16x1xf32>
    %319 = math.rsqrt %318 : vector<16x1xf32>
    %320 = vector.broadcast %319 : vector<16x1xf32> to vector<16x32xf32>
    %321 = arith.mulf %316, %320 : vector<16x32xf32>
    %322 = vector.broadcast %302 : vector<1x32xf32> to vector<16x32xf32>
    %323 = arith.mulf %321, %322 : vector<16x32xf32>
    %324 = vector.broadcast %303 : vector<1x32xf32> to vector<16x32xf32>
    %325 = arith.addf %323, %324 : vector<16x32xf32>
    %326 = vector.broadcast %3 : vector<16x1xf32> to vector<16x32xf32>
    %327 = arith.mulf %325, %326 : vector<16x32xf32>
    %328 = arith.addf %327, %1 : vector<16x32xf32>
    %329 = tpu.iota {dimensions = array<i32: 1>} : vector<1x64xi32>
    %c32_i32 = arith.constant 32 : i32
    %330 = vector.broadcast %c32_i32 : i32 to vector<1x64xi32>
    %331 = arith.cmpi slt, %329, %330 : vector<1x64xi32>
    %332 = arith.extui %331 : vector<1x64xi1> to vector<1x64xi32>
    %333 = arith.sitofp %332 : vector<1x64xi32> to vector<1x64xf32>
    %cst_94 = arith.constant 1.000000e+00 : f32
    %334 = vector.broadcast %cst_94 : f32 to vector<1x64xf32>
    %335 = arith.subf %334, %333 : vector<1x64xf32>
    %c1_i32_95 = arith.constant 1 : i32
    %336 = tpu.dynamic_rotate %328 by %c1_i32_95 dim 0 : vector<16x32xf32>, i32 -> vector<16x32xf32>
    %337 = vector.extract_strided_slice %5 {offsets = [0, 0], sizes = [16, 1], strides = [1, 1]} : vector<16x3xf32> to vector<16x1xf32>
    %338 = vector.broadcast %337 : vector<16x1xf32> to vector<16x32xf32>
    %339 = arith.mulf %336, %338 : vector<16x32xf32>
    %340 = vector.extract_strided_slice %5 {offsets = [0, 1], sizes = [16, 1], strides = [1, 1]} : vector<16x3xf32> to vector<16x1xf32>
    %341 = vector.broadcast %340 : vector<16x1xf32> to vector<16x32xf32>
    %342 = arith.mulf %328, %341 : vector<16x32xf32>
    %c15_i32_96 = arith.constant 15 : i32
    %343 = tpu.dynamic_rotate %328 by %c15_i32_96 dim 0 : vector<16x32xf32>, i32 -> vector<16x32xf32>
    %344 = vector.extract_strided_slice %5 {offsets = [0, 2], sizes = [16, 1], strides = [1, 1]} : vector<16x3xf32> to vector<16x1xf32>
    %345 = vector.broadcast %344 : vector<16x1xf32> to vector<16x32xf32>
    %346 = arith.mulf %343, %345 : vector<16x32xf32>
    %347 = tpu.concatenate %339, %342, %346 in 1 : vector<16x32xf32>, vector<16x32xf32>, vector<16x32xf32> -> vector<16x96xf32>
    %c832 = arith.constant 832 : index
    %c0_97 = arith.constant 0 : index
    %348 = vector.load %arg1[%c832, %c0_97] : memref<1328x128xbf16, #tpu.memory_space<vmem>>, vector<96x64xbf16>
    %349 = arith.truncf %347 : vector<16x96xf32> to vector<16x96xbf16>
    %cst_98 = arith.constant dense<0.000000e+00> : vector<16x64xf32>
    %350 = tpu.matmul %349, %348, %cst_98 {dimension_numbers = #tpu.dot_dimension_numbers<[1], [0], [0], [1], [0, 0, 1, 1], [], []>} : vector<16x96xbf16>, vector<96x64xbf16>, vector<16x64xf32> -> vector<16x64xf32>
    %c128 = arith.constant 128 : index
    %c0_99 = arith.constant 0 : index
    %351 = vector.load %arg2[%c128, %c0_99] : memref<272x128xf32, #tpu.memory_space<vmem>>, vector<1x64xf32>
    %352 = vector.broadcast %351 : vector<1x64xf32> to vector<16x64xf32>
    %353 = arith.addf %350, %352 : vector<16x64xf32>
    %cst_100 = arith.constant 0.000000e+00 : f32
    %354 = vector.broadcast %cst_100 : f32 to vector<16x64xf32>
    %355 = arith.maximumf %353, %354 : vector<16x64xf32>
    %c136 = arith.constant 136 : index
    %c0_101 = arith.constant 0 : index
    %356 = vector.load %arg2[%c136, %c0_101] : memref<272x128xf32, #tpu.memory_space<vmem>>, vector<1x64xf32>
    %c144 = arith.constant 144 : index
    %c0_102 = arith.constant 0 : index
    %357 = vector.load %arg2[%c144, %c0_102] : memref<272x128xf32, #tpu.memory_space<vmem>>, vector<1x64xf32>
    %358 = vector.broadcast %333 : vector<1x64xf32> to vector<16x64xf32>
    %359 = arith.mulf %355, %358 : vector<16x64xf32>
    %cst_103 = arith.constant dense<0.000000e+00> : vector<16xf32>
    %360 = vector.multi_reduction <add>, %359, %cst_103 [1] : vector<16x64xf32> to vector<16xf32>
    %361 = vector.shape_cast %360 : vector<16xf32> to vector<16x1xf32>
    %362 = vector.broadcast %361 : vector<16x1xf32> to vector<16x64xf32>
    %363 = vector.broadcast %333 : vector<1x64xf32> to vector<16x64xf32>
    %364 = arith.mulf %362, %363 : vector<16x64xf32>
    %365 = vector.broadcast %335 : vector<1x64xf32> to vector<16x64xf32>
    %366 = arith.mulf %355, %365 : vector<16x64xf32>
    %cst_104 = arith.constant dense<0.000000e+00> : vector<16xf32>
    %367 = vector.multi_reduction <add>, %366, %cst_104 [1] : vector<16x64xf32> to vector<16xf32>
    %368 = vector.shape_cast %367 : vector<16xf32> to vector<16x1xf32>
    %369 = vector.broadcast %368 : vector<16x1xf32> to vector<16x64xf32>
    %370 = vector.broadcast %335 : vector<1x64xf32> to vector<16x64xf32>
    %371 = arith.mulf %369, %370 : vector<16x64xf32>
    %372 = arith.addf %364, %371 : vector<16x64xf32>
    %cst_105 = arith.constant 3.125000e-02 : f32
    %373 = vector.broadcast %cst_105 : f32 to vector<16x64xf32>
    %374 = arith.mulf %372, %373 : vector<16x64xf32>
    %375 = arith.subf %355, %374 : vector<16x64xf32>
    %376 = arith.mulf %375, %375 : vector<16x64xf32>
    %377 = vector.broadcast %333 : vector<1x64xf32> to vector<16x64xf32>
    %378 = arith.mulf %376, %377 : vector<16x64xf32>
    %cst_106 = arith.constant dense<0.000000e+00> : vector<16xf32>
    %379 = vector.multi_reduction <add>, %378, %cst_106 [1] : vector<16x64xf32> to vector<16xf32>
    %380 = vector.shape_cast %379 : vector<16xf32> to vector<16x1xf32>
    %381 = vector.broadcast %380 : vector<16x1xf32> to vector<16x64xf32>
    %382 = vector.broadcast %333 : vector<1x64xf32> to vector<16x64xf32>
    %383 = arith.mulf %381, %382 : vector<16x64xf32>
    %384 = arith.mulf %375, %375 : vector<16x64xf32>
    %385 = vector.broadcast %335 : vector<1x64xf32> to vector<16x64xf32>
    %386 = arith.mulf %384, %385 : vector<16x64xf32>
    %cst_107 = arith.constant dense<0.000000e+00> : vector<16xf32>
    %387 = vector.multi_reduction <add>, %386, %cst_107 [1] : vector<16x64xf32> to vector<16xf32>
    %388 = vector.shape_cast %387 : vector<16xf32> to vector<16x1xf32>
    %389 = vector.broadcast %388 : vector<16x1xf32> to vector<16x64xf32>
    %390 = vector.broadcast %335 : vector<1x64xf32> to vector<16x64xf32>
    %391 = arith.mulf %389, %390 : vector<16x64xf32>
    %392 = arith.addf %383, %391 : vector<16x64xf32>
    %cst_108 = arith.constant 3.125000e-02 : f32
    %393 = vector.broadcast %cst_108 : f32 to vector<16x64xf32>
    %394 = arith.mulf %392, %393 : vector<16x64xf32>
    %cst_109 = arith.constant 9.99999974E-6 : f32
    %395 = vector.broadcast %cst_109 : f32 to vector<16x64xf32>
    %396 = arith.addf %394, %395 : vector<16x64xf32>
    %397 = math.rsqrt %396 : vector<16x64xf32>
    %398 = arith.mulf %375, %397 : vector<16x64xf32>
    %399 = vector.broadcast %356 : vector<1x64xf32> to vector<16x64xf32>
    %400 = arith.mulf %398, %399 : vector<16x64xf32>
    %401 = vector.broadcast %357 : vector<1x64xf32> to vector<16x64xf32>
    %402 = arith.addf %400, %401 : vector<16x64xf32>
    %c1_i32_110 = arith.constant 1 : i32
    %403 = tpu.dynamic_rotate %402 by %c1_i32_110 dim 0 : vector<16x64xf32>, i32 -> vector<16x64xf32>
    %404 = vector.extract_strided_slice %5 {offsets = [0, 0], sizes = [16, 1], strides = [1, 1]} : vector<16x3xf32> to vector<16x1xf32>
    %405 = vector.broadcast %404 : vector<16x1xf32> to vector<16x64xf32>
    %406 = arith.mulf %403, %405 : vector<16x64xf32>
    %407 = vector.extract_strided_slice %5 {offsets = [0, 1], sizes = [16, 1], strides = [1, 1]} : vector<16x3xf32> to vector<16x1xf32>
    %408 = vector.broadcast %407 : vector<16x1xf32> to vector<16x64xf32>
    %409 = arith.mulf %402, %408 : vector<16x64xf32>
    %c15_i32_111 = arith.constant 15 : i32
    %410 = tpu.dynamic_rotate %402 by %c15_i32_111 dim 0 : vector<16x64xf32>, i32 -> vector<16x64xf32>
    %411 = vector.extract_strided_slice %5 {offsets = [0, 2], sizes = [16, 1], strides = [1, 1]} : vector<16x3xf32> to vector<16x1xf32>
    %412 = vector.broadcast %411 : vector<16x1xf32> to vector<16x64xf32>
    %413 = arith.mulf %410, %412 : vector<16x64xf32>
    %414 = tpu.concatenate %406, %409, %413 in 1 : vector<16x64xf32>, vector<16x64xf32>, vector<16x64xf32> -> vector<16x192xf32>
    %c928 = arith.constant 928 : index
    %c0_112 = arith.constant 0 : index
    %415 = vector.load %arg1[%c928, %c0_112] : memref<1328x128xbf16, #tpu.memory_space<vmem>>, vector<192x64xbf16>
    %416 = arith.truncf %414 : vector<16x192xf32> to vector<16x192xbf16>
    %cst_113 = arith.constant dense<0.000000e+00> : vector<16x64xf32>
    %417 = tpu.matmul %416, %415, %cst_113 {dimension_numbers = #tpu.dot_dimension_numbers<[1], [0], [0], [1], [0, 0, 1, 1], [], []>} : vector<16x192xbf16>, vector<192x64xbf16>, vector<16x64xf32> -> vector<16x64xf32>
    %c152 = arith.constant 152 : index
    %c0_114 = arith.constant 0 : index
    %418 = vector.load %arg2[%c152, %c0_114] : memref<272x128xf32, #tpu.memory_space<vmem>>, vector<1x64xf32>
    %419 = vector.broadcast %418 : vector<1x64xf32> to vector<16x64xf32>
    %420 = arith.addf %417, %419 : vector<16x64xf32>
    %cst_115 = arith.constant 0.000000e+00 : f32
    %421 = vector.broadcast %cst_115 : f32 to vector<16x64xf32>
    %422 = arith.maximumf %420, %421 : vector<16x64xf32>
    %c160 = arith.constant 160 : index
    %c0_116 = arith.constant 0 : index
    %423 = vector.load %arg2[%c160, %c0_116] : memref<272x128xf32, #tpu.memory_space<vmem>>, vector<1x64xf32>
    %c168 = arith.constant 168 : index
    %c0_117 = arith.constant 0 : index
    %424 = vector.load %arg2[%c168, %c0_117] : memref<272x128xf32, #tpu.memory_space<vmem>>, vector<1x64xf32>
    %425 = vector.broadcast %333 : vector<1x64xf32> to vector<16x64xf32>
    %426 = arith.mulf %422, %425 : vector<16x64xf32>
    %cst_118 = arith.constant dense<0.000000e+00> : vector<16xf32>
    %427 = vector.multi_reduction <add>, %426, %cst_118 [1] : vector<16x64xf32> to vector<16xf32>
    %428 = vector.shape_cast %427 : vector<16xf32> to vector<16x1xf32>
    %429 = vector.broadcast %428 : vector<16x1xf32> to vector<16x64xf32>
    %430 = vector.broadcast %333 : vector<1x64xf32> to vector<16x64xf32>
    %431 = arith.mulf %429, %430 : vector<16x64xf32>
    %432 = vector.broadcast %335 : vector<1x64xf32> to vector<16x64xf32>
    %433 = arith.mulf %422, %432 : vector<16x64xf32>
    %cst_119 = arith.constant dense<0.000000e+00> : vector<16xf32>
    %434 = vector.multi_reduction <add>, %433, %cst_119 [1] : vector<16x64xf32> to vector<16xf32>
    %435 = vector.shape_cast %434 : vector<16xf32> to vector<16x1xf32>
    %436 = vector.broadcast %435 : vector<16x1xf32> to vector<16x64xf32>
    %437 = vector.broadcast %335 : vector<1x64xf32> to vector<16x64xf32>
    %438 = arith.mulf %436, %437 : vector<16x64xf32>
    %439 = arith.addf %431, %438 : vector<16x64xf32>
    %cst_120 = arith.constant 3.125000e-02 : f32
    %440 = vector.broadcast %cst_120 : f32 to vector<16x64xf32>
    %441 = arith.mulf %439, %440 : vector<16x64xf32>
    %442 = arith.subf %422, %441 : vector<16x64xf32>
    %443 = arith.mulf %442, %442 : vector<16x64xf32>
    %444 = vector.broadcast %333 : vector<1x64xf32> to vector<16x64xf32>
    %445 = arith.mulf %443, %444 : vector<16x64xf32>
    %cst_121 = arith.constant dense<0.000000e+00> : vector<16xf32>
    %446 = vector.multi_reduction <add>, %445, %cst_121 [1] : vector<16x64xf32> to vector<16xf32>
    %447 = vector.shape_cast %446 : vector<16xf32> to vector<16x1xf32>
    %448 = vector.broadcast %447 : vector<16x1xf32> to vector<16x64xf32>
    %449 = vector.broadcast %333 : vector<1x64xf32> to vector<16x64xf32>
    %450 = arith.mulf %448, %449 : vector<16x64xf32>
    %451 = arith.mulf %442, %442 : vector<16x64xf32>
    %452 = vector.broadcast %335 : vector<1x64xf32> to vector<16x64xf32>
    %453 = arith.mulf %451, %452 : vector<16x64xf32>
    %cst_122 = arith.constant dense<0.000000e+00> : vector<16xf32>
    %454 = vector.multi_reduction <add>, %453, %cst_122 [1] : vector<16x64xf32> to vector<16xf32>
    %455 = vector.shape_cast %454 : vector<16xf32> to vector<16x1xf32>
    %456 = vector.broadcast %455 : vector<16x1xf32> to vector<16x64xf32>
    %457 = vector.broadcast %335 : vector<1x64xf32> to vector<16x64xf32>
    %458 = arith.mulf %456, %457 : vector<16x64xf32>
    %459 = arith.addf %450, %458 : vector<16x64xf32>
    %cst_123 = arith.constant 3.125000e-02 : f32
    %460 = vector.broadcast %cst_123 : f32 to vector<16x64xf32>
    %461 = arith.mulf %459, %460 : vector<16x64xf32>
    %cst_124 = arith.constant 9.99999974E-6 : f32
    %462 = vector.broadcast %cst_124 : f32 to vector<16x64xf32>
    %463 = arith.addf %461, %462 : vector<16x64xf32>
    %464 = math.rsqrt %463 : vector<16x64xf32>
    %465 = arith.mulf %442, %464 : vector<16x64xf32>
    %466 = vector.broadcast %423 : vector<1x64xf32> to vector<16x64xf32>
    %467 = arith.mulf %465, %466 : vector<16x64xf32>
    %468 = vector.broadcast %424 : vector<1x64xf32> to vector<16x64xf32>
    %469 = arith.addf %467, %468 : vector<16x64xf32>
    %c176 = arith.constant 176 : index
    %c0_125 = arith.constant 0 : index
    %470 = vector.load %arg2[%c176, %c0_125] : memref<272x128xf32, #tpu.memory_space<vmem>>, vector<1x64xf32>
    %471 = vector.broadcast %470 : vector<1x64xf32> to vector<16x64xf32>
    %472 = arith.mulf %469, %471 : vector<16x64xf32>
    %473 = vector.broadcast %333 : vector<1x64xf32> to vector<16x64xf32>
    %474 = arith.mulf %472, %473 : vector<16x64xf32>
    %cst_126 = arith.constant dense<0.000000e+00> : vector<16xf32>
    %475 = vector.multi_reduction <add>, %474, %cst_126 [1] : vector<16x64xf32> to vector<16xf32>
    %476 = vector.shape_cast %475 : vector<16xf32> to vector<16x1xf32>
    %c184 = arith.constant 184 : index
    %c0_127 = arith.constant 0 : index
    %477 = vector.load %arg2[%c184, %c0_127] : memref<272x128xf32, #tpu.memory_space<vmem>>, vector<1x1xf32>
    %478 = vector.broadcast %477 : vector<1x1xf32> to vector<16x1xf32>
    %479 = arith.addf %476, %478 : vector<16x1xf32>
    %480 = arith.mulf %479, %3 : vector<16x1xf32>
    %481 = vector.broadcast %335 : vector<1x64xf32> to vector<16x64xf32>
    %482 = arith.mulf %472, %481 : vector<16x64xf32>
    %cst_128 = arith.constant dense<0.000000e+00> : vector<16xf32>
    %483 = vector.multi_reduction <add>, %482, %cst_128 [1] : vector<16x64xf32> to vector<16xf32>
    %484 = vector.shape_cast %483 : vector<16xf32> to vector<16x1xf32>
    %c192 = arith.constant 192 : index
    %c0_129 = arith.constant 0 : index
    %485 = vector.load %arg2[%c192, %c0_129] : memref<272x128xf32, #tpu.memory_space<vmem>>, vector<1x1xf32>
    %486 = vector.broadcast %485 : vector<1x1xf32> to vector<16x1xf32>
    %487 = arith.addf %484, %486 : vector<16x1xf32>
    %488 = arith.mulf %487, %3 : vector<16x1xf32>
    %cst_130 = arith.constant 1.000000e+00 : f32
    %489 = vector.broadcast %cst_130 : f32 to vector<16x1xf32>
    %490 = arith.mulf %488, %489 : vector<16x1xf32>
    %c264 = arith.constant 264 : index
    %c0_131 = arith.constant 0 : index
    %491 = vector.load %arg2[%c264, %c0_131] : memref<272x128xf32, #tpu.memory_space<vmem>>, vector<1x15xf32>
    %492 = vector.broadcast %490 : vector<16x1xf32> to vector<16x15xf32>
    %493 = vector.broadcast %491 : vector<1x15xf32> to vector<16x15xf32>
    %494 = arith.cmpf ogt, %492, %493 : vector<16x15xf32>
    %495 = arith.extui %494 : vector<16x15xi1> to vector<16x15xi32>
    %496 = arith.sitofp %495 : vector<16x15xi32> to vector<16x15xf32>
    %cst_132 = arith.constant dense<0.000000e+00> : vector<16xf32>
    %497 = vector.multi_reduction <add>, %496, %cst_132 [1] : vector<16x15xf32> to vector<16xf32>
    %498 = vector.shape_cast %497 : vector<16xf32> to vector<16x1xf32>
    %499 = tpu.iota {dimensions = array<i32: 1>} : vector<16x16xi32>
    %500 = arith.sitofp %499 : vector<16x16xi32> to vector<16x16xf32>
    %501 = vector.broadcast %498 : vector<16x1xf32> to vector<16x16xf32>
    %502 = arith.cmpf oeq, %500, %501 : vector<16x16xf32>
    %503 = arith.extui %502 : vector<16x16xi1> to vector<16x16xi32>
    %504 = arith.sitofp %503 : vector<16x16xi32> to vector<16x16xf32>
    %c1312 = arith.constant 1312 : index
    %c0_133 = arith.constant 0 : index
    %505 = vector.load %arg1[%c1312, %c0_133] : memref<1328x128xbf16, #tpu.memory_space<vmem>>, vector<16x32xbf16>
    %506 = arith.truncf %504 : vector<16x16xf32> to vector<16x16xbf16>
    %cst_134 = arith.constant dense<0.000000e+00> : vector<16x32xf32>
    %507 = tpu.matmul %506, %505, %cst_134 {dimension_numbers = #tpu.dot_dimension_numbers<[1], [0], [0], [1], [0, 0, 1, 1], [], []>} : vector<16x16xbf16>, vector<16x32xbf16>, vector<16x32xf32> -> vector<16x32xf32>
    %508 = arith.addf %328, %507 : vector<16x32xf32>
    %c1_i32_135 = arith.constant 1 : i32
    %509 = tpu.dynamic_rotate %508 by %c1_i32_135 dim 0 : vector<16x32xf32>, i32 -> vector<16x32xf32>
    %510 = vector.extract_strided_slice %5 {offsets = [0, 0], sizes = [16, 1], strides = [1, 1]} : vector<16x3xf32> to vector<16x1xf32>
    %511 = vector.broadcast %510 : vector<16x1xf32> to vector<16x32xf32>
    %512 = arith.mulf %509, %511 : vector<16x32xf32>
    %513 = vector.extract_strided_slice %5 {offsets = [0, 1], sizes = [16, 1], strides = [1, 1]} : vector<16x3xf32> to vector<16x1xf32>
    %514 = vector.broadcast %513 : vector<16x1xf32> to vector<16x32xf32>
    %515 = arith.mulf %508, %514 : vector<16x32xf32>
    %c15_i32_136 = arith.constant 15 : i32
    %516 = tpu.dynamic_rotate %508 by %c15_i32_136 dim 0 : vector<16x32xf32>, i32 -> vector<16x32xf32>
    %517 = vector.extract_strided_slice %5 {offsets = [0, 2], sizes = [16, 1], strides = [1, 1]} : vector<16x3xf32> to vector<16x1xf32>
    %518 = vector.broadcast %517 : vector<16x1xf32> to vector<16x32xf32>
    %519 = arith.mulf %516, %518 : vector<16x32xf32>
    %520 = tpu.concatenate %512, %515, %519 in 1 : vector<16x32xf32>, vector<16x32xf32>, vector<16x32xf32> -> vector<16x96xf32>
    %c1120 = arith.constant 1120 : index
    %c0_137 = arith.constant 0 : index
    %521 = vector.load %arg1[%c1120, %c0_137] : memref<1328x128xbf16, #tpu.memory_space<vmem>>, vector<96x32xbf16>
    %522 = arith.truncf %520 : vector<16x96xf32> to vector<16x96xbf16>
    %cst_138 = arith.constant dense<0.000000e+00> : vector<16x32xf32>
    %523 = tpu.matmul %522, %521, %cst_138 {dimension_numbers = #tpu.dot_dimension_numbers<[1], [0], [0], [1], [0, 0, 1, 1], [], []>} : vector<16x96xbf16>, vector<96x32xbf16>, vector<16x32xf32> -> vector<16x32xf32>
    %c200 = arith.constant 200 : index
    %c0_139 = arith.constant 0 : index
    %524 = vector.load %arg2[%c200, %c0_139] : memref<272x128xf32, #tpu.memory_space<vmem>>, vector<1x32xf32>
    %525 = vector.broadcast %524 : vector<1x32xf32> to vector<16x32xf32>
    %526 = arith.addf %523, %525 : vector<16x32xf32>
    %cst_140 = arith.constant 0.000000e+00 : f32
    %527 = vector.broadcast %cst_140 : f32 to vector<16x32xf32>
    %528 = arith.maximumf %526, %527 : vector<16x32xf32>
    %c208 = arith.constant 208 : index
    %c0_141 = arith.constant 0 : index
    %529 = vector.load %arg2[%c208, %c0_141] : memref<272x128xf32, #tpu.memory_space<vmem>>, vector<1x32xf32>
    %c216 = arith.constant 216 : index
    %c0_142 = arith.constant 0 : index
    %530 = vector.load %arg2[%c216, %c0_142] : memref<272x128xf32, #tpu.memory_space<vmem>>, vector<1x32xf32>
    %cst_143 = arith.constant dense<0.000000e+00> : vector<16xf32>
    %531 = vector.multi_reduction <add>, %528, %cst_143 [1] : vector<16x32xf32> to vector<16xf32>
    %532 = vector.shape_cast %531 : vector<16xf32> to vector<16x1xf32>
    %cst_144 = arith.constant 3.200000e+01 : f32
    %533 = vector.broadcast %cst_144 : f32 to vector<16x1xf32>
    %534 = arith.divf %532, %533 : vector<16x1xf32>
    %535 = vector.broadcast %534 : vector<16x1xf32> to vector<16x32xf32>
    %536 = arith.subf %528, %535 : vector<16x32xf32>
    %537 = arith.mulf %536, %536 : vector<16x32xf32>
    %cst_145 = arith.constant dense<0.000000e+00> : vector<16xf32>
    %538 = vector.multi_reduction <add>, %537, %cst_145 [1] : vector<16x32xf32> to vector<16xf32>
    %539 = vector.shape_cast %538 : vector<16xf32> to vector<16x1xf32>
    %cst_146 = arith.constant 3.200000e+01 : f32
    %540 = vector.broadcast %cst_146 : f32 to vector<16x1xf32>
    %541 = arith.divf %539, %540 : vector<16x1xf32>
    %542 = vector.broadcast %534 : vector<16x1xf32> to vector<16x32xf32>
    %543 = arith.subf %528, %542 : vector<16x32xf32>
    %cst_147 = arith.constant 9.99999974E-6 : f32
    %544 = vector.broadcast %cst_147 : f32 to vector<16x1xf32>
    %545 = arith.addf %541, %544 : vector<16x1xf32>
    %546 = math.rsqrt %545 : vector<16x1xf32>
    %547 = vector.broadcast %546 : vector<16x1xf32> to vector<16x32xf32>
    %548 = arith.mulf %543, %547 : vector<16x32xf32>
    %549 = vector.broadcast %529 : vector<1x32xf32> to vector<16x32xf32>
    %550 = arith.mulf %548, %549 : vector<16x32xf32>
    %551 = vector.broadcast %530 : vector<1x32xf32> to vector<16x32xf32>
    %552 = arith.addf %550, %551 : vector<16x32xf32>
    %c1_i32_148 = arith.constant 1 : i32
    %553 = tpu.dynamic_rotate %552 by %c1_i32_148 dim 0 : vector<16x32xf32>, i32 -> vector<16x32xf32>
    %554 = vector.extract_strided_slice %5 {offsets = [0, 0], sizes = [16, 1], strides = [1, 1]} : vector<16x3xf32> to vector<16x1xf32>
    %555 = vector.broadcast %554 : vector<16x1xf32> to vector<16x32xf32>
    %556 = arith.mulf %553, %555 : vector<16x32xf32>
    %557 = vector.extract_strided_slice %5 {offsets = [0, 1], sizes = [16, 1], strides = [1, 1]} : vector<16x3xf32> to vector<16x1xf32>
    %558 = vector.broadcast %557 : vector<16x1xf32> to vector<16x32xf32>
    %559 = arith.mulf %552, %558 : vector<16x32xf32>
    %c15_i32_149 = arith.constant 15 : i32
    %560 = tpu.dynamic_rotate %552 by %c15_i32_149 dim 0 : vector<16x32xf32>, i32 -> vector<16x32xf32>
    %561 = vector.extract_strided_slice %5 {offsets = [0, 2], sizes = [16, 1], strides = [1, 1]} : vector<16x3xf32> to vector<16x1xf32>
    %562 = vector.broadcast %561 : vector<16x1xf32> to vector<16x32xf32>
    %563 = arith.mulf %560, %562 : vector<16x32xf32>
    %564 = tpu.concatenate %556, %559, %563 in 1 : vector<16x32xf32>, vector<16x32xf32>, vector<16x32xf32> -> vector<16x96xf32>
    %c1216 = arith.constant 1216 : index
    %c0_150 = arith.constant 0 : index
    %565 = vector.load %arg1[%c1216, %c0_150] : memref<1328x128xbf16, #tpu.memory_space<vmem>>, vector<96x32xbf16>
    %566 = arith.truncf %564 : vector<16x96xf32> to vector<16x96xbf16>
    %cst_151 = arith.constant dense<0.000000e+00> : vector<16x32xf32>
    %567 = tpu.matmul %566, %565, %cst_151 {dimension_numbers = #tpu.dot_dimension_numbers<[1], [0], [0], [1], [0, 0, 1, 1], [], []>} : vector<16x96xbf16>, vector<96x32xbf16>, vector<16x32xf32> -> vector<16x32xf32>
    %c224 = arith.constant 224 : index
    %c0_152 = arith.constant 0 : index
    %568 = vector.load %arg2[%c224, %c0_152] : memref<272x128xf32, #tpu.memory_space<vmem>>, vector<1x32xf32>
    %569 = vector.broadcast %568 : vector<1x32xf32> to vector<16x32xf32>
    %570 = arith.addf %567, %569 : vector<16x32xf32>
    %cst_153 = arith.constant 0.000000e+00 : f32
    %571 = vector.broadcast %cst_153 : f32 to vector<16x32xf32>
    %572 = arith.maximumf %570, %571 : vector<16x32xf32>
    %c232 = arith.constant 232 : index
    %c0_154 = arith.constant 0 : index
    %573 = vector.load %arg2[%c232, %c0_154] : memref<272x128xf32, #tpu.memory_space<vmem>>, vector<1x32xf32>
    %c240 = arith.constant 240 : index
    %c0_155 = arith.constant 0 : index
    %574 = vector.load %arg2[%c240, %c0_155] : memref<272x128xf32, #tpu.memory_space<vmem>>, vector<1x32xf32>
    %cst_156 = arith.constant dense<0.000000e+00> : vector<16xf32>
    %575 = vector.multi_reduction <add>, %572, %cst_156 [1] : vector<16x32xf32> to vector<16xf32>
    %576 = vector.shape_cast %575 : vector<16xf32> to vector<16x1xf32>
    %cst_157 = arith.constant 3.200000e+01 : f32
    %577 = vector.broadcast %cst_157 : f32 to vector<16x1xf32>
    %578 = arith.divf %576, %577 : vector<16x1xf32>
    %579 = vector.broadcast %578 : vector<16x1xf32> to vector<16x32xf32>
    %580 = arith.subf %572, %579 : vector<16x32xf32>
    %581 = arith.mulf %580, %580 : vector<16x32xf32>
    %cst_158 = arith.constant dense<0.000000e+00> : vector<16xf32>
    %582 = vector.multi_reduction <add>, %581, %cst_158 [1] : vector<16x32xf32> to vector<16xf32>
    %583 = vector.shape_cast %582 : vector<16xf32> to vector<16x1xf32>
    %cst_159 = arith.constant 3.200000e+01 : f32
    %584 = vector.broadcast %cst_159 : f32 to vector<16x1xf32>
    %585 = arith.divf %583, %584 : vector<16x1xf32>
    %586 = vector.broadcast %578 : vector<16x1xf32> to vector<16x32xf32>
    %587 = arith.subf %572, %586 : vector<16x32xf32>
    %cst_160 = arith.constant 9.99999974E-6 : f32
    %588 = vector.broadcast %cst_160 : f32 to vector<16x1xf32>
    %589 = arith.addf %585, %588 : vector<16x1xf32>
    %590 = math.rsqrt %589 : vector<16x1xf32>
    %591 = vector.broadcast %590 : vector<16x1xf32> to vector<16x32xf32>
    %592 = arith.mulf %587, %591 : vector<16x32xf32>
    %593 = vector.broadcast %573 : vector<1x32xf32> to vector<16x32xf32>
    %594 = arith.mulf %592, %593 : vector<16x32xf32>
    %595 = vector.broadcast %574 : vector<1x32xf32> to vector<16x32xf32>
    %596 = arith.addf %594, %595 : vector<16x32xf32>
    %c248 = arith.constant 248 : index
    %c0_161 = arith.constant 0 : index
    %597 = vector.load %arg2[%c248, %c0_161] : memref<272x128xf32, #tpu.memory_space<vmem>>, vector<1x32xf32>
    %598 = vector.broadcast %597 : vector<1x32xf32> to vector<16x32xf32>
    %599 = arith.mulf %596, %598 : vector<16x32xf32>
    %cst_162 = arith.constant dense<0.000000e+00> : vector<16xf32>
    %600 = vector.multi_reduction <add>, %599, %cst_162 [1] : vector<16x32xf32> to vector<16xf32>
    %601 = vector.shape_cast %600 : vector<16xf32> to vector<16x1xf32>
    %c256 = arith.constant 256 : index
    %c0_163 = arith.constant 0 : index
    %602 = vector.load %arg2[%c256, %c0_163] : memref<272x128xf32, #tpu.memory_space<vmem>>, vector<1x1xf32>
    %603 = vector.broadcast %602 : vector<1x1xf32> to vector<16x1xf32>
    %604 = arith.addf %601, %603 : vector<16x1xf32>
    %605 = arith.mulf %604, %3 : vector<16x1xf32>
    %cst_164 = arith.constant 1.000000e+00 : f32
    %606 = vector.broadcast %cst_164 : f32 to vector<16x1xf32>
    %607 = arith.mulf %605, %606 : vector<16x1xf32>
    %608 = tpu.concatenate %480, %490, %607 in 1 : vector<16x1xf32>, vector<16x1xf32>, vector<16x1xf32> -> vector<16x3xf32>
    %c0_165 = arith.constant 0 : index
    %c0_166 = arith.constant 0 : index
    %609 = vector.load %arg3[%c0_165, %c0_166] : memref<16x3xf32, #tpu.memory_space<vmem>>, vector<16x3xf32>
    tpu.vector_store %arg3[%c0_165, %c0_166], %608 {strides = array<i32>} : memref<16x3xf32, #tpu.memory_space<vmem>>, vector<16x3xf32>,
    return
  }
}

</mosaic_0001>

<llo_original>
// kernel: tpu_custom_call.1
$region0: #{tpu_custom_call.1}
  #allocation0 [shape = 'u32[]', space=smem, size = 0x4, offset = 0x4, fixed_abs, tag = 'smem constant byte address 0x4 - core index']
  #allocation1 [shape = 'u32[144,128]{1,0:T(1,128)}', space=vmem, size = 0x12000, scoped, tag = 'internal scratch']
  %s0 = inlined_call_operand.hbm [shape: f32[16,128], index: 0, kind: input, shape index: {}]
  %s1 = inlined_call_operand.hbm [shape: bf16[1328,128], index: 1, kind: input, shape index: {}]
  %s2 = inlined_call_operand.hbm [shape: f32[272,128], index: 2, kind: input, shape index: {}]
  %s3 = inlined_call_operand.vmem [shape: f32[16,3], index: 3, kind: output, shape index: {}]
  %s4 = sld [smem:[#allocation0]]
  $region34: #{tpu_custom_call.1} parent=0
    _
  %s6 = ssub.s32 1, %s4
  %s7 = scalar_select 0, %s6, %s4
  $region1: #{tpu_custom_call.1} parent=0
    #allocation2 [shape = 'u8[8192]{0}', space=vmem, size = 0x2000, scoped, tag = 'input window, operand 0, single buffered']
    #allocation3 [shape = 's32[1]{0}', space=sflag, size = 0x4, scoped, tag = 'scoped memory for tpu_custom_call.1']
    #allocation4 [shape = 'u8[339968]{0}', space=vmem, size = 0x53000, scoped, tag = 'input window, operand 1, single buffered']
    #allocation5 [shape = 's32[1]{0}', space=sflag, size = 0x4, scoped, tag = 'scoped memory for tpu_custom_call.1']
    #allocation6 [shape = 'u8[139264]{0}', space=vmem, size = 0x22000, scoped, tag = 'input window, operand 2, single buffered']
    %8 = vsyncpa [#allocation3], 0
    %9 = vsyncpa [#allocation5], 0
    // Predicated region
    $region2: #{tpu_custom_call.1} parent=1 // pred_check
      _
    $region3: #{tpu_custom_call.1} parent=1 // pred_check_branch
      %11 = sbr.rel (0) target = $region5
    $region4: #{tpu_custom_call.1} parent=1 // pred_region
      %s13 = ssub.s32 256, 256
      %14 = vsyncadd [#allocation3], %s13
      %s15 = sshll.u32 [#allocation2], 4
      %s16 = int_to_ptr.vmem [resolvable:$true] %s15
      %21 = dma.hbm_to_vmem [thread:$0]  %s0, 256, %s16, [#allocation3], 128, 128, 8
    $region5: #{tpu_custom_call.1} parent=1 // pred_fallthru
      _
    // Predicated region
    $region6: #{tpu_custom_call.1} parent=1 // pred_check
      _
    $region7: #{tpu_custom_call.1} parent=1 // pred_check_branch
      %23 = sbr.rel (0) target = $region9
    $region8: #{tpu_custom_call.1} parent=1 // pred_region
      %s25 = ssub.s32 10624, 10624
      %26 = vsyncadd [#allocation5], %s25
      %s27 = sshll.u32 [#allocation4], 4
      %s28 = int_to_ptr.vmem [resolvable:$true] %s27
      %33 = dma.hbm_to_vmem [thread:$0]  %s1, 10624, %s28, [#allocation5], 64, 64, 4
    $region9: #{tpu_custom_call.1} parent=1 // pred_fallthru
      _
    // Predicated region
    $region10: #{tpu_custom_call.1} parent=1 // pred_check
      _
    $region11: #{tpu_custom_call.1} parent=1 // pred_check_branch
      %35 = sbr.rel (0) target = $region13
    $region12: #{tpu_custom_call.1} parent=1 // pred_region
      %s37 = ssub.s32 4352, 4352
      %38 = vsyncadd [#allocation5], %s37
      %s39 = sshll.u32 [#allocation6], 4
      %s40 = int_to_ptr.vmem [resolvable:$true] %s39
      %45 = dma.hbm_to_vmem [thread:$0]  %s2, 4352, %s40, [#allocation5], 128, 128, 8
    $region13: #{tpu_custom_call.1} parent=1 // pred_fallthru
      _
    // Predicated region
    $region14: #{tpu_custom_call.1} parent=1 // pred_check
      _
    $region15: #{tpu_custom_call.1} parent=1 // pred_check_branch
      %47 = sbr.rel (0) target = $region17
    $region16: #{tpu_custom_call.1} parent=1 // pred_region
      %48 = dma.done [#allocation3], 256
    $region17: #{tpu_custom_call.1} parent=1 // pred_fallthru
      _
    // Predicated region
    $region18: #{tpu_custom_call.1} parent=1 // pred_check
      _
    $region19: #{tpu_custom_call.1} parent=1 // pred_check_branch
      %50 = sbr.rel (0) target = $region21
    $region20: #{tpu_custom_call.1} parent=1 // pred_region
      %51 = dma.done [#allocation5], 10624
    $region21: #{tpu_custom_call.1} parent=1 // pred_fallthru
      _
    // Predicated region
    $region22: #{tpu_custom_call.1} parent=1 // pred_check
      _
    $region23: #{tpu_custom_call.1} parent=1 // pred_check_branch
      %53 = sbr.rel (0) target = $region25
    $region24: #{tpu_custom_call.1} parent=1 // pred_region
      %54 = dma.done [#allocation5], 4352
    $region25: #{tpu_custom_call.1} parent=1 // pred_fallthru
      _
    %v56 = vld [vmem:[#allocation2] sm:$0xff]
    %v57 = vld [vmem:[#allocation2 + $0x8] sm:$0xff]
    %v58 = vld [vmem:[#allocation4] sm:$0xf]
    %v59 = vld [vmem:[#allocation4 + $0x4] sm:$0xf]
    %v60 = vld [vmem:[#allocation4 + $0x8] sm:$0xf]
    %v61 = vld [vmem:[#allocation4 + $0xc] sm:$0xf]
    %v62 = vpack.c.bf16 %v57, %v56
    %v63 = vld [vmem:[#allocation6] sm:$0x1]
    %v64 = vlaneseq
    %v65 = vshrl.u32 %v64, 7
    %v66 = vsub.s32 0, %v65
    %v67 = vrot.slane %v63, %v66
    %v72 = vunpack.c.l.b16 %v58
    %v73 = vunpack.c.l.b16 %v59
    %v74 = vunpack.c.l.b16 %v60
    %v75 = vunpack.c.l.b16 %v61
    %v76 = vpack.c.b16 %v73, %v72
    %v77 = vpack.c.b16 %v75, %v74
    %vm80 = vcmask 261120
    %v82 = vsel %vm80, %v62, 0
    %84 = vmatprep.subr.bf16.mxu0 0
    %85 = vmatpush1.bf16.msra.mxu0 %v76
    %86 = vmatprep.subr.bf16.mxu0 0
    %87 = vmatpush1.bf16.msra.mxu0 %v77
    %88 = vmatprep.subr.bf16.mxu0 0
    %89 = vmatpush1.bf16.msra.mxu0 0
    %90 = vmatprep.subr.bf16.mxu0 0
    %91 = vmatpush1.bf16.msra.mxu0 0
    %92 = vmatprep.subr.bf16.mxu0 0
    %93 = vmatpush1.bf16.msra.mxu0 0
    %94 = vmatprep.subr.bf16.mxu0 0
    %95 = vmatpush1.bf16.msra.mxu0 0
    %96 = vmatprep.subr.bf16.mxu0 0
    %97 = vmatpush1.bf16.msra.mxu0 0
    %98 = vmatprep.subr.bf16.mxu0 0
    %99 = vmatpush1.bf16.msra.mxu0 0
    %100 = vmatprep.subr.bf16.mxu0 0
    %101 = vmatpush1.bf16.msra.mxu0 0
    %102 = vmatprep.subr.bf16.mxu0 0
    %103 = vmatpush1.bf16.msra.mxu0 0
    %104 = vmatprep.subr.bf16.mxu0 0
    %105 = vmatpush1.bf16.msra.mxu0 0
    %106 = vmatprep.subr.bf16.mxu0 0
    %107 = vmatpush1.bf16.msra.mxu0 0
    %108 = vmatprep.subr.bf16.mxu0 0
    %109 = vmatpush1.bf16.msra.mxu0 0
    %110 = vmatprep.subr.bf16.mxu0 0
    %111 = vmatpush1.bf16.msra.mxu0 0
    %112 = vmatprep.subr.bf16.mxu0 0
    %113 = vmatpush1.bf16.msra.mxu0 0
    %114 = vmatprep.subr.bf16.mxu0 0
    %115 = vmatpush1.bf16.msra.mxu0 0
    %116 = vmatprep.mubr.bf16.mxu0 0
    %117 = vmatmul.mubr.bf16.gmra.mrb[0].mxu0 %v82
    %v118 = vpop.f32.mrb[0].mxu0
    %v119 = vadd.f32 %v67, %v118
    %v120 = vpop.f32.mrb[0].mxu0
    %v121 = vpop.f32.mrb[0].mxu0
    %v122 = vadd.f32 %v67, %v121
    %v123 = vpop.f32.mrb[0].mxu0
    %124 = vdwg.mxu0
    %v125 = vpack.c.bf16 %v122, %v119
    %127 = vrot.lane.b32.xlu0 %v125, 96
    %v128 = vpop.permute.xlu0 %127
    %vm129 = vcmask 130048
    %v131 = vsel %vm129, %v125, 0
    %v134 = vsel %vm129, %v128, 0
    %136 = vmatprep.subr.bf16.mxu0 0
    %137 = vmatpush1.bf16.xpose.msra.mxu0 %v134
    %138 = vmatprep.subr.bf16.mxu0 0
    %139 = vmatpush1.bf16.xpose.msra.mxu0 0
    %140 = vmatprep.subr.bf16.mxu0 0
    %141 = vmatpush1.bf16.xpose.msra.mxu0 0
    %142 = vmatprep.subr.bf16.mxu0 0
    %143 = vmatpush1.bf16.xpose.msra.mxu0 0
    %144 = vmatprep.subr.bf16.mxu0 0
    %145 = vmatpush1.bf16.xpose.msra.mxu0 0
    %146 = vmatprep.subr.bf16.mxu0 0
    %147 = vmatpush1.bf16.xpose.msra.mxu0 0
    %148 = vmatprep.subr.bf16.mxu0 0
    %149 = vmatpush1.bf16.xpose.msra.mxu0 0
    %150 = vmatprep.subr.bf16.mxu0 0
    %151 = vmatpush1.bf16.xpose.msra.mxu0 0
    %152 = vmatprep.subr.bf16.mxu0 0
    %153 = vmatpush1.bf16.xpose.msra.mxu0 0
    %154 = vmatprep.subr.bf16.mxu0 0
    %155 = vmatpush1.bf16.xpose.msra.mxu0 0
    %156 = vmatprep.subr.bf16.mxu0 0
    %157 = vmatpush1.bf16.xpose.msra.mxu0 0
    %158 = vmatprep.subr.bf16.mxu0 0
    %159 = vmatpush1.bf16.xpose.msra.mxu0 0
    %160 = vmatprep.subr.bf16.mxu0 0
    %161 = vmatpush1.bf16.xpose.msra.mxu0 0
    %162 = vmatprep.subr.bf16.mxu0 0
    %163 = vmatpush1.bf16.xpose.msra.mxu0 0
    %164 = vmatprep.subr.bf16.mxu0 0
    %165 = vmatpush1.bf16.xpose.msra.mxu0 0
    %166 = vmatprep.subr.bf16.mxu0 0
    %167 = vmatpush1.bf16.xpose.msra.mxu0 0
    %168 = vmatprep.mubr.bf16.mxu0 0
    %169 = vmatmul.mubr.bf16.gmra.mrb[0].mxu0 %v131
    %v170 = vpop.f32.mrb[0].mxu0
    %v171 = vadd.f32 0.0, %v170
    %v172 = vpop.f32.mrb[0].mxu0
    %v173 = vpop.f32.mrb[0].mxu0
    %v174 = vadd.f32 0.0, %v173
    %v175 = vpop.f32.mrb[0].mxu0
    %176 = vdwg.mxu0
    %v177 = vmul.f32 %v171, 0.25
    %v178 = vmul.f32 %v174, 0.25
    %181 = vrot.lane.b32.xlu0 %v56, 64
    %v182 = vpop.permute.xlu0 %181
    %183 = vrot.lane.b32.xlu0 %v57, 64
    %v184 = vpop.permute.xlu0 %183
    %v187 = vadd.f32 %v177, %v182
    %v188 = vadd.f32 %v178, %v184
    %v189 = vsel %vm129, %v187, -inf
    %190 = vmax.xlane.f32.xlu0 %v189
    %v191 = vpop.xlane.xlu0 %190
    %v192 = vsel %vm129, %v188, -inf
    %193 = vmax.xlane.f32.xlu0 %v192
    %v194 = vpop.xlane.xlu0 %193
    %v195 = vsub.f32 %v187, %v191
    %v196 = vsub.f32 %v188, %v194
    %v197 = vmul.f32 %v195, 1.442695
    %v198 = vpow.pop %v197
    %v199 = vmul.f32 %v196, 1.442695
    %v200 = vpow.pop %v199
    %v201 = vsel %vm129, %v198, 0.0
    %202 = vadd.xlane.f32.xlu0 %v201
    %v203 = vpop.xlane.xlu0 %202
    %v204 = vsel %vm129, %v200, 0.0
    %205 = vadd.xlane.f32.xlu0 %v204
    %v206 = vpop.xlane.xlu0 %205
    %v207 = vrcp.pop %v203
    %v208 = vrcp.pop %v206
    %v209 = vmul.f32 %v198, %v207
    %v210 = vmul.f32 %v200, %v208
    %v211 = vpack.c.bf16 %v210, %v209
    %212 = vrot.lane.b32.xlu0 %v125, 64
    %v213 = vpop.permute.xlu0 %212
    %v216 = vsel %vm129, %v211, 0
    %218 = vmatprep.subr.bf16.mxu0 0
    %219 = vmatpush1.bf16.msra.mxu0 %v213
    %220 = vmatprep.subr.bf16.mxu0 0
    %221 = vmatpush1.bf16.msra.mxu0 0
    %222 = vmatprep.subr.bf16.mxu0 0
    %223 = vmatpush1.bf16.msra.mxu0 0
    %224 = vmatprep.subr.bf16.mxu0 0
    %225 = vmatpush1.bf16.msra.mxu0 0
    %226 = vmatprep.subr.bf16.mxu0 0
    %227 = vmatpush1.bf16.msra.mxu0 0
    %228 = vmatprep.subr.bf16.mxu0 0
    %229 = vmatpush1.bf16.msra.mxu0 0
    %230 = vmatprep.subr.bf16.mxu0 0
    %231 = vmatpush1.bf16.msra.mxu0 0
    %232 = vmatprep.subr.bf16.mxu0 0
    %233 = vmatpush1.bf16.msra.mxu0 0
    %234 = vmatprep.subr.bf16.mxu0 0
    %235 = vmatpush1.bf16.msra.mxu0 0
    %236 = vmatprep.subr.bf16.mxu0 0
    %237 = vmatpush1.bf16.msra.mxu0 0
    %238 = vmatprep.subr.bf16.mxu0 0
    %239 = vmatpush1.bf16.msra.mxu0 0
    %240 = vmatprep.subr.bf16.mxu0 0
    %241 = vmatpush1.bf16.msra.mxu0 0
    %242 = vmatprep.subr.bf16.mxu0 0
    %243 = vmatpush1.bf16.msra.mxu0 0
    %244 = vmatprep.subr.bf16.mxu0 0
    %245 = vmatpush1.bf16.msra.mxu0 0
    %246 = vmatprep.subr.bf16.mxu0 0
    %247 = vmatpush1.bf16.msra.mxu0 0
    %248 = vmatprep.subr.bf16.mxu0 0
    %249 = vmatpush1.bf16.msra.mxu0 0
    %250 = vmatprep.mubr.bf16.mxu0 0
    %251 = vmatmul.mubr.bf16.gmra.mrb[0].mxu0 %v216
    %v252 = vpop.f32.mrb[0].mxu0
    %v253 = vadd.f32 0.0, %v252
    %v254 = vpop.f32.mrb[0].mxu0
    %v255 = vpop.f32.mrb[0].mxu0
    %v256 = vadd.f32 0.0, %v255
    %v257 = vpop.f32.mrb[0].mxu0
    %258 = vdwg.mxu0
    %259 = vrot.lane.b32.xlu0 %v125, 112
    %v260 = vpop.permute.xlu0 %259
    %261 = vrot.lane.b32.xlu0 %v125, 80
    %v262 = vpop.permute.xlu0 %261
    %v264 = vsel %vm129, %v260, 0
    %v267 = vsel %vm129, %v262, 0
    %269 = vmatprep.subr.bf16.mxu0 0
    %270 = vmatpush1.bf16.xpose.msra.mxu0 %v267
    %271 = vmatprep.subr.bf16.mxu0 0
    %272 = vmatpush1.bf16.xpose.msra.mxu0 0
    %273 = vmatprep.subr.bf16.mxu0 0
    %274 = vmatpush1.bf16.xpose.msra.mxu0 0
    %275 = vmatprep.subr.bf16.mxu0 0
    %276 = vmatpush1.bf16.xpose.msra.mxu0 0
    %277 = vmatprep.subr.bf16.mxu0 0
    %278 = vmatpush1.bf16.xpose.msra.mxu0 0
    %279 = vmatprep.subr.bf16.mxu0 0
    %280 = vmatpush1.bf16.xpose.msra.mxu0 0
    %281 = vmatprep.subr.bf16.mxu0 0
    %282 = vmatpush1.bf16.xpose.msra.mxu0 0
    %283 = vmatprep.subr.bf16.mxu0 0
    %284 = vmatpush1.bf16.xpose.msra.mxu0 0
    %285 = vmatprep.subr.bf16.mxu0 0
    %286 = vmatpush1.bf16.xpose.msra.mxu0 0
    %287 = vmatprep.subr.bf16.mxu0 0
    %288 = vmatpush1.bf16.xpose.msra.mxu0 0
    %289 = vmatprep.subr.bf16.mxu0 0
    %290 = vmatpush1.bf16.xpose.msra.mxu0 0
    %291 = vmatprep.subr.bf16.mxu0 0
    %292 = vmatpush1.bf16.xpose.msra.mxu0 0
    %293 = vmatprep.subr.bf16.mxu0 0
    %294 = vmatpush1.bf16.xpose.msra.mxu0 0
    %295 = vmatprep.subr.bf16.mxu0 0
    %296 = vmatpush1.bf16.xpose.msra.mxu0 0
    %297 = vmatprep.subr.bf16.mxu0 0
    %298 = vmatpush1.bf16.xpose.msra.mxu0 0
    %299 = vmatprep.subr.bf16.mxu0 0
    %300 = vmatpush1.bf16.xpose.msra.mxu0 0
    %301 = vmatprep.mubr.bf16.mxu0 0
    %302 = vmatmul.mubr.bf16.gmra.mrb[0].mxu0 %v264
    %v303 = vpop.f32.mrb[0].mxu0
    %v304 = vadd.f32 0.0, %v303
    %v305 = vpop.f32.mrb[0].mxu0
    %v306 = vpop.f32.mrb[0].mxu0
    %v307 = vadd.f32 0.0, %v306
    %v308 = vpop.f32.mrb[0].mxu0
    %309 = vdwg.mxu0
    %v310 = vmul.f32 %v304, 0.25
    %v311 = vmul.f32 %v307, 0.25
    %v312 = vadd.f32 %v310, %v182
    %v313 = vadd.f32 %v311, %v184
    %v314 = vsel %vm129, %v312, -inf
    %315 = vmax.xlane.f32.xlu0 %v314
    %v316 = vpop.xlane.xlu0 %315
    %v317 = vsel %vm129, %v313, -inf
    %318 = vmax.xlane.f32.xlu0 %v317
    %v319 = vpop.xlane.xlu0 %318
    %v320 = vsub.f32 %v312, %v316
    %v321 = vsub.f32 %v313, %v319
    %v322 = vmul.f32 %v320, 1.442695
    %v323 = vpow.pop %v322
    %v324 = vmul.f32 %v321, 1.442695
    %v325 = vpow.pop %v324
    %v326 = vsel %vm129, %v323, 0.0
    %327 = vadd.xlane.f32.xlu0 %v326
    %v328 = vpop.xlane.xlu0 %327
    %v329 = vsel %vm129, %v325, 0.0
    %330 = vadd.xlane.f32.xlu0 %v329
    %v331 = vpop.xlane.xlu0 %330
    %v332 = vrcp.pop %v328
    %v333 = vrcp.pop %v331
    %v334 = vmul.f32 %v323, %v332
    %v335 = vmul.f32 %v325, %v333
    %v336 = vpack.c.bf16 %v335, %v334
    %337 = vrot.lane.b32.xlu0 %v125, 48
    %v338 = vpop.permute.xlu0 %337
    %v341 = vsel %vm129, %v336, 0
    %343 = vmatprep.subr.bf16.mxu0 0
    %344 = vmatpush1.bf16.msra.mxu0 %v338
    %345 = vmatprep.subr.bf16.mxu0 0
    %346 = vmatpush1.bf16.msra.mxu0 0
    %347 = vmatprep.subr.bf16.mxu0 0
    %348 = vmatpush1.bf16.msra.mxu0 0
    %349 = vmatprep.subr.bf16.mxu0 0
    %350 = vmatpush1.bf16.msra.mxu0 0
    %351 = vmatprep.subr.bf16.mxu0 0
    %352 = vmatpush1.bf16.msra.mxu0 0
    %353 = vmatprep.subr.bf16.mxu0 0
    %354 = vmatpush1.bf16.msra.mxu0 0
    %355 = vmatprep.subr.bf16.mxu0 0
    %356 = vmatpush1.bf16.msra.mxu0 0
    %357 = vmatprep.subr.bf16.mxu0 0
    %358 = vmatpush1.bf16.msra.mxu0 0
    %359 = vmatprep.subr.bf16.mxu0 0
    %360 = vmatpush1.bf16.msra.mxu0 0
    %361 = vmatprep.subr.bf16.mxu0 0
    %362 = vmatpush1.bf16.msra.mxu0 0
    %363 = vmatprep.subr.bf16.mxu0 0
    %364 = vmatpush1.bf16.msra.mxu0 0
    %365 = vmatprep.subr.bf16.mxu0 0
    %366 = vmatpush1.bf16.msra.mxu0 0
    %367 = vmatprep.subr.bf16.mxu0 0
    %368 = vmatpush1.bf16.msra.mxu0 0
    %369 = vmatprep.subr.bf16.mxu0 0
    %370 = vmatpush1.bf16.msra.mxu0 0
    %371 = vmatprep.subr.bf16.mxu0 0
    %372 = vmatpush1.bf16.msra.mxu0 0
    %373 = vmatprep.subr.bf16.mxu0 0
    %374 = vmatpush1.bf16.msra.mxu0 0
    %375 = vmatprep.mubr.bf16.mxu0 0
    %376 = vmatmul.mubr.bf16.gmra.mrb[0].mxu0 %v341
    %v377 = vpop.f32.mrb[0].mxu0
    %v378 = vadd.f32 0.0, %v377
    %v379 = vpop.f32.mrb[0].mxu0
    %v380 = vpop.f32.mrb[0].mxu0
    %v381 = vadd.f32 0.0, %v380
    %v382 = vpop.f32.mrb[0].mxu0
    %383 = vdwg.mxu0
    %386 = vrot.lane.b32.xlu0 %v378, 16
    %v387 = vpop.permute.xlu0 %386
    %388 = vrot.lane.b32.xlu0 %v381, 16
    %v389 = vpop.permute.xlu0 %388
    %v392 = vsel %vm129, %v253, %v387
    %v393 = vsel %vm129, %v256, %v389
    %v394 = vld [vmem:[#allocation4 + $0x10] sm:$0xf]
    %v395 = vld [vmem:[#allocation4 + $0x14] sm:$0xf]
    %v396 = vld [vmem:[#allocation4 + $0x18] sm:$0xf]
    %v397 = vld [vmem:[#allocation4 + $0x1c] sm:$0xf]
    %v398 = vpack.c.bf16 %v393, %v392
    %v399 = vld [vmem:[#allocation6 + $0x8] sm:$0x1]
    %v400 = vlaneseq
    %v401 = vshrl.u32 %v400, 7
    %v402 = vsub.s32 0, %v401
    %v403 = vrot.slane %v399, %v402
    %v408 = vunpack.c.l.b16 %v394
    %v409 = vunpack.c.l.b16 %v395
    %v410 = vunpack.c.l.b16 %v396
    %v411 = vunpack.c.l.b16 %v397
    %v412 = vpack.c.b16 %v409, %v408
    %v413 = vpack.c.b16 %v411, %v410
    %v417 = vsel %vm80, %v398, 0
    %419 = vmatprep.subr.bf16.mxu0 0
    %420 = vmatpush1.bf16.msra.mxu0 %v412
    %421 = vmatprep.subr.bf16.mxu0 0
    %422 = vmatpush1.bf16.msra.mxu0 %v413
    %423 = vmatprep.subr.bf16.mxu0 0
    %424 = vmatpush1.bf16.msra.mxu0 0
    %425 = vmatprep.subr.bf16.mxu0 0
    %426 = vmatpush1.bf16.msra.mxu0 0
    %427 = vmatprep.subr.bf16.mxu0 0
    %428 = vmatpush1.bf16.msra.mxu0 0
    %429 = vmatprep.subr.bf16.mxu0 0
    %430 = vmatpush1.bf16.msra.mxu0 0
    %431 = vmatprep.subr.bf16.mxu0 0
    %432 = vmatpush1.bf16.msra.mxu0 0
    %433 = vmatprep.subr.bf16.mxu0 0
    %434 = vmatpush1.bf16.msra.mxu0 0
    %435 = vmatprep.subr.bf16.mxu0 0
    %436 = vmatpush1.bf16.msra.mxu0 0
    %437 = vmatprep.subr.bf16.mxu0 0
    %438 = vmatpush1.bf16.msra.mxu0 0
    %439 = vmatprep.subr.bf16.mxu0 0
    %440 = vmatpush1.bf16.msra.mxu0 0
    %441 = vmatprep.subr.bf16.mxu0 0
    %442 = vmatpush1.bf16.msra.mxu0 0
    %443 = vmatprep.subr.bf16.mxu0 0
    %444 = vmatpush1.bf16.msra.mxu0 0
    %445 = vmatprep.subr.bf16.mxu0 0
    %446 = vmatpush1.bf16.msra.mxu0 0
    %447 = vmatprep.subr.bf16.mxu0 0
    %448 = vmatpush1.bf16.msra.mxu0 0
    %449 = vmatprep.subr.bf16.mxu0 0
    %450 = vmatpush1.bf16.msra.mxu0 0
    %451 = vmatprep.mubr.bf16.mxu0 0
    %452 = vmatmul.mubr.bf16.gmra.mrb[0].mxu0 %v417
    %v453 = vpop.f32.mrb[0].mxu0
    %v454 = vadd.f32 %v403, %v453
    %v455 = vpop.f32.mrb[0].mxu0
    %v456 = vpop.f32.mrb[0].mxu0
    %v457 = vadd.f32 %v403, %v456
    %v458 = vpop.f32.mrb[0].mxu0
    %459 = vdwg.mxu0
    %v460 = vadd.f32 %v454, %v56
    %v461 = vadd.f32 %v457, %v57
    %v462 = vld [vmem:[#allocation6 + $0x10] sm:$0x1]
    %v463 = vld [vmem:[#allocation6 + $0x18] sm:$0x1]
    %v464 = vsel %vm80, %v460, 0.0
    %465 = vadd.xlane.f32.xlu0 %v464
    %v466 = vpop.xlane.xlu0 %465
    %v467 = vsel %vm80, %v461, 0.0
    %468 = vadd.xlane.f32.xlu0 %v467
    %v469 = vpop.xlane.xlu0 %468
    %v470 = vrcp.pop 32.0
    %v471 = vmul.f32 %v466, %v470
    %v472 = vmul.f32 %v469, %v470
    %v473 = vsub.f32 %v460, %v471
    %v474 = vsub.f32 %v461, %v472
    %v475 = vmul.f32 %v473, %v473
    %v476 = vmul.f32 %v474, %v474
    %v477 = vsel %vm80, %v475, 0.0
    %478 = vadd.xlane.f32.xlu0 %v477
    %v479 = vpop.xlane.xlu0 %478
    %v480 = vsel %vm80, %v476, 0.0
    %481 = vadd.xlane.f32.xlu0 %v480
    %v482 = vpop.xlane.xlu0 %481
    %v483 = vmul.f32 %v479, %v470
    %v484 = vmul.f32 %v482, %v470
    %v485 = vadd.f32 %v483, 1e-05
    %v486 = vadd.f32 %v484, 1e-05
    %v487 = vrsqrt.pop %v485
    %v488 = vrsqrt.pop %v486
    %v489 = vmul.f32 %v473, %v487
    %v490 = vmul.f32 %v474, %v488
    %v491 = vlaneseq
    %v492 = vshrl.u32 %v491, 7
    %v493 = vsub.s32 0, %v492
    %v494 = vrot.slane %v462, %v493
    %v495 = vmul.f32 %v489, %v494
    %v496 = vmul.f32 %v490, %v494
    %v497 = vlaneseq
    %v498 = vshrl.u32 %v497, 7
    %v499 = vsub.s32 0, %v498
    %v500 = vrot.slane %v463, %v499
    %v501 = vadd.f32 %v495, %v500
    %v502 = vadd.f32 %v496, %v500
    %503 = vset.pattern.permute.xlu0 80
    %504 = vperm.xlu0 %503, %v56
    %v505 = vpop.permute.xlu0 %504
    %507 = vset.pattern.permute.xlu0 80
    %508 = vperm.xlu0 %507, %v57
    %v509 = vpop.permute.xlu0 %508
    %v511 = vmul.f32 %v501, %v505
    %v512 = vmul.f32 %v502, %v509
    %v513 = vrot.slane %v511, 4
    %v514 = vrot.slane %v512, 4
    %v515 = vlaneseq
    %v516 = vshrl.u32 %v515, 7
    %vm517 = vcmp.lt.s32.totalorder %v516, 4
    %v518 = vsel %vm517, %v513, %v514
    %v519 = vsel %vm517, %v514, %v513
    %520 = vset.pattern.permute.xlu0 81
    %521 = vperm.xlu0 %520, %v56
    %v522 = vpop.permute.xlu0 %521
    %524 = vset.pattern.permute.xlu0 81
    %525 = vperm.xlu0 %524, %v57
    %v526 = vpop.permute.xlu0 %525
    %v528 = vmul.f32 %v519, %v522
    %v529 = vmul.f32 %v518, %v526
    %v530 = vrot.slane %v511, 5
    %v531 = vrot.slane %v512, 5
    %vm532 = vcmp.lt.s32.totalorder %v516, 3
    %v533 = vsel %vm532, %v530, %v531
    %v534 = vsel %vm532, %v531, %v530
    %535 = vset.pattern.permute.xlu0 82
    %536 = vperm.xlu0 %535, %v56
    %v537 = vpop.permute.xlu0 %536
    %539 = vset.pattern.permute.xlu0 82
    %540 = vperm.xlu0 %539, %v57
    %v541 = vpop.permute.xlu0 %540
    %v543 = vmul.f32 %v534, %v537
    %v544 = vmul.f32 %v533, %v541
    %v545 = vrot.slane %v511, 6
    %v546 = vrot.slane %v512, 6
    %vm547 = vcmp.lt.s32.totalorder %v516, 2
    %v548 = vsel %vm547, %v545, %v546
    %v549 = vsel %vm547, %v546, %v545
    %550 = vset.pattern.permute.xlu0 83
    %551 = vperm.xlu0 %550, %v56
    %v552 = vpop.permute.xlu0 %551
    %554 = vset.pattern.permute.xlu0 83
    %555 = vperm.xlu0 %554, %v57
    %v556 = vpop.permute.xlu0 %555
    %v558 = vmul.f32 %v549, %v552
    %v559 = vmul.f32 %v548, %v556
    %v560 = vrot.slane %v511, 7
    %v561 = vrot.slane %v512, 7
    %vm562 = vcmp.lt.s32.totalorder %v516, 1
    %v563 = vsel %vm562, %v560, %v561
    %v564 = vsel %vm562, %v561, %v560
    %565 = vset.pattern.permute.xlu0 84
    %566 = vperm.xlu0 %565, %v56
    %v567 = vpop.permute.xlu0 %566
    %569 = vset.pattern.permute.xlu0 84
    %570 = vperm.xlu0 %569, %v57
    %v571 = vpop.permute.xlu0 %570
    %v573 = vmul.f32 %v564, %v567
    %v574 = vmul.f32 %v563, %v571
    %575 = vset.pattern.permute.xlu0 85
    %576 = vperm.xlu0 %575, %v56
    %v577 = vpop.permute.xlu0 %576
    %579 = vset.pattern.permute.xlu0 85
    %580 = vperm.xlu0 %579, %v57
    %v581 = vpop.permute.xlu0 %580
    %v583 = vmul.f32 %v511, %v577
    %v584 = vmul.f32 %v512, %v581
    %v585 = vrot.slane %v511, 1
    %v586 = vrot.slane %v512, 1
    %vm587 = vcmp.lt.s32.totalorder %v516, 7
    %v588 = vsel %vm587, %v585, %v586
    %v589 = vsel %vm587, %v586, %v585
    %590 = vset.pattern.permute.xlu0 86
    %591 = vperm.xlu0 %590, %v56
    %v592 = vpop.permute.xlu0 %591
    %594 = vset.pattern.permute.xlu0 86
    %595 = vperm.xlu0 %594, %v57
    %v596 = vpop.permute.xlu0 %595
    %v598 = vmul.f32 %v588, %v592
    %v599 = vmul.f32 %v589, %v596
    %v600 = vrot.slane %v511, 2
    %v601 = vrot.slane %v512, 2
    %vm602 = vcmp.lt.s32.totalorder %v516, 6
    %v603 = vsel %vm602, %v600, %v601
    %v604 = vsel %vm602, %v601, %v600
    %605 = vset.pattern.permute.xlu0 87
    %606 = vperm.xlu0 %605, %v56
    %v607 = vpop.permute.xlu0 %606
    %609 = vset.pattern.permute.xlu0 87
    %610 = vperm.xlu0 %609, %v57
    %v611 = vpop.permute.xlu0 %610
    %v613 = vmul.f32 %v603, %v607
    %v614 = vmul.f32 %v604, %v611
    %v615 = vrot.slane %v511, 3
    %v616 = vrot.slane %v512, 3
    %vm617 = vcmp.lt.s32.totalorder %v516, 5
    %v618 = vsel %vm617, %v615, %v616
    %v619 = vsel %vm617, %v616, %v615
    %620 = vset.pattern.permute.xlu0 88
    %621 = vperm.xlu0 %620, %v56
    %v622 = vpop.permute.xlu0 %621
    %624 = vset.pattern.permute.xlu0 88
    %625 = vperm.xlu0 %624, %v57
    %v626 = vpop.permute.xlu0 %625
    %v628 = vmul.f32 %v618, %v622
    %v629 = vmul.f32 %v619, %v626
    %630 = vset.pattern.permute.xlu0 89
    %631 = vperm.xlu0 %630, %v56
    %v632 = vpop.permute.xlu0 %631
    %634 = vset.pattern.permute.xlu0 89
    %635 = vperm.xlu0 %634, %v57
    %v636 = vpop.permute.xlu0 %635
    %v638 = vmul.f32 %v518, %v632
    %v639 = vmul.f32 %v519, %v636
    %642 = vrot.lane.b32.xlu0 %v543, 32
    %v643 = vpop.permute.xlu0 %642
    %644 = vrot.lane.b32.xlu0 %v544, 32
    %v645 = vpop.permute.xlu0 %644
    %650 = vrot.lane.b32.xlu0 %v558, 64
    %v651 = vpop.permute.xlu0 %650
    %652 = vrot.lane.b32.xlu0 %v559, 64
    %v653 = vpop.permute.xlu0 %652
    %658 = vrot.lane.b32.xlu0 %v573, 96
    %v659 = vpop.permute.xlu0 %658
    %660 = vrot.lane.b32.xlu0 %v574, 96
    %v661 = vpop.permute.xlu0 %660
    %666 = vrot.lane.b32.xlu0 %v598, 32
    %v667 = vpop.permute.xlu0 %666
    %668 = vrot.lane.b32.xlu0 %v599, 32
    %v669 = vpop.permute.xlu0 %668
    %674 = vrot.lane.b32.xlu0 %v613, 64
    %v675 = vpop.permute.xlu0 %674
    %676 = vrot.lane.b32.xlu0 %v614, 64
    %v677 = vpop.permute.xlu0 %676
    %682 = vrot.lane.b32.xlu0 %v628, 96
    %v683 = vpop.permute.xlu0 %682
    %684 = vrot.lane.b32.xlu0 %v629, 96
    %v685 = vpop.permute.xlu0 %684
    %v688 = vsel %vm80, %v528, %v643
    %v689 = vsel %vm80, %v529, %v645
    %vm690 = vcmask 523264
    %v691 = vsel %vm690, %v688, %v651
    %v692 = vsel %vm690, %v689, %v653
    %vm693 = vcmask 785408
    %v694 = vsel %vm693, %v691, %v659
    %v695 = vsel %vm693, %v692, %v661
    %v696 = vsel %vm80, %v583, %v667
    %v697 = vsel %vm80, %v584, %v669
    %v698 = vsel %vm690, %v696, %v675
    %v699 = vsel %vm690, %v697, %v677
    %v700 = vsel %vm693, %v698, %v683
    %v701 = vsel %vm693, %v699, %v685
    %v702 = vld [vmem:[#allocation4 + $0x20] sm:$0xf]
    %v703 = vld [vmem:[#allocation4 + $0x24] sm:$0xf]
    %v704 = vld [vmem:[#allocation4 + $0x28] sm:$0xf]
    %v705 = vld [vmem:[#allocation4 + $0x2c] sm:$0xf]
    %v706 = vld [vmem:[#allocation4 + $0x30] sm:$0xf]
    %v707 = vld [vmem:[#allocation4 + $0x34] sm:$0xf]
    %v708 = vld [vmem:[#allocation4 + $0x38] sm:$0xf]
    %v709 = vld [vmem:[#allocation4 + $0x3c] sm:$0xf]
    %v710 = vld [vmem:[#allocation4 + $0x40] sm:$0xf]
    %v711 = vld [vmem:[#allocation4 + $0x44] sm:$0xf]
    %v712 = vld [vmem:[#allocation4 + $0x48] sm:$0xf]
    %v713 = vld [vmem:[#allocation4 + $0x4c] sm:$0xf]
    %v714 = vld [vmem:[#allocation4 + $0x50] sm:$0xf]
    %v715 = vld [vmem:[#allocation4 + $0x54] sm:$0xf]
    %v716 = vld [vmem:[#allocation4 + $0x58] sm:$0xf]
    %v717 = vld [vmem:[#allocation4 + $0x5c] sm:$0xf]
    %v718 = vld [vmem:[#allocation4 + $0x60] sm:$0xf]
    %v719 = vld [vmem:[#allocation4 + $0x64] sm:$0xf]
    %v720 = vld [vmem:[#allocation4 + $0x68] sm:$0xf]
    %v721 = vld [vmem:[#allocation4 + $0x6c] sm:$0xf]
    %v722 = vld [vmem:[#allocation4 + $0x70] sm:$0xf]
    %v723 = vld [vmem:[#allocation4 + $0x74] sm:$0xf]
    %v724 = vld [vmem:[#allocation4 + $0x78] sm:$0xf]
    %v725 = vld [vmem:[#allocation4 + $0x7c] sm:$0xf]
    %v726 = vld [vmem:[#allocation4 + $0x80] sm:$0xf]
    %v727 = vld [vmem:[#allocation4 + $0x84] sm:$0xf]
    %v728 = vld [vmem:[#allocation4 + $0x88] sm:$0xf]
    %v729 = vld [vmem:[#allocation4 + $0x8c] sm:$0xf]
    %v730 = vld [vmem:[#allocation4 + $0x90] sm:$0xf]
    %v731 = vld [vmem:[#allocation4 + $0x94] sm:$0xf]
    %v732 = vld [vmem:[#allocation4 + $0x98] sm:$0xf]
    %v733 = vld [vmem:[#allocation4 + $0x9c] sm:$0xf]
    %v734 = vld [vmem:[#allocation4 + $0xa0] sm:$0xf]
    %v735 = vld [vmem:[#allocation4 + $0xa4] sm:$0xf]
    %v736 = vld [vmem:[#allocation4 + $0xa8] sm:$0xf]
    %v737 = vld [vmem:[#allocation4 + $0xac] sm:$0xf]
    %v738 = vpack.c.bf16 %v695, %v694
    %v739 = vpack.c.bf16 %v701, %v700
    %v740 = vpack.c.bf16 %v639, %v638
    %v741 = vld [vmem:[#allocation6 + $0x20] sm:$0x1]
    %v742 = vlaneseq
    %v743 = vshrl.u32 %v742, 7
    %v744 = vsub.s32 0, %v743
    %v745 = vrot.slane %v741, %v744
    %v782 = vunpack.c.l.b16 %v702
    %v783 = vunpack.c.l.b16 %v703
    %v784 = vunpack.c.l.b16 %v704
    %v785 = vunpack.c.l.b16 %v705
    %v786 = vunpack.c.l.b16 %v706
    %v787 = vunpack.c.l.b16 %v707
    %v788 = vunpack.c.l.b16 %v708
    %v789 = vunpack.c.l.b16 %v709
    %v790 = vunpack.c.l.b16 %v710
    %v791 = vunpack.c.l.b16 %v711
    %v792 = vunpack.c.l.b16 %v712
    %v793 = vunpack.c.l.b16 %v713
    %v794 = vunpack.c.l.b16 %v714
    %v795 = vunpack.c.l.b16 %v715
    %v796 = vunpack.c.l.b16 %v716
    %v797 = vunpack.c.l.b16 %v717
    %v798 = vunpack.c.l.b16 %v718
    %v799 = vunpack.c.l.b16 %v719
    %v800 = vunpack.c.l.b16 %v720
    %v801 = vunpack.c.l.b16 %v721
    %v802 = vunpack.c.l.b16 %v722
    %v803 = vunpack.c.l.b16 %v723
    %v804 = vunpack.c.l.b16 %v724
    %v805 = vunpack.c.l.b16 %v725
    %v806 = vunpack.c.l.b16 %v726
    %v807 = vunpack.c.l.b16 %v727
    %v808 = vunpack.c.l.b16 %v728
    %v809 = vunpack.c.l.b16 %v729
    %v810 = vunpack.c.l.b16 %v730
    %v811 = vunpack.c.l.b16 %v731
    %v812 = vunpack.c.l.b16 %v732
    %v813 = vunpack.c.l.b16 %v733
    %v814 = vunpack.c.l.b16 %v734
    %v815 = vunpack.c.l.b16 %v735
    %v816 = vunpack.c.l.b16 %v736
    %v817 = vunpack.c.l.b16 %v737
    %v818 = vpack.c.b16 %v783, %v782
    %v819 = vpack.c.b16 %v785, %v784
    %v820 = vpack.c.b16 %v787, %v786
    %v821 = vpack.c.b16 %v789, %v788
    %v822 = vpack.c.b16 %v791, %v790
    %v823 = vpack.c.b16 %v793, %v792
    %v824 = vpack.c.b16 %v795, %v794
    %v825 = vpack.c.b16 %v797, %v796
    %v826 = vpack.c.b16 %v799, %v798
    %v827 = vpack.c.b16 %v801, %v800
    %v828 = vpack.c.b16 %v803, %v802
    %v829 = vpack.c.b16 %v805, %v804
    %v830 = vpack.c.b16 %v807, %v806
    %v831 = vpack.c.b16 %v809, %v808
    %v832 = vpack.c.b16 %v811, %v810
    %v833 = vpack.c.b16 %v813, %v812
    %v834 = vpack.c.b16 %v815, %v814
    %v835 = vpack.c.b16 %v817, %v816
    %v855 = vsel %vm80, %v740, 0
    %857 = vmatprep.subr.bf16.mxu0 0
    %858 = vmatpush1.bf16.msra.mxu0 %v818
    %859 = vmatprep.subr.bf16.mxu0 0
    %860 = vmatpush1.bf16.msra.mxu0 %v819
    %861 = vmatprep.subr.bf16.mxu0 0
    %862 = vmatpush1.bf16.msra.mxu0 %v820
    %863 = vmatprep.subr.bf16.mxu0 0
    %864 = vmatpush1.bf16.msra.mxu0 %v821
    %865 = vmatprep.subr.bf16.mxu0 0
    %866 = vmatpush1.bf16.msra.mxu0 %v822
    %867 = vmatprep.subr.bf16.mxu0 0
    %868 = vmatpush1.bf16.msra.mxu0 %v823
    %869 = vmatprep.subr.bf16.mxu0 0
    %870 = vmatpush1.bf16.msra.mxu0 %v824
    %871 = vmatprep.subr.bf16.mxu0 0
    %872 = vmatpush1.bf16.msra.mxu0 %v825
    %873 = vmatprep.subr.bf16.mxu0 0
    %874 = vmatpush1.bf16.msra.mxu0 %v826
    %875 = vmatprep.subr.bf16.mxu0 0
    %876 = vmatpush1.bf16.msra.mxu0 %v827
    %877 = vmatprep.subr.bf16.mxu0 0
    %878 = vmatpush1.bf16.msra.mxu0 %v828
    %879 = vmatprep.subr.bf16.mxu0 0
    %880 = vmatpush1.bf16.msra.mxu0 %v829
    %881 = vmatprep.subr.bf16.mxu0 0
    %882 = vmatpush1.bf16.msra.mxu0 %v830
    %883 = vmatprep.subr.bf16.mxu0 0
    %884 = vmatpush1.bf16.msra.mxu0 %v831
    %885 = vmatprep.subr.bf16.mxu0 0
    %886 = vmatpush1.bf16.msra.mxu0 %v832
    %887 = vmatprep.subr.bf16.mxu0 0
    %888 = vmatpush1.bf16.msra.mxu0 %v833
    %889 = vmatprep.mubr.bf16.mxu0 %v739
    %890 = vmatmul.mubr.bf16.gmra.mrb[0].mxu0 %v738
    %v891 = vpop.f32.mrb[0].mxu0
    %v892 = vadd.f32 %v745, %v891
    %v893 = vpop.f32.mrb[0].mxu0
    %v894 = vpop.f32.mrb[0].mxu0
    %v895 = vadd.f32 %v745, %v894
    %v896 = vpop.f32.mrb[0].mxu0
    %897 = vdwg.mxu0
    %898 = vmatprep.subr.bf16.mxu0 0
    %899 = vmatpush1.bf16.msra.mxu0 %v834
    %900 = vmatprep.subr.bf16.mxu0 0
    %901 = vmatpush1.bf16.msra.mxu0 %v835
    %902 = vmatprep.subr.bf16.mxu0 0
    %903 = vmatpush1.bf16.msra.mxu0 0
    %904 = vmatprep.subr.bf16.mxu0 0
    %905 = vmatpush1.bf16.msra.mxu0 0
    %906 = vmatprep.subr.bf16.mxu0 0
    %907 = vmatpush1.bf16.msra.mxu0 0
    %908 = vmatprep.subr.bf16.mxu0 0
    %909 = vmatpush1.bf16.msra.mxu0 0
    %910 = vmatprep.subr.bf16.mxu0 0
    %911 = vmatpush1.bf16.msra.mxu0 0
    %912 = vmatprep.subr.bf16.mxu0 0
    %913 = vmatpush1.bf16.msra.mxu0 0
    %914 = vmatprep.subr.bf16.mxu0 0
    %915 = vmatpush1.bf16.msra.mxu0 0
    %916 = vmatprep.subr.bf16.mxu0 0
    %917 = vmatpush1.bf16.msra.mxu0 0
    %918 = vmatprep.subr.bf16.mxu0 0
    %919 = vmatpush1.bf16.msra.mxu0 0
    %920 = vmatprep.subr.bf16.mxu0 0
    %921 = vmatpush1.bf16.msra.mxu0 0
    %922 = vmatprep.subr.bf16.mxu0 0
    %923 = vmatpush1.bf16.msra.mxu0 0
    %924 = vmatprep.subr.bf16.mxu0 0
    %925 = vmatpush1.bf16.msra.mxu0 0
    %926 = vmatprep.subr.bf16.mxu0 0
    %927 = vmatpush1.bf16.msra.mxu0 0
    %928 = vmatprep.subr.bf16.mxu0 0
    %929 = vmatpush1.bf16.msra.mxu0 0
    %930 = vmatprep.mubr.bf16.mxu0 0
    %931 = vmatmul.mubr.bf16.gmra.mrb[0].mxu0 %v855
    %v932 = vpop.f32.mrb[0].mxu0
    %v933 = vadd.f32 %v892, %v932
    %v934 = vpop.f32.mrb[0].mxu0
    %v935 = vpop.f32.mrb[0].mxu0
    %v936 = vadd.f32 %v895, %v935
    %v937 = vpop.f32.mrb[0].mxu0
    %938 = vdwg.mxu0
    %v939 = vmax.f32 %v933, 0.0
    %v940 = vmax.f32 %v936, 0.0
    %v941 = vld [vmem:[#allocation4 + $0xb0] sm:$0xf]
    %v942 = vld [vmem:[#allocation4 + $0xb4] sm:$0xf]
    %v943 = vld [vmem:[#allocation4 + $0xb8] sm:$0xf]
    %v944 = vld [vmem:[#allocation4 + $0xbc] sm:$0xf]
    %v945 = vld [vmem:[#allocation4 + $0xc0] sm:$0xf]
    %v946 = vld [vmem:[#allocation4 + $0xc4] sm:$0xf]
    %v947 = vld [vmem:[#allocation4 + $0xc8] sm:$0xf]
    %v948 = vld [vmem:[#allocation4 + $0xcc] sm:$0xf]
    %v949 = vpack.c.bf16 %v940, %v939
    %v950 = vld [vmem:[#allocation6 + $0x28] sm:$0x1]
    %v951 = vlaneseq
    %v952 = vshrl.u32 %v951, 7
    %v953 = vsub.s32 0, %v952
    %v954 = vrot.slane %v950, %v953
    %v963 = vunpack.c.l.b16 %v941
    %v964 = vunpack.c.l.b16 %v942
    %v965 = vunpack.c.l.b16 %v943
    %v966 = vunpack.c.l.b16 %v944
    %v967 = vunpack.c.l.b16 %v945
    %v968 = vunpack.c.l.b16 %v946
    %v969 = vunpack.c.l.b16 %v947
    %v970 = vunpack.c.l.b16 %v948
    %v971 = vpack.c.b16 %v964, %v963
    %v972 = vpack.c.b16 %v966, %v965
    %v973 = vpack.c.b16 %v968, %v967
    %v974 = vpack.c.b16 %v970, %v969
    %v980 = vsel %vm690, %v949, 0
    %982 = vmatprep.subr.bf16.mxu0 0
    %983 = vmatpush1.bf16.msra.mxu0 %v971
    %984 = vmatprep.subr.bf16.mxu0 0
    %985 = vmatpush1.bf16.msra.mxu0 %v972
    %986 = vmatprep.subr.bf16.mxu0 0
    %987 = vmatpush1.bf16.msra.mxu0 %v973
    %988 = vmatprep.subr.bf16.mxu0 0
    %989 = vmatpush1.bf16.msra.mxu0 %v974
    %990 = vmatprep.subr.bf16.mxu0 0
    %991 = vmatpush1.bf16.msra.mxu0 0
    %992 = vmatprep.subr.bf16.mxu0 0
    %993 = vmatpush1.bf16.msra.mxu0 0
    %994 = vmatprep.subr.bf16.mxu0 0
    %995 = vmatpush1.bf16.msra.mxu0 0
    %996 = vmatprep.subr.bf16.mxu0 0
    %997 = vmatpush1.bf16.msra.mxu0 0
    %998 = vmatprep.subr.bf16.mxu0 0
    %999 = vmatpush1.bf16.msra.mxu0 0
    %1000 = vmatprep.subr.bf16.mxu0 0
    %1001 = vmatpush1.bf16.msra.mxu0 0
    %1002 = vmatprep.subr.bf16.mxu0 0
    %1003 = vmatpush1.bf16.msra.mxu0 0
    %1004 = vmatprep.subr.bf16.mxu0 0
    %1005 = vmatpush1.bf16.msra.mxu0 0
    %1006 = vmatprep.subr.bf16.mxu0 0
    %1007 = vmatpush1.bf16.msra.mxu0 0
    %1008 = vmatprep.subr.bf16.mxu0 0
    %1009 = vmatpush1.bf16.msra.mxu0 0
    %1010 = vmatprep.subr.bf16.mxu0 0
    %1011 = vmatpush1.bf16.msra.mxu0 0
    %1012 = vmatprep.subr.bf16.mxu0 0
    %1013 = vmatpush1.bf16.msra.mxu0 0
    %1014 = vmatprep.mubr.bf16.mxu0 0
    %1015 = vmatmul.mubr.bf16.gmra.mrb[0].mxu0 %v980
    %v1016 = vpop.f32.mrb[0].mxu0
    %v1017 = vadd.f32 %v954, %v1016
    %v1018 = vpop.f32.mrb[0].mxu0
    %v1019 = vpop.f32.mrb[0].mxu0
    %v1020 = vadd.f32 %v954, %v1019
    %v1021 = vpop.f32.mrb[0].mxu0
    %1022 = vdwg.mxu0
    %v1023 = vadd.f32 %v1017, %v511
    %v1024 = vadd.f32 %v1020, %v512
    %v1025 = vld [vmem:[#allocation6 + $0x30] sm:$0x1]
    %v1026 = vld [vmem:[#allocation6 + $0x38] sm:$0x1]
    %v1027 = vsel %vm80, %v1023, 0.0
    %1028 = vadd.xlane.f32.xlu0 %v1027
    %v1029 = vpop.xlane.xlu0 %1028
    %v1030 = vsel %vm80, %v1024, 0.0
    %1031 = vadd.xlane.f32.xlu0 %v1030
    %v1032 = vpop.xlane.xlu0 %1031
    %v1033 = vmul.f32 %v1029, %v470
    %v1034 = vmul.f32 %v1032, %v470
    %v1035 = vsub.f32 %v1023, %v1033
    %v1036 = vsub.f32 %v1024, %v1034
    %v1037 = vmul.f32 %v1035, %v1035
    %v1038 = vmul.f32 %v1036, %v1036
    %v1039 = vsel %vm80, %v1037, 0.0
    %1040 = vadd.xlane.f32.xlu0 %v1039
    %v1041 = vpop.xlane.xlu0 %1040
    %v1042 = vsel %vm80, %v1038, 0.0
    %1043 = vadd.xlane.f32.xlu0 %v1042
    %v1044 = vpop.xlane.xlu0 %1043
    %v1045 = vmul.f32 %v1041, %v470
    %v1046 = vmul.f32 %v1044, %v470
    %v1047 = vadd.f32 %v1045, 1e-05
    %v1048 = vadd.f32 %v1046, 1e-05
    %v1049 = vrsqrt.pop %v1047
    %v1050 = vrsqrt.pop %v1048
    %v1051 = vmul.f32 %v1035, %v1049
    %v1052 = vmul.f32 %v1036, %v1050
    %v1053 = vlaneseq
    %v1054 = vshrl.u32 %v1053, 7
    %v1055 = vsub.s32 0, %v1054
    %v1056 = vrot.slane %v1025, %v1055
    %v1057 = vmul.f32 %v1051, %v1056
    %v1058 = vmul.f32 %v1052, %v1056
    %v1059 = vlaneseq
    %v1060 = vshrl.u32 %v1059, 7
    %v1061 = vsub.s32 0, %v1060
    %v1062 = vrot.slane %v1026, %v1061
    %v1063 = vadd.f32 %v1057, %v1062
    %v1064 = vadd.f32 %v1058, %v1062
    %v1065 = vmul.f32 %v1063, %v505
    %v1066 = vmul.f32 %v1064, %v509
    %v1067 = vld [vmem:[#allocation4 + $0xd0] sm:$0xf]
    %v1068 = vld [vmem:[#allocation4 + $0xd4] sm:$0xf]
    %v1069 = vld [vmem:[#allocation4 + $0xd8] sm:$0xf]
    %v1070 = vld [vmem:[#allocation4 + $0xdc] sm:$0xf]
    %v1071 = vpack.c.bf16 %v1066, %v1065
    %v1072 = vld [vmem:[#allocation6 + $0x40] sm:$0x1]
    %v1073 = vlaneseq
    %v1074 = vshrl.u32 %v1073, 7
    %v1075 = vsub.s32 0, %v1074
    %v1076 = vrot.slane %v1072, %v1075
    %v1081 = vunpack.c.l.b16 %v1067
    %v1082 = vunpack.c.l.b16 %v1068
    %v1083 = vunpack.c.l.b16 %v1069
    %v1084 = vunpack.c.l.b16 %v1070
    %v1085 = vpack.c.b16 %v1082, %v1081
    %v1086 = vpack.c.b16 %v1084, %v1083
    %v1090 = vsel %vm80, %v1071, 0
    %1092 = vmatprep.subr.bf16.mxu0 0
    %1093 = vmatpush1.bf16.msra.mxu0 %v1085
    %1094 = vmatprep.subr.bf16.mxu0 0
    %1095 = vmatpush1.bf16.msra.mxu0 %v1086
    %1096 = vmatprep.subr.bf16.mxu0 0
    %1097 = vmatpush1.bf16.msra.mxu0 0
    %1098 = vmatprep.subr.bf16.mxu0 0
    %1099 = vmatpush1.bf16.msra.mxu0 0
    %1100 = vmatprep.subr.bf16.mxu0 0
    %1101 = vmatpush1.bf16.msra.mxu0 0
    %1102 = vmatprep.subr.bf16.mxu0 0
    %1103 = vmatpush1.bf16.msra.mxu0 0
    %1104 = vmatprep.subr.bf16.mxu0 0
    %1105 = vmatpush1.bf16.msra.mxu0 0
    %1106 = vmatprep.subr.bf16.mxu0 0
    %1107 = vmatpush1.bf16.msra.mxu0 0
    %1108 = vmatprep.subr.bf16.mxu0 0
    %1109 = vmatpush1.bf16.msra.mxu0 0
    %1110 = vmatprep.subr.bf16.mxu0 0
    %1111 = vmatpush1.bf16.msra.mxu0 0
    %1112 = vmatprep.subr.bf16.mxu0 0
    %1113 = vmatpush1.bf16.msra.mxu0 0
    %1114 = vmatprep.subr.bf16.mxu0 0
    %1115 = vmatpush1.bf16.msra.mxu0 0
    %1116 = vmatprep.subr.bf16.mxu0 0
    %1117 = vmatpush1.bf16.msra.mxu0 0
    %1118 = vmatprep.subr.bf16.mxu0 0
    %1119 = vmatpush1.bf16.msra.mxu0 0
    %1120 = vmatprep.subr.bf16.mxu0 0
    %1121 = vmatpush1.bf16.msra.mxu0 0
    %1122 = vmatprep.subr.bf16.mxu0 0
    %1123 = vmatpush1.bf16.msra.mxu0 0
    %1124 = vmatprep.mubr.bf16.mxu0 0
    %1125 = vmatmul.mubr.bf16.gmra.mrb[0].mxu0 %v1090
    %v1126 = vpop.f32.mrb[0].mxu0
    %v1127 = vadd.f32 %v1076, %v1126
    %v1128 = vpop.f32.mrb[0].mxu0
    %v1129 = vpop.f32.mrb[0].mxu0
    %v1130 = vadd.f32 %v1076, %v1129
    %v1131 = vpop.f32.mrb[0].mxu0
    %1132 = vdwg.mxu0
    %v1133 = vpack.c.bf16 %v1130, %v1127
    %1135 = vrot.lane.b32.xlu0 %v1133, 96
    %v1136 = vpop.permute.xlu0 %1135
    %v1138 = vsel %vm129, %v1133, 0
    %v1141 = vsel %vm129, %v1136, 0
    %1143 = vmatprep.subr.bf16.mxu0 0
    %1144 = vmatpush1.bf16.xpose.msra.mxu0 %v1141
    %1145 = vmatprep.subr.bf16.mxu0 0
    %1146 = vmatpush1.bf16.xpose.msra.mxu0 0
    %1147 = vmatprep.subr.bf16.mxu0 0
    %1148 = vmatpush1.bf16.xpose.msra.mxu0 0
    %1149 = vmatprep.subr.bf16.mxu0 0
    %1150 = vmatpush1.bf16.xpose.msra.mxu0 0
    %1151 = vmatprep.subr.bf16.mxu0 0
    %1152 = vmatpush1.bf16.xpose.msra.mxu0 0
    %1153 = vmatprep.subr.bf16.mxu0 0
    %1154 = vmatpush1.bf16.xpose.msra.mxu0 0
    %1155 = vmatprep.subr.bf16.mxu0 0
    %1156 = vmatpush1.bf16.xpose.msra.mxu0 0
    %1157 = vmatprep.subr.bf16.mxu0 0
    %1158 = vmatpush1.bf16.xpose.msra.mxu0 0
    %1159 = vmatprep.subr.bf16.mxu0 0
    %1160 = vmatpush1.bf16.xpose.msra.mxu0 0
    %1161 = vmatprep.subr.bf16.mxu0 0
    %1162 = vmatpush1.bf16.xpose.msra.mxu0 0
    %1163 = vmatprep.subr.bf16.mxu0 0
    %1164 = vmatpush1.bf16.xpose.msra.mxu0 0
    %1165 = vmatprep.subr.bf16.mxu0 0
    %1166 = vmatpush1.bf16.xpose.msra.mxu0 0
    %1167 = vmatprep.subr.bf16.mxu0 0
    %1168 = vmatpush1.bf16.xpose.msra.mxu0 0
    %1169 = vmatprep.subr.bf16.mxu0 0
    %1170 = vmatpush1.bf16.xpose.msra.mxu0 0
    %1171 = vmatprep.subr.bf16.mxu0 0
    %1172 = vmatpush1.bf16.xpose.msra.mxu0 0
    %1173 = vmatprep.subr.bf16.mxu0 0
    %1174 = vmatpush1.bf16.xpose.msra.mxu0 0
    %1175 = vmatprep.mubr.bf16.mxu0 0
    %1176 = vmatmul.mubr.bf16.gmra.mrb[0].mxu0 %v1138
    %v1177 = vpop.f32.mrb[0].mxu0
    %v1178 = vadd.f32 0.0, %v1177
    %v1179 = vpop.f32.mrb[0].mxu0
    %v1180 = vpop.f32.mrb[0].mxu0
    %v1181 = vadd.f32 0.0, %v1180
    %v1182 = vpop.f32.mrb[0].mxu0
    %1183 = vdwg.mxu0
    %v1184 = vmul.f32 %v1178, 0.25
    %v1185 = vmul.f32 %v1181, 0.25
    %v1186 = vadd.f32 %v1184, %v182
    %v1187 = vadd.f32 %v1185, %v184
    %v1188 = vsel %vm129, %v1186, -inf
    %1189 = vmax.xlane.f32.xlu0 %v1188
    %v1190 = vpop.xlane.xlu0 %1189
    %v1191 = vsel %vm129, %v1187, -inf
    %1192 = vmax.xlane.f32.xlu0 %v1191
    %v1193 = vpop.xlane.xlu0 %1192
    %v1194 = vsub.f32 %v1186, %v1190
    %v1195 = vsub.f32 %v1187, %v1193
    %v1196 = vmul.f32 %v1194, 1.442695
    %v1197 = vpow.pop %v1196
    %v1198 = vmul.f32 %v1195, 1.442695
    %v1199 = vpow.pop %v1198
    %v1200 = vsel %vm129, %v1197, 0.0
    %1201 = vadd.xlane.f32.xlu0 %v1200
    %v1202 = vpop.xlane.xlu0 %1201
    %v1203 = vsel %vm129, %v1199, 0.0
    %1204 = vadd.xlane.f32.xlu0 %v1203
    %v1205 = vpop.xlane.xlu0 %1204
    %v1206 = vrcp.pop %v1202
    %v1207 = vrcp.pop %v1205
    %v1208 = vmul.f32 %v1197, %v1206
    %v1209 = vmul.f32 %v1199, %v1207
    %v1210 = vpack.c.bf16 %v1209, %v1208
    %1211 = vrot.lane.b32.xlu0 %v1133, 64
    %v1212 = vpop.permute.xlu0 %1211
    %v1215 = vsel %vm129, %v1210, 0
    %1217 = vmatprep.subr.bf16.mxu0 0
    %1218 = vmatpush1.bf16.msra.mxu0 %v1212
    %1219 = vmatprep.subr.bf16.mxu0 0
    %1220 = vmatpush1.bf16.msra.mxu0 0
    %1221 = vmatprep.subr.bf16.mxu0 0
    %1222 = vmatpush1.bf16.msra.mxu0 0
    %1223 = vmatprep.subr.bf16.mxu0 0
    %1224 = vmatpush1.bf16.msra.mxu0 0
    %1225 = vmatprep.subr.bf16.mxu0 0
    %1226 = vmatpush1.bf16.msra.mxu0 0
    %1227 = vmatprep.subr.bf16.mxu0 0
    %1228 = vmatpush1.bf16.msra.mxu0 0
    %1229 = vmatprep.subr.bf16.mxu0 0
    %1230 = vmatpush1.bf16.msra.mxu0 0
    %1231 = vmatprep.subr.bf16.mxu0 0
    %1232 = vmatpush1.bf16.msra.mxu0 0
    %1233 = vmatprep.subr.bf16.mxu0 0
    %1234 = vmatpush1.bf16.msra.mxu0 0
    %1235 = vmatprep.subr.bf16.mxu0 0
    %1236 = vmatpush1.bf16.msra.mxu0 0
    %1237 = vmatprep.subr.bf16.mxu0 0
    %1238 = vmatpush1.bf16.msra.mxu0 0
    %1239 = vmatprep.subr.bf16.mxu0 0
    %1240 = vmatpush1.bf16.msra.mxu0 0
    %1241 = vmatprep.subr.bf16.mxu0 0
    %1242 = vmatpush1.bf16.msra.mxu0 0
    %1243 = vmatprep.subr.bf16.mxu0 0
    %1244 = vmatpush1.bf16.msra.mxu0 0
    %1245 = vmatprep.subr.bf16.mxu0 0
    %1246 = vmatpush1.bf16.msra.mxu0 0
    %1247 = vmatprep.subr.bf16.mxu0 0
    %1248 = vmatpush1.bf16.msra.mxu0 0
    %1249 = vmatprep.mubr.bf16.mxu0 0
    %1250 = vmatmul.mubr.bf16.gmra.mrb[0].mxu0 %v1215
    %v1251 = vpop.f32.mrb[0].mxu0
    %v1252 = vadd.f32 0.0, %v1251
    %v1253 = vpop.f32.mrb[0].mxu0
    %v1254 = vpop.f32.mrb[0].mxu0
    %v1255 = vadd.f32 0.0, %v1254
    %v1256 = vpop.f32.mrb[0].mxu0
    %1257 = vdwg.mxu0
    %1258 = vrot.lane.b32.xlu0 %v1133, 112
    %v1259 = vpop.permute.xlu0 %1258
    %1260 = vrot.lane.b32.xlu0 %v1133, 80
    %v1261 = vpop.permute.xlu0 %1260
    %v1263 = vsel %vm129, %v1259, 0
    %v1266 = vsel %vm129, %v1261, 0
    %1268 = vmatprep.subr.bf16.mxu0 0
    %1269 = vmatpush1.bf16.xpose.msra.mxu0 %v1266
    %1270 = vmatprep.subr.bf16.mxu0 0
    %1271 = vmatpush1.bf16.xpose.msra.mxu0 0
    %1272 = vmatprep.subr.bf16.mxu0 0
    %1273 = vmatpush1.bf16.xpose.msra.mxu0 0
    %1274 = vmatprep.subr.bf16.mxu0 0
    %1275 = vmatpush1.bf16.xpose.msra.mxu0 0
    %1276 = vmatprep.subr.bf16.mxu0 0
    %1277 = vmatpush1.bf16.xpose.msra.mxu0 0
    %1278 = vmatprep.subr.bf16.mxu0 0
    %1279 = vmatpush1.bf16.xpose.msra.mxu0 0
    %1280 = vmatprep.subr.bf16.mxu0 0
    %1281 = vmatpush1.bf16.xpose.msra.mxu0 0
    %1282 = vmatprep.subr.bf16.mxu0 0
    %1283 = vmatpush1.bf16.xpose.msra.mxu0 0
    %1284 = vmatprep.subr.bf16.mxu0 0
    %1285 = vmatpush1.bf16.xpose.msra.mxu0 0
    %1286 = vmatprep.subr.bf16.mxu0 0
    %1287 = vmatpush1.bf16.xpose.msra.mxu0 0
    %1288 = vmatprep.subr.bf16.mxu0 0
    %1289 = vmatpush1.bf16.xpose.msra.mxu0 0
    %1290 = vmatprep.subr.bf16.mxu0 0
    %1291 = vmatpush1.bf16.xpose.msra.mxu0 0
    %1292 = vmatprep.subr.bf16.mxu0 0
    %1293 = vmatpush1.bf16.xpose.msra.mxu0 0
    %1294 = vmatprep.subr.bf16.mxu0 0
    %1295 = vmatpush1.bf16.xpose.msra.mxu0 0
    %1296 = vmatprep.subr.bf16.mxu0 0
    %1297 = vmatpush1.bf16.xpose.msra.mxu0 0
    %1298 = vmatprep.subr.bf16.mxu0 0
    %1299 = vmatpush1.bf16.xpose.msra.mxu0 0
    %1300 = vmatprep.mubr.bf16.mxu0 0
    %1301 = vmatmul.mubr.bf16.gmra.mrb[0].mxu0 %v1263
    %v1302 = vpop.f32.mrb[0].mxu0
    %v1303 = vadd.f32 0.0, %v1302
    %v1304 = vpop.f32.mrb[0].mxu0
    %v1305 = vpop.f32.mrb[0].mxu0
    %v1306 = vadd.f32 0.0, %v1305
    %v1307 = vpop.f32.mrb[0].mxu0
    %1308 = vdwg.mxu0
    %v1309 = vmul.f32 %v1303, 0.25
    %v1310 = vmul.f32 %v1306, 0.25
    %v1311 = vadd.f32 %v1309, %v182
    %v1312 = vadd.f32 %v1310, %v184
    %v1313 = vsel %vm129, %v1311, -inf
    %1314 = vmax.xlane.f32.xlu0 %v1313
    %v1315 = vpop.xlane.xlu0 %1314
    %v1316 = vsel %vm129, %v1312, -inf
    %1317 = vmax.xlane.f32.xlu0 %v1316
    %v1318 = vpop.xlane.xlu0 %1317
    %v1319 = vsub.f32 %v1311, %v1315
    %v1320 = vsub.f32 %v1312, %v1318
    %v1321 = vmul.f32 %v1319, 1.442695
    %v1322 = vpow.pop %v1321
    %v1323 = vmul.f32 %v1320, 1.442695
    %v1324 = vpow.pop %v1323
    %v1325 = vsel %vm129, %v1322, 0.0
    %1326 = vadd.xlane.f32.xlu0 %v1325
    %v1327 = vpop.xlane.xlu0 %1326
    %v1328 = vsel %vm129, %v1324, 0.0
    %1329 = vadd.xlane.f32.xlu0 %v1328
    %v1330 = vpop.xlane.xlu0 %1329
    %v1331 = vrcp.pop %v1327
    %v1332 = vrcp.pop %v1330
    %v1333 = vmul.f32 %v1322, %v1331
    %v1334 = vmul.f32 %v1324, %v1332
    %v1335 = vpack.c.bf16 %v1334, %v1333
    %1336 = vrot.lane.b32.xlu0 %v1133, 48
    %v1337 = vpop.permute.xlu0 %1336
    %v1340 = vsel %vm129, %v1335, 0
    %1342 = vmatprep.subr.bf16.mxu0 0
    %1343 = vmatpush1.bf16.msra.mxu0 %v1337
    %1344 = vmatprep.subr.bf16.mxu0 0
    %1345 = vmatpush1.bf16.msra.mxu0 0
    %1346 = vmatprep.subr.bf16.mxu0 0
    %1347 = vmatpush1.bf16.msra.mxu0 0
    %1348 = vmatprep.subr.bf16.mxu0 0
    %1349 = vmatpush1.bf16.msra.mxu0 0
    %1350 = vmatprep.subr.bf16.mxu0 0
    %1351 = vmatpush1.bf16.msra.mxu0 0
    %1352 = vmatprep.subr.bf16.mxu0 0
    %1353 = vmatpush1.bf16.msra.mxu0 0
    %1354 = vmatprep.subr.bf16.mxu0 0
    %1355 = vmatpush1.bf16.msra.mxu0 0
    %1356 = vmatprep.subr.bf16.mxu0 0
    %1357 = vmatpush1.bf16.msra.mxu0 0
    %1358 = vmatprep.subr.bf16.mxu0 0
    %1359 = vmatpush1.bf16.msra.mxu0 0
    %1360 = vmatprep.subr.bf16.mxu0 0
    %1361 = vmatpush1.bf16.msra.mxu0 0
    %1362 = vmatprep.subr.bf16.mxu0 0
    %1363 = vmatpush1.bf16.msra.mxu0 0
    %1364 = vmatprep.subr.bf16.mxu0 0
    %1365 = vmatpush1.bf16.msra.mxu0 0
    %1366 = vmatprep.subr.bf16.mxu0 0
    %1367 = vmatpush1.bf16.msra.mxu0 0
    %1368 = vmatprep.subr.bf16.mxu0 0
    %1369 = vmatpush1.bf16.msra.mxu0 0
    %1370 = vmatprep.subr.bf16.mxu0 0
    %1371 = vmatpush1.bf16.msra.mxu0 0
    %1372 = vmatprep.subr.bf16.mxu0 0
    %1373 = vmatpush1.bf16.msra.mxu0 0
    %1374 = vmatprep.mubr.bf16.mxu0 0
    %1375 = vmatmul.mubr.bf16.gmra.mrb[0].mxu0 %v1340
    %v1376 = vpop.f32.mrb[0].mxu0
    %v1377 = vadd.f32 0.0, %v1376
    %v1378 = vpop.f32.mrb[0].mxu0
    %v1379 = vpop.f32.mrb[0].mxu0
    %v1380 = vadd.f32 0.0, %v1379
    %v1381 = vpop.f32.mrb[0].mxu0
    %1382 = vdwg.mxu0
    %1385 = vrot.lane.b32.xlu0 %v1377, 16
    %v1386 = vpop.permute.xlu0 %1385
    %1387 = vrot.lane.b32.xlu0 %v1380, 16
    %v1388 = vpop.permute.xlu0 %1387
    %v1391 = vsel %vm129, %v1252, %v1386
    %v1392 = vsel %vm129, %v1255, %v1388
    %v1393 = vld [vmem:[#allocation4 + $0xe0] sm:$0xf]
    %v1394 = vld [vmem:[#allocation4 + $0xe4] sm:$0xf]
    %v1395 = vld [vmem:[#allocation4 + $0xe8] sm:$0xf]
    %v1396 = vld [vmem:[#allocation4 + $0xec] sm:$0xf]
    %v1397 = vpack.c.bf16 %v1392, %v1391
    %v1398 = vld [vmem:[#allocation6 + $0x48] sm:$0x1]
    %v1399 = vlaneseq
    %v1400 = vshrl.u32 %v1399, 7
    %v1401 = vsub.s32 0, %v1400
    %v1402 = vrot.slane %v1398, %v1401
    %v1407 = vunpack.c.l.b16 %v1393
    %v1408 = vunpack.c.l.b16 %v1394
    %v1409 = vunpack.c.l.b16 %v1395
    %v1410 = vunpack.c.l.b16 %v1396
    %v1411 = vpack.c.b16 %v1408, %v1407
    %v1412 = vpack.c.b16 %v1410, %v1409
    %v1416 = vsel %vm80, %v1397, 0
    %1418 = vmatprep.subr.bf16.mxu0 0
    %1419 = vmatpush1.bf16.msra.mxu0 %v1411
    %1420 = vmatprep.subr.bf16.mxu0 0
    %1421 = vmatpush1.bf16.msra.mxu0 %v1412
    %1422 = vmatprep.subr.bf16.mxu0 0
    %1423 = vmatpush1.bf16.msra.mxu0 0
    %1424 = vmatprep.subr.bf16.mxu0 0
    %1425 = vmatpush1.bf16.msra.mxu0 0
    %1426 = vmatprep.subr.bf16.mxu0 0
    %1427 = vmatpush1.bf16.msra.mxu0 0
    %1428 = vmatprep.subr.bf16.mxu0 0
    %1429 = vmatpush1.bf16.msra.mxu0 0
    %1430 = vmatprep.subr.bf16.mxu0 0
    %1431 = vmatpush1.bf16.msra.mxu0 0
    %1432 = vmatprep.subr.bf16.mxu0 0
    %1433 = vmatpush1.bf16.msra.mxu0 0
    %1434 = vmatprep.subr.bf16.mxu0 0
    %1435 = vmatpush1.bf16.msra.mxu0 0
    %1436 = vmatprep.subr.bf16.mxu0 0
    %1437 = vmatpush1.bf16.msra.mxu0 0
    %1438 = vmatprep.subr.bf16.mxu0 0
    %1439 = vmatpush1.bf16.msra.mxu0 0
    %1440 = vmatprep.subr.bf16.mxu0 0
    %1441 = vmatpush1.bf16.msra.mxu0 0
    %1442 = vmatprep.subr.bf16.mxu0 0
    %1443 = vmatpush1.bf16.msra.mxu0 0
    %1444 = vmatprep.subr.bf16.mxu0 0
    %1445 = vmatpush1.bf16.msra.mxu0 0
    %1446 = vmatprep.subr.bf16.mxu0 0
    %1447 = vmatpush1.bf16.msra.mxu0 0
    %1448 = vmatprep.subr.bf16.mxu0 0
    %1449 = vmatpush1.bf16.msra.mxu0 0
    %1450 = vmatprep.mubr.bf16.mxu0 0
    %1451 = vmatmul.mubr.bf16.gmra.mrb[0].mxu0 %v1416
    %v1452 = vpop.f32.mrb[0].mxu0
    %v1453 = vadd.f32 %v1402, %v1452
    %v1454 = vpop.f32.mrb[0].mxu0
    %v1455 = vpop.f32.mrb[0].mxu0
    %v1456 = vadd.f32 %v1402, %v1455
    %v1457 = vpop.f32.mrb[0].mxu0
    %1458 = vdwg.mxu0
    %v1459 = vadd.f32 %v1453, %v1065
    %v1460 = vadd.f32 %v1456, %v1066
    %v1461 = vld [vmem:[#allocation6 + $0x50] sm:$0x1]
    %v1462 = vld [vmem:[#allocation6 + $0x58] sm:$0x1]
    %v1463 = vsel %vm80, %v1459, 0.0
    %1464 = vadd.xlane.f32.xlu0 %v1463
    %v1465 = vpop.xlane.xlu0 %1464
    %v1466 = vsel %vm80, %v1460, 0.0
    %1467 = vadd.xlane.f32.xlu0 %v1466
    %v1468 = vpop.xlane.xlu0 %1467
    %v1469 = vmul.f32 %v1465, %v470
    %v1470 = vmul.f32 %v1468, %v470
    %v1471 = vsub.f32 %v1459, %v1469
    %v1472 = vsub.f32 %v1460, %v1470
    %v1473 = vmul.f32 %v1471, %v1471
    %v1474 = vmul.f32 %v1472, %v1472
    %v1475 = vsel %vm80, %v1473, 0.0
    %1476 = vadd.xlane.f32.xlu0 %v1475
    %v1477 = vpop.xlane.xlu0 %1476
    %v1478 = vsel %vm80, %v1474, 0.0
    %1479 = vadd.xlane.f32.xlu0 %v1478
    %v1480 = vpop.xlane.xlu0 %1479
    %v1481 = vmul.f32 %v1477, %v470
    %v1482 = vmul.f32 %v1480, %v470
    %v1483 = vadd.f32 %v1481, 1e-05
    %v1484 = vadd.f32 %v1482, 1e-05
    %v1485 = vrsqrt.pop %v1483
    %v1486 = vrsqrt.pop %v1484
    %v1487 = vmul.f32 %v1471, %v1485
    %v1488 = vmul.f32 %v1472, %v1486
    %v1489 = vlaneseq
    %v1490 = vshrl.u32 %v1489, 7
    %v1491 = vsub.s32 0, %v1490
    %v1492 = vrot.slane %v1461, %v1491
    %v1493 = vmul.f32 %v1487, %v1492
    %v1494 = vmul.f32 %v1488, %v1492
    %v1495 = vlaneseq
    %v1496 = vshrl.u32 %v1495, 7
    %v1497 = vsub.s32 0, %v1496
    %v1498 = vrot.slane %v1462, %v1497
    %v1499 = vadd.f32 %v1493, %v1498
    %v1500 = vadd.f32 %v1494, %v1498
    %v1501 = vmul.f32 %v1499, %v505
    %v1502 = vmul.f32 %v1500, %v509
    %v1503 = vrot.slane %v1501, 4
    %v1504 = vrot.slane %v1502, 4
    %v1505 = vsel %vm517, %v1503, %v1504
    %v1506 = vsel %vm517, %v1504, %v1503
    %v1507 = vmul.f32 %v1506, %v522
    %v1508 = vmul.f32 %v1505, %v526
    %v1509 = vrot.slane %v1501, 5
    %v1510 = vrot.slane %v1502, 5
    %v1511 = vsel %vm532, %v1509, %v1510
    %v1512 = vsel %vm532, %v1510, %v1509
    %v1513 = vmul.f32 %v1512, %v537
    %v1514 = vmul.f32 %v1511, %v541
    %v1515 = vrot.slane %v1501, 6
    %v1516 = vrot.slane %v1502, 6
    %v1517 = vsel %vm547, %v1515, %v1516
    %v1518 = vsel %vm547, %v1516, %v1515
    %v1519 = vmul.f32 %v1518, %v552
    %v1520 = vmul.f32 %v1517, %v556
    %v1521 = vrot.slane %v1501, 7
    %v1522 = vrot.slane %v1502, 7
    %v1523 = vsel %vm562, %v1521, %v1522
    %v1524 = vsel %vm562, %v1522, %v1521
    %v1525 = vmul.f32 %v1524, %v567
    %v1526 = vmul.f32 %v1523, %v571
    %v1527 = vmul.f32 %v1501, %v577
    %v1528 = vmul.f32 %v1502, %v581
    %v1529 = vrot.slane %v1501, 1
    %v1530 = vrot.slane %v1502, 1
    %v1531 = vsel %vm587, %v1529, %v1530
    %v1532 = vsel %vm587, %v1530, %v1529
    %v1533 = vmul.f32 %v1531, %v592
    %v1534 = vmul.f32 %v1532, %v596
    %v1535 = vrot.slane %v1501, 2
    %v1536 = vrot.slane %v1502, 2
    %v1537 = vsel %vm602, %v1535, %v1536
    %v1538 = vsel %vm602, %v1536, %v1535
    %v1539 = vmul.f32 %v1537, %v607
    %v1540 = vmul.f32 %v1538, %v611
    %v1541 = vrot.slane %v1501, 3
    %v1542 = vrot.slane %v1502, 3
    %v1543 = vsel %vm617, %v1541, %v1542
    %v1544 = vsel %vm617, %v1542, %v1541
    %v1545 = vmul.f32 %v1543, %v622
    %v1546 = vmul.f32 %v1544, %v626
    %v1547 = vmul.f32 %v1505, %v632
    %v1548 = vmul.f32 %v1506, %v636
    %1551 = vrot.lane.b32.xlu0 %v1513, 32
    %v1552 = vpop.permute.xlu0 %1551
    %1553 = vrot.lane.b32.xlu0 %v1514, 32
    %v1554 = vpop.permute.xlu0 %1553
    %1559 = vrot.lane.b32.xlu0 %v1519, 64
    %v1560 = vpop.permute.xlu0 %1559
    %1561 = vrot.lane.b32.xlu0 %v1520, 64
    %v1562 = vpop.permute.xlu0 %1561
    %1567 = vrot.lane.b32.xlu0 %v1525, 96
    %v1568 = vpop.permute.xlu0 %1567
    %1569 = vrot.lane.b32.xlu0 %v1526, 96
    %v1570 = vpop.permute.xlu0 %1569
    %1575 = vrot.lane.b32.xlu0 %v1533, 32
    %v1576 = vpop.permute.xlu0 %1575
    %1577 = vrot.lane.b32.xlu0 %v1534, 32
    %v1578 = vpop.permute.xlu0 %1577
    %1583 = vrot.lane.b32.xlu0 %v1539, 64
    %v1584 = vpop.permute.xlu0 %1583
    %1585 = vrot.lane.b32.xlu0 %v1540, 64
    %v1586 = vpop.permute.xlu0 %1585
    %1591 = vrot.lane.b32.xlu0 %v1545, 96
    %v1592 = vpop.permute.xlu0 %1591
    %1593 = vrot.lane.b32.xlu0 %v1546, 96
    %v1594 = vpop.permute.xlu0 %1593
    %v1597 = vsel %vm80, %v1507, %v1552
    %v1598 = vsel %vm80, %v1508, %v1554
    %v1599 = vsel %vm690, %v1597, %v1560
    %v1600 = vsel %vm690, %v1598, %v1562
    %v1601 = vsel %vm693, %v1599, %v1568
    %v1602 = vsel %vm693, %v1600, %v1570
    %v1603 = vsel %vm80, %v1527, %v1576
    %v1604 = vsel %vm80, %v1528, %v1578
    %v1605 = vsel %vm690, %v1603, %v1584
    %v1606 = vsel %vm690, %v1604, %v1586
    %v1607 = vsel %vm693, %v1605, %v1592
    %v1608 = vsel %vm693, %v1606, %v1594
    %v1609 = vld [vmem:[#allocation4 + $0xf0] sm:$0xf]
    %v1610 = vld [vmem:[#allocation4 + $0xf4] sm:$0xf]
    %v1611 = vld [vmem:[#allocation4 + $0xf8] sm:$0xf]
    %v1612 = vld [vmem:[#allocation4 + $0xfc] sm:$0xf]
    %v1613 = vld [vmem:[#allocation4 + $0x100] sm:$0xf]
    %v1614 = vld [vmem:[#allocation4 + $0x104] sm:$0xf]
    %v1615 = vld [vmem:[#allocation4 + $0x108] sm:$0xf]
    %v1616 = vld [vmem:[#allocation4 + $0x10c] sm:$0xf]
    %v1617 = vld [vmem:[#allocation4 + $0x110] sm:$0xf]
    %v1618 = vld [vmem:[#allocation4 + $0x114] sm:$0xf]
    %v1619 = vld [vmem:[#allocation4 + $0x118] sm:$0xf]
    %v1620 = vld [vmem:[#allocation4 + $0x11c] sm:$0xf]
    %v1621 = vld [vmem:[#allocation4 + $0x120] sm:$0xf]
    %v1622 = vld [vmem:[#allocation4 + $0x124] sm:$0xf]
    %v1623 = vld [vmem:[#allocation4 + $0x128] sm:$0xf]
    %v1624 = vld [vmem:[#allocation4 + $0x12c] sm:$0xf]
    %v1625 = vld [vmem:[#allocation4 + $0x130] sm:$0xf]
    %v1626 = vld [vmem:[#allocation4 + $0x134] sm:$0xf]
    %v1627 = vld [vmem:[#allocation4 + $0x138] sm:$0xf]
    %v1628 = vld [vmem:[#allocation4 + $0x13c] sm:$0xf]
    %v1629 = vld [vmem:[#allocation4 + $0x140] sm:$0xf]
    %v1630 = vld [vmem:[#allocation4 + $0x144] sm:$0xf]
    %v1631 = vld [vmem:[#allocation4 + $0x148] sm:$0xf]
    %v1632 = vld [vmem:[#allocation4 + $0x14c] sm:$0xf]
    %v1633 = vld [vmem:[#allocation4 + $0x150] sm:$0xf]
    %v1634 = vld [vmem:[#allocation4 + $0x154] sm:$0xf]
    %v1635 = vld [vmem:[#allocation4 + $0x158] sm:$0xf]
    %v1636 = vld [vmem:[#allocation4 + $0x15c] sm:$0xf]
    %v1637 = vld [vmem:[#allocation4 + $0x160] sm:$0xf]
    %v1638 = vld [vmem:[#allocation4 + $0x164] sm:$0xf]
    %v1639 = vld [vmem:[#allocation4 + $0x168] sm:$0xf]
    %v1640 = vld [vmem:[#allocation4 + $0x16c] sm:$0xf]
    %v1641 = vld [vmem:[#allocation4 + $0x170] sm:$0xf]
    %v1642 = vld [vmem:[#allocation4 + $0x174] sm:$0xf]
    %v1643 = vld [vmem:[#allocation4 + $0x178] sm:$0xf]
    %v1644 = vld [vmem:[#allocation4 + $0x17c] sm:$0xf]
    %v1645 = vpack.c.bf16 %v1602, %v1601
    %v1646 = vpack.c.bf16 %v1608, %v1607
    %v1647 = vpack.c.bf16 %v1548, %v1547
    %v1648 = vld [vmem:[#allocation6 + $0x60] sm:$0x1]
    %v1649 = vlaneseq
    %v1650 = vshrl.u32 %v1649, 7
    %v1651 = vsub.s32 0, %v1650
    %v1652 = vrot.slane %v1648, %v1651
    %v1689 = vunpack.c.l.b16 %v1609
    %v1690 = vunpack.c.l.b16 %v1610
    %v1691 = vunpack.c.l.b16 %v1611
    %v1692 = vunpack.c.l.b16 %v1612
    %v1693 = vunpack.c.l.b16 %v1613
    %v1694 = vunpack.c.l.b16 %v1614
    %v1695 = vunpack.c.l.b16 %v1615
    %v1696 = vunpack.c.l.b16 %v1616
    %v1697 = vunpack.c.l.b16 %v1617
    %v1698 = vunpack.c.l.b16 %v1618
    %v1699 = vunpack.c.l.b16 %v1619
    %v1700 = vunpack.c.l.b16 %v1620
    %v1701 = vunpack.c.l.b16 %v1621
    %v1702 = vunpack.c.l.b16 %v1622
    %v1703 = vunpack.c.l.b16 %v1623
    %v1704 = vunpack.c.l.b16 %v1624
    %v1705 = vunpack.c.l.b16 %v1625
    %v1706 = vunpack.c.l.b16 %v1626
    %v1707 = vunpack.c.l.b16 %v1627
    %v1708 = vunpack.c.l.b16 %v1628
    %v1709 = vunpack.c.l.b16 %v1629
    %v1710 = vunpack.c.l.b16 %v1630
    %v1711 = vunpack.c.l.b16 %v1631
    %v1712 = vunpack.c.l.b16 %v1632
    %v1713 = vunpack.c.l.b16 %v1633
    %v1714 = vunpack.c.l.b16 %v1634
    %v1715 = vunpack.c.l.b16 %v1635
    %v1716 = vunpack.c.l.b16 %v1636
    %v1717 = vunpack.c.l.b16 %v1637
    %v1718 = vunpack.c.l.b16 %v1638
    %v1719 = vunpack.c.l.b16 %v1639
    %v1720 = vunpack.c.l.b16 %v1640
    %v1721 = vunpack.c.l.b16 %v1641
    %v1722 = vunpack.c.l.b16 %v1642
    %v1723 = vunpack.c.l.b16 %v1643
    %v1724 = vunpack.c.l.b16 %v1644
    %v1725 = vpack.c.b16 %v1690, %v1689
    %v1726 = vpack.c.b16 %v1692, %v1691
    %v1727 = vpack.c.b16 %v1694, %v1693
    %v1728 = vpack.c.b16 %v1696, %v1695
    %v1729 = vpack.c.b16 %v1698, %v1697
    %v1730 = vpack.c.b16 %v1700, %v1699
    %v1731 = vpack.c.b16 %v1702, %v1701
    %v1732 = vpack.c.b16 %v1704, %v1703
    %v1733 = vpack.c.b16 %v1706, %v1705
    %v1734 = vpack.c.b16 %v1708, %v1707
    %v1735 = vpack.c.b16 %v1710, %v1709
    %v1736 = vpack.c.b16 %v1712, %v1711
    %v1737 = vpack.c.b16 %v1714, %v1713
    %v1738 = vpack.c.b16 %v1716, %v1715
    %v1739 = vpack.c.b16 %v1718, %v1717
    %v1740 = vpack.c.b16 %v1720, %v1719
    %v1741 = vpack.c.b16 %v1722, %v1721
    %v1742 = vpack.c.b16 %v1724, %v1723
    %v1762 = vsel %vm80, %v1647, 0
    %1764 = vmatprep.subr.bf16.mxu0 0
    %1765 = vmatpush1.bf16.msra.mxu0 %v1725
    %1766 = vmatprep.subr.bf16.mxu0 0
    %1767 = vmatpush1.bf16.msra.mxu0 %v1726
    %1768 = vmatprep.subr.bf16.mxu0 0
    %1769 = vmatpush1.bf16.msra.mxu0 %v1727
    %1770 = vmatprep.subr.bf16.mxu0 0
    %1771 = vmatpush1.bf16.msra.mxu0 %v1728
    %1772 = vmatprep.subr.bf16.mxu0 0
    %1773 = vmatpush1.bf16.msra.mxu0 %v1729
    %1774 = vmatprep.subr.bf16.mxu0 0
    %1775 = vmatpush1.bf16.msra.mxu0 %v1730
    %1776 = vmatprep.subr.bf16.mxu0 0
    %1777 = vmatpush1.bf16.msra.mxu0 %v1731
    %1778 = vmatprep.subr.bf16.mxu0 0
    %1779 = vmatpush1.bf16.msra.mxu0 %v1732
    %1780 = vmatprep.subr.bf16.mxu0 0
    %1781 = vmatpush1.bf16.msra.mxu0 %v1733
    %1782 = vmatprep.subr.bf16.mxu0 0
    %1783 = vmatpush1.bf16.msra.mxu0 %v1734
    %1784 = vmatprep.subr.bf16.mxu0 0
    %1785 = vmatpush1.bf16.msra.mxu0 %v1735
    %1786 = vmatprep.subr.bf16.mxu0 0
    %1787 = vmatpush1.bf16.msra.mxu0 %v1736
    %1788 = vmatprep.subr.bf16.mxu0 0
    %1789 = vmatpush1.bf16.msra.mxu0 %v1737
    %1790 = vmatprep.subr.bf16.mxu0 0
    %1791 = vmatpush1.bf16.msra.mxu0 %v1738
    %1792 = vmatprep.subr.bf16.mxu0 0
    %1793 = vmatpush1.bf16.msra.mxu0 %v1739
    %1794 = vmatprep.subr.bf16.mxu0 0
    %1795 = vmatpush1.bf16.msra.mxu0 %v1740
    %1796 = vmatprep.mubr.bf16.mxu0 %v1646
    %1797 = vmatmul.mubr.bf16.gmra.mrb[0].mxu0 %v1645
    %v1798 = vpop.f32.mrb[0].mxu0
    %v1799 = vadd.f32 %v1652, %v1798
    %v1800 = vpop.f32.mrb[0].mxu0
    %v1801 = vpop.f32.mrb[0].mxu0
    %v1802 = vadd.f32 %v1652, %v1801
    %v1803 = vpop.f32.mrb[0].mxu0
    %1804 = vdwg.mxu0
    %1805 = vmatprep.subr.bf16.mxu0 0
    %1806 = vmatpush1.bf16.msra.mxu0 %v1741
    %1807 = vmatprep.subr.bf16.mxu0 0
    %1808 = vmatpush1.bf16.msra.mxu0 %v1742
    %1809 = vmatprep.subr.bf16.mxu0 0
    %1810 = vmatpush1.bf16.msra.mxu0 0
    %1811 = vmatprep.subr.bf16.mxu0 0
    %1812 = vmatpush1.bf16.msra.mxu0 0
    %1813 = vmatprep.subr.bf16.mxu0 0
    %1814 = vmatpush1.bf16.msra.mxu0 0
    %1815 = vmatprep.subr.bf16.mxu0 0
    %1816 = vmatpush1.bf16.msra.mxu0 0
    %1817 = vmatprep.subr.bf16.mxu0 0
    %1818 = vmatpush1.bf16.msra.mxu0 0
    %1819 = vmatprep.subr.bf16.mxu0 0
    %1820 = vmatpush1.bf16.msra.mxu0 0
    %1821 = vmatprep.subr.bf16.mxu0 0
    %1822 = vmatpush1.bf16.msra.mxu0 0
    %1823 = vmatprep.subr.bf16.mxu0 0
    %1824 = vmatpush1.bf16.msra.mxu0 0
    %1825 = vmatprep.subr.bf16.mxu0 0
    %1826 = vmatpush1.bf16.msra.mxu0 0
    %1827 = vmatprep.subr.bf16.mxu0 0
    %1828 = vmatpush1.bf16.msra.mxu0 0
    %1829 = vmatprep.subr.bf16.mxu0 0
    %1830 = vmatpush1.bf16.msra.mxu0 0
    %1831 = vmatprep.subr.bf16.mxu0 0
    %1832 = vmatpush1.bf16.msra.mxu0 0
    %1833 = vmatprep.subr.bf16.mxu0 0
    %1834 = vmatpush1.bf16.msra.mxu0 0
    %1835 = vmatprep.subr.bf16.mxu0 0
    %1836 = vmatpush1.bf16.msra.mxu0 0
    %1837 = vmatprep.mubr.bf16.mxu0 0
    %1838 = vmatmul.mubr.bf16.gmra.mrb[0].mxu0 %v1762
    %v1839 = vpop.f32.mrb[0].mxu0
    %v1840 = vadd.f32 %v1799, %v1839
    %v1841 = vpop.f32.mrb[0].mxu0
    %v1842 = vpop.f32.mrb[0].mxu0
    %v1843 = vadd.f32 %v1802, %v1842
    %v1844 = vpop.f32.mrb[0].mxu0
    %1845 = vdwg.mxu0
    %v1846 = vmax.f32 %v1840, 0.0
    %v1847 = vmax.f32 %v1843, 0.0
    %v1848 = vld [vmem:[#allocation4 + $0x180] sm:$0xf]
    %v1849 = vld [vmem:[#allocation4 + $0x184] sm:$0xf]
    %v1850 = vld [vmem:[#allocation4 + $0x188] sm:$0xf]
    %v1851 = vld [vmem:[#allocation4 + $0x18c] sm:$0xf]
    %v1852 = vld [vmem:[#allocation4 + $0x190] sm:$0xf]
    %v1853 = vld [vmem:[#allocation4 + $0x194] sm:$0xf]
    %v1854 = vld [vmem:[#allocation4 + $0x198] sm:$0xf]
    %v1855 = vld [vmem:[#allocation4 + $0x19c] sm:$0xf]
    %v1856 = vpack.c.bf16 %v1847, %v1846
    %v1857 = vld [vmem:[#allocation6 + $0x68] sm:$0x1]
    %v1858 = vlaneseq
    %v1859 = vshrl.u32 %v1858, 7
    %v1860 = vsub.s32 0, %v1859
    %v1861 = vrot.slane %v1857, %v1860
    %v1870 = vunpack.c.l.b16 %v1848
    %v1871 = vunpack.c.l.b16 %v1849
    %v1872 = vunpack.c.l.b16 %v1850
    %v1873 = vunpack.c.l.b16 %v1851
    %v1874 = vunpack.c.l.b16 %v1852
    %v1875 = vunpack.c.l.b16 %v1853
    %v1876 = vunpack.c.l.b16 %v1854
    %v1877 = vunpack.c.l.b16 %v1855
    %v1878 = vpack.c.b16 %v1871, %v1870
    %v1879 = vpack.c.b16 %v1873, %v1872
    %v1880 = vpack.c.b16 %v1875, %v1874
    %v1881 = vpack.c.b16 %v1877, %v1876
    %v1887 = vsel %vm690, %v1856, 0
    %1889 = vmatprep.subr.bf16.mxu0 0
    %1890 = vmatpush1.bf16.msra.mxu0 %v1878
    %1891 = vmatprep.subr.bf16.mxu0 0
    %1892 = vmatpush1.bf16.msra.mxu0 %v1879
    %1893 = vmatprep.subr.bf16.mxu0 0
    %1894 = vmatpush1.bf16.msra.mxu0 %v1880
    %1895 = vmatprep.subr.bf16.mxu0 0
    %1896 = vmatpush1.bf16.msra.mxu0 %v1881
    %1897 = vmatprep.subr.bf16.mxu0 0
    %1898 = vmatpush1.bf16.msra.mxu0 0
    %1899 = vmatprep.subr.bf16.mxu0 0
    %1900 = vmatpush1.bf16.msra.mxu0 0
    %1901 = vmatprep.subr.bf16.mxu0 0
    %1902 = vmatpush1.bf16.msra.mxu0 0
    %1903 = vmatprep.subr.bf16.mxu0 0
    %1904 = vmatpush1.bf16.msra.mxu0 0
    %1905 = vmatprep.subr.bf16.mxu0 0
    %1906 = vmatpush1.bf16.msra.mxu0 0
    %1907 = vmatprep.subr.bf16.mxu0 0
    %1908 = vmatpush1.bf16.msra.mxu0 0
    %1909 = vmatprep.subr.bf16.mxu0 0
    %1910 = vmatpush1.bf16.msra.mxu0 0
    %1911 = vmatprep.subr.bf16.mxu0 0
    %1912 = vmatpush1.bf16.msra.mxu0 0
    %1913 = vmatprep.subr.bf16.mxu0 0
    %1914 = vmatpush1.bf16.msra.mxu0 0
    %1915 = vmatprep.subr.bf16.mxu0 0
    %1916 = vmatpush1.bf16.msra.mxu0 0
    %1917 = vmatprep.subr.bf16.mxu0 0
    %1918 = vmatpush1.bf16.msra.mxu0 0
    %1919 = vmatprep.subr.bf16.mxu0 0
    %1920 = vmatpush1.bf16.msra.mxu0 0
    %1921 = vmatprep.mubr.bf16.mxu0 0
    %1922 = vmatmul.mubr.bf16.gmra.mrb[0].mxu0 %v1887
    %v1923 = vpop.f32.mrb[0].mxu0
    %v1924 = vadd.f32 %v1861, %v1923
    %v1925 = vpop.f32.mrb[0].mxu0
    %v1926 = vpop.f32.mrb[0].mxu0
    %v1927 = vadd.f32 %v1861, %v1926
    %v1928 = vpop.f32.mrb[0].mxu0
    %1929 = vdwg.mxu0
    %v1930 = vadd.f32 %v1924, %v1501
    %v1931 = vadd.f32 %v1927, %v1502
    %v1932 = vld [vmem:[#allocation6 + $0x70] sm:$0x1]
    %v1933 = vld [vmem:[#allocation6 + $0x78] sm:$0x1]
    %v1934 = vsel %vm80, %v1930, 0.0
    %1935 = vadd.xlane.f32.xlu0 %v1934
    %v1936 = vpop.xlane.xlu0 %1935
    %v1937 = vsel %vm80, %v1931, 0.0
    %1938 = vadd.xlane.f32.xlu0 %v1937
    %v1939 = vpop.xlane.xlu0 %1938
    %v1940 = vmul.f32 %v1936, %v470
    %v1941 = vmul.f32 %v1939, %v470
    %v1942 = vsub.f32 %v1930, %v1940
    %v1943 = vsub.f32 %v1931, %v1941
    %v1944 = vmul.f32 %v1942, %v1942
    %v1945 = vmul.f32 %v1943, %v1943
    %v1946 = vsel %vm80, %v1944, 0.0
    %1947 = vadd.xlane.f32.xlu0 %v1946
    %v1948 = vpop.xlane.xlu0 %1947
    %v1949 = vsel %vm80, %v1945, 0.0
    %1950 = vadd.xlane.f32.xlu0 %v1949
    %v1951 = vpop.xlane.xlu0 %1950
    %v1952 = vmul.f32 %v1948, %v470
    %v1953 = vmul.f32 %v1951, %v470
    %v1954 = vadd.f32 %v1952, 1e-05
    %v1955 = vadd.f32 %v1953, 1e-05
    %v1956 = vrsqrt.pop %v1954
    %v1957 = vrsqrt.pop %v1955
    %v1958 = vmul.f32 %v1942, %v1956
    %v1959 = vmul.f32 %v1943, %v1957
    %v1960 = vlaneseq
    %v1961 = vshrl.u32 %v1960, 7
    %v1962 = vsub.s32 0, %v1961
    %v1963 = vrot.slane %v1932, %v1962
    %v1964 = vmul.f32 %v1958, %v1963
    %v1965 = vmul.f32 %v1959, %v1963
    %v1966 = vlaneseq
    %v1967 = vshrl.u32 %v1966, 7
    %v1968 = vsub.s32 0, %v1967
    %v1969 = vrot.slane %v1933, %v1968
    %v1970 = vadd.f32 %v1964, %v1969
    %v1971 = vadd.f32 %v1965, %v1969
    %v1972 = vmul.f32 %v1970, %v505
    %v1973 = vmul.f32 %v1971, %v509
    %1974 = vrot.lane.b32.xlu0 %v56, 96
    %v1975 = vpop.permute.xlu0 %1974
    %1976 = vrot.lane.b32.xlu0 %v57, 96
    %v1977 = vpop.permute.xlu0 %1976
    %v1980 = vadd.f32 %v1972, %v1975
    %v1981 = vadd.f32 %v1973, %v1977
    %v1982 = vlaneseq
    %v1983 = vand.u32 %v1982, 127
    %vm1984 = vcmp.lt.s32.totalorder %v1983, 32
    %v1985 = vsel %vm1984, 1, 0
    %v1986 = vcvt.s32.f32 %v1985
    %v1987 = vsub.f32 1.0, %v1986
    %v1988 = vrot.slane %v1980, 7
    %v1989 = vrot.slane %v1981, 7
    %v1990 = vsel %vm562, %v1988, %v1989
    %v1991 = vsel %vm562, %v1989, %v1988
    %1992 = vset.pattern.permute.xlu0 90
    %1993 = vperm.xlu0 %1992, %v56
    %v1994 = vpop.permute.xlu0 %1993
    %1996 = vset.pattern.permute.xlu0 90
    %1997 = vperm.xlu0 %1996, %v57
    %v1998 = vpop.permute.xlu0 %1997
    %v2000 = vmul.f32 %v1991, %v1994
    %v2001 = vmul.f32 %v1990, %v1998
    %2002 = vset.pattern.permute.xlu0 91
    %2003 = vperm.xlu0 %2002, %v56
    %v2004 = vpop.permute.xlu0 %2003
    %2006 = vset.pattern.permute.xlu0 91
    %2007 = vperm.xlu0 %2006, %v57
    %v2008 = vpop.permute.xlu0 %2007
    %v2010 = vmul.f32 %v1980, %v2004
    %v2011 = vmul.f32 %v1981, %v2008
    %v2012 = vrot.slane %v1980, 1
    %v2013 = vrot.slane %v1981, 1
    %v2014 = vsel %vm587, %v2012, %v2013
    %v2015 = vsel %vm587, %v2013, %v2012
    %2016 = vset.pattern.permute.xlu0 92
    %2017 = vperm.xlu0 %2016, %v56
    %v2018 = vpop.permute.xlu0 %2017
    %2020 = vset.pattern.permute.xlu0 92
    %2021 = vperm.xlu0 %2020, %v57
    %v2022 = vpop.permute.xlu0 %2021
    %v2024 = vmul.f32 %v2014, %v2018
    %v2025 = vmul.f32 %v2015, %v2022
    %2028 = vrot.lane.b32.xlu0 %v2010, 32
    %v2029 = vpop.permute.xlu0 %2028
    %2030 = vrot.lane.b32.xlu0 %v2011, 32
    %v2031 = vpop.permute.xlu0 %2030
    %2036 = vrot.lane.b32.xlu0 %v2024, 64
    %v2037 = vpop.permute.xlu0 %2036
    %2038 = vrot.lane.b32.xlu0 %v2025, 64
    %v2039 = vpop.permute.xlu0 %2038
    %v2042 = vsel %vm80, %v2000, %v2029
    %v2043 = vsel %vm80, %v2001, %v2031
    %v2044 = vsel %vm690, %v2042, %v2037
    %v2045 = vsel %vm690, %v2043, %v2039
    %v2046 = vld [vmem:[#allocation4 + $0x1a0] sm:$0xf]
    %v2047 = vld [vmem:[#allocation4 + $0x1a4] sm:$0xf]
    %v2048 = vld [vmem:[#allocation4 + $0x1a8] sm:$0xf]
    %v2049 = vld [vmem:[#allocation4 + $0x1ac] sm:$0xf]
    %v2050 = vld [vmem:[#allocation4 + $0x1b0] sm:$0xf]
    %v2051 = vld [vmem:[#allocation4 + $0x1b4] sm:$0xf]
    %v2052 = vld [vmem:[#allocation4 + $0x1b8] sm:$0xf]
    %v2053 = vld [vmem:[#allocation4 + $0x1bc] sm:$0xf]
    %v2054 = vld [vmem:[#allocation4 + $0x1c0] sm:$0xf]
    %v2055 = vld [vmem:[#allocation4 + $0x1c4] sm:$0xf]
    %v2056 = vld [vmem:[#allocation4 + $0x1c8] sm:$0xf]
    %v2057 = vld [vmem:[#allocation4 + $0x1cc] sm:$0xf]
    %v2058 = vpack.c.bf16 %v2045, %v2044
    %v2059 = vld [vmem:[#allocation6 + $0x80] sm:$0x1]
    %v2060 = vlaneseq
    %v2061 = vshrl.u32 %v2060, 7
    %v2062 = vsub.s32 0, %v2061
    %v2063 = vrot.slane %v2059, %v2062
    %v2076 = vunpack.c.l.b16 %v2046
    %v2077 = vunpack.c.l.b16 %v2047
    %v2078 = vunpack.c.l.b16 %v2048
    %v2079 = vunpack.c.l.b16 %v2049
    %v2080 = vunpack.c.l.b16 %v2050
    %v2081 = vunpack.c.l.b16 %v2051
    %v2082 = vunpack.c.l.b16 %v2052
    %v2083 = vunpack.c.l.b16 %v2053
    %v2084 = vunpack.c.l.b16 %v2054
    %v2085 = vunpack.c.l.b16 %v2055
    %v2086 = vunpack.c.l.b16 %v2056
    %v2087 = vunpack.c.l.b16 %v2057
    %v2088 = vpack.c.b16 %v2077, %v2076
    %v2089 = vpack.c.b16 %v2079, %v2078
    %v2090 = vpack.c.b16 %v2081, %v2080
    %v2091 = vpack.c.b16 %v2083, %v2082
    %v2092 = vpack.c.b16 %v2085, %v2084
    %v2093 = vpack.c.b16 %v2087, %v2086
    %v2101 = vsel %vm693, %v2058, 0
    %2103 = vmatprep.subr.bf16.mxu0 0
    %2104 = vmatpush1.bf16.msra.mxu0 %v2088
    %2105 = vmatprep.subr.bf16.mxu0 0
    %2106 = vmatpush1.bf16.msra.mxu0 %v2089
    %2107 = vmatprep.subr.bf16.mxu0 0
    %2108 = vmatpush1.bf16.msra.mxu0 %v2090
    %2109 = vmatprep.subr.bf16.mxu0 0
    %2110 = vmatpush1.bf16.msra.mxu0 %v2091
    %2111 = vmatprep.subr.bf16.mxu0 0
    %2112 = vmatpush1.bf16.msra.mxu0 %v2092
    %2113 = vmatprep.subr.bf16.mxu0 0
    %2114 = vmatpush1.bf16.msra.mxu0 %v2093
    %2115 = vmatprep.subr.bf16.mxu0 0
    %2116 = vmatpush1.bf16.msra.mxu0 0
    %2117 = vmatprep.subr.bf16.mxu0 0
    %2118 = vmatpush1.bf16.msra.mxu0 0
    %2119 = vmatprep.subr.bf16.mxu0 0
    %2120 = vmatpush1.bf16.msra.mxu0 0
    %2121 = vmatprep.subr.bf16.mxu0 0
    %2122 = vmatpush1.bf16.msra.mxu0 0
    %2123 = vmatprep.subr.bf16.mxu0 0
    %2124 = vmatpush1.bf16.msra.mxu0 0
    %2125 = vmatprep.subr.bf16.mxu0 0
    %2126 = vmatpush1.bf16.msra.mxu0 0
    %2127 = vmatprep.subr.bf16.mxu0 0
    %2128 = vmatpush1.bf16.msra.mxu0 0
    %2129 = vmatprep.subr.bf16.mxu0 0
    %2130 = vmatpush1.bf16.msra.mxu0 0
    %2131 = vmatprep.subr.bf16.mxu0 0
    %2132 = vmatpush1.bf16.msra.mxu0 0
    %2133 = vmatprep.subr.bf16.mxu0 0
    %2134 = vmatpush1.bf16.msra.mxu0 0
    %2135 = vmatprep.mubr.bf16.mxu0 0
    %2136 = vmatmul.mubr.bf16.gmra.mrb[0].mxu0 %v2101
    %v2137 = vpop.f32.mrb[0].mxu0
    %v2138 = vadd.f32 %v2063, %v2137
    %v2139 = vpop.f32.mrb[0].mxu0
    %v2140 = vpop.f32.mrb[0].mxu0
    %v2141 = vadd.f32 %v2063, %v2140
    %v2142 = vpop.f32.mrb[0].mxu0
    %2143 = vdwg.mxu0
    %v2144 = vmax.f32 %v2138, 0.0
    %v2145 = vmax.f32 %v2141, 0.0
    %v2146 = vld [vmem:[#allocation6 + $0x88] sm:$0x1]
    %v2147 = vld [vmem:[#allocation6 + $0x90] sm:$0x1]
    %v2148 = vmul.f32 %v2144, %v1986
    %v2149 = vmul.f32 %v2145, %v1986
    %v2150 = vsel %vm690, %v2148, 0.0
    %2151 = vadd.xlane.f32.xlu0 %v2150
    %v2152 = vpop.xlane.xlu0 %2151
    %v2153 = vsel %vm690, %v2149, 0.0
    %2154 = vadd.xlane.f32.xlu0 %v2153
    %v2155 = vpop.xlane.xlu0 %2154
    %v2156 = vmul.f32 %v2152, %v1986
    %v2157 = vmul.f32 %v2155, %v1986
    %v2158 = vmul.f32 %v2144, %v1987
    %v2159 = vmul.f32 %v2145, %v1987
    %v2160 = vsel %vm690, %v2158, 0.0
    %2161 = vadd.xlane.f32.xlu0 %v2160
    %v2162 = vpop.xlane.xlu0 %2161
    %v2163 = vsel %vm690, %v2159, 0.0
    %2164 = vadd.xlane.f32.xlu0 %v2163
    %v2165 = vpop.xlane.xlu0 %2164
    %v2166 = vmul.f32 %v2162, %v1987
    %v2167 = vmul.f32 %v2165, %v1987
    %v2168 = vadd.f32 %v2156, %v2166
    %v2169 = vadd.f32 %v2157, %v2167
    %v2170 = vmul.f32 %v2168, 0.03125
    %v2171 = vmul.f32 %v2169, 0.03125
    %v2172 = vsub.f32 %v2144, %v2170
    %v2173 = vsub.f32 %v2145, %v2171
    %v2174 = vmul.f32 %v2172, %v2172
    %v2175 = vmul.f32 %v2173, %v2173
    %v2176 = vmul.f32 %v2174, %v1986
    %v2177 = vmul.f32 %v2175, %v1986
    %v2178 = vsel %vm690, %v2176, 0.0
    %2179 = vadd.xlane.f32.xlu0 %v2178
    %v2180 = vpop.xlane.xlu0 %2179
    %v2181 = vsel %vm690, %v2177, 0.0
    %2182 = vadd.xlane.f32.xlu0 %v2181
    %v2183 = vpop.xlane.xlu0 %2182
    %v2184 = vmul.f32 %v2180, %v1986
    %v2185 = vmul.f32 %v2183, %v1986
    %v2186 = vmul.f32 %v2174, %v1987
    %v2187 = vmul.f32 %v2175, %v1987
    %v2188 = vsel %vm690, %v2186, 0.0
    %2189 = vadd.xlane.f32.xlu0 %v2188
    %v2190 = vpop.xlane.xlu0 %2189
    %v2191 = vsel %vm690, %v2187, 0.0
    %2192 = vadd.xlane.f32.xlu0 %v2191
    %v2193 = vpop.xlane.xlu0 %2192
    %v2194 = vmul.f32 %v2190, %v1987
    %v2195 = vmul.f32 %v2193, %v1987
    %v2196 = vadd.f32 %v2184, %v2194
    %v2197 = vadd.f32 %v2185, %v2195
    %v2198 = vmul.f32 %v2196, 0.03125
    %v2199 = vmul.f32 %v2197, 0.03125
    %v2200 = vadd.f32 %v2198, 1e-05
    %v2201 = vadd.f32 %v2199, 1e-05
    %v2202 = vrsqrt.pop %v2200
    %v2203 = vrsqrt.pop %v2201
    %v2204 = vmul.f32 %v2172, %v2202
    %v2205 = vmul.f32 %v2173, %v2203
    %v2206 = vlaneseq
    %v2207 = vshrl.u32 %v2206, 7
    %v2208 = vsub.s32 0, %v2207
    %v2209 = vrot.slane %v2146, %v2208
    %v2210 = vmul.f32 %v2204, %v2209
    %v2211 = vmul.f32 %v2205, %v2209
    %v2212 = vlaneseq
    %v2213 = vshrl.u32 %v2212, 7
    %v2214 = vsub.s32 0, %v2213
    %v2215 = vrot.slane %v2147, %v2214
    %v2216 = vadd.f32 %v2210, %v2215
    %v2217 = vadd.f32 %v2211, %v2215
    %v2218 = vrot.slane %v2216, 7
    %v2219 = vrot.slane %v2217, 7
    %v2220 = vsel %vm562, %v2218, %v2219
    %v2221 = vsel %vm562, %v2219, %v2218
    %v2222 = vmul.f32 %v2221, %v1994
    %v2223 = vmul.f32 %v2220, %v1998
    %v2224 = vmul.f32 %v2216, %v2004
    %v2225 = vmul.f32 %v2217, %v2008
    %v2226 = vrot.slane %v2216, 1
    %v2227 = vrot.slane %v2217, 1
    %v2228 = vsel %vm587, %v2226, %v2227
    %v2229 = vsel %vm587, %v2227, %v2226
    %v2230 = vmul.f32 %v2228, %v2018
    %v2231 = vmul.f32 %v2229, %v2022
    %2234 = vrot.lane.b32.xlu0 %v2224, 64
    %v2235 = vpop.permute.xlu0 %2234
    %2236 = vrot.lane.b32.xlu0 %v2225, 64
    %v2237 = vpop.permute.xlu0 %2236
    %v2240 = vsel %vm690, %v2222, %v2235
    %v2241 = vsel %vm690, %v2223, %v2237
    %v2242 = vld [vmem:[#allocation4 + $0x1d0] sm:$0xf]
    %v2243 = vld [vmem:[#allocation4 + $0x1d4] sm:$0xf]
    %v2244 = vld [vmem:[#allocation4 + $0x1d8] sm:$0xf]
    %v2245 = vld [vmem:[#allocation4 + $0x1dc] sm:$0xf]
    %v2246 = vld [vmem:[#allocation4 + $0x1e0] sm:$0xf]
    %v2247 = vld [vmem:[#allocation4 + $0x1e4] sm:$0xf]
    %v2248 = vld [vmem:[#allocation4 + $0x1e8] sm:$0xf]
    %v2249 = vld [vmem:[#allocation4 + $0x1ec] sm:$0xf]
    %v2250 = vld [vmem:[#allocation4 + $0x1f0] sm:$0xf]
    %v2251 = vld [vmem:[#allocation4 + $0x1f4] sm:$0xf]
    %v2252 = vld [vmem:[#allocation4 + $0x1f8] sm:$0xf]
    %v2253 = vld [vmem:[#allocation4 + $0x1fc] sm:$0xf]
    %v2254 = vld [vmem:[#allocation4 + $0x200] sm:$0xf]
    %v2255 = vld [vmem:[#allocation4 + $0x204] sm:$0xf]
    %v2256 = vld [vmem:[#allocation4 + $0x208] sm:$0xf]
    %v2257 = vld [vmem:[#allocation4 + $0x20c] sm:$0xf]
    %v2258 = vld [vmem:[#allocation4 + $0x210] sm:$0xf]
    %v2259 = vld [vmem:[#allocation4 + $0x214] sm:$0xf]
    %v2260 = vld [vmem:[#allocation4 + $0x218] sm:$0xf]
    %v2261 = vld [vmem:[#allocation4 + $0x21c] sm:$0xf]
    %v2262 = vld [vmem:[#allocation4 + $0x220] sm:$0xf]
    %v2263 = vld [vmem:[#allocation4 + $0x224] sm:$0xf]
    %v2264 = vld [vmem:[#allocation4 + $0x228] sm:$0xf]
    %v2265 = vld [vmem:[#allocation4 + $0x22c] sm:$0xf]
    %v2266 = vpack.c.bf16 %v2241, %v2240
    %v2267 = vpack.c.bf16 %v2231, %v2230
    %v2268 = vld [vmem:[#allocation6 + $0x98] sm:$0x1]
    %v2269 = vlaneseq
    %v2270 = vshrl.u32 %v2269, 7
    %v2271 = vsub.s32 0, %v2270
    %v2272 = vrot.slane %v2268, %v2271
    %v2297 = vunpack.c.l.b16 %v2242
    %v2298 = vunpack.c.l.b16 %v2243
    %v2299 = vunpack.c.l.b16 %v2244
    %v2300 = vunpack.c.l.b16 %v2245
    %v2301 = vunpack.c.l.b16 %v2246
    %v2302 = vunpack.c.l.b16 %v2247
    %v2303 = vunpack.c.l.b16 %v2248
    %v2304 = vunpack.c.l.b16 %v2249
    %v2305 = vunpack.c.l.b16 %v2250
    %v2306 = vunpack.c.l.b16 %v2251
    %v2307 = vunpack.c.l.b16 %v2252
    %v2308 = vunpack.c.l.b16 %v2253
    %v2309 = vunpack.c.l.b16 %v2254
    %v2310 = vunpack.c.l.b16 %v2255
    %v2311 = vunpack.c.l.b16 %v2256
    %v2312 = vunpack.c.l.b16 %v2257
    %v2313 = vunpack.c.l.b16 %v2258
    %v2314 = vunpack.c.l.b16 %v2259
    %v2315 = vunpack.c.l.b16 %v2260
    %v2316 = vunpack.c.l.b16 %v2261
    %v2317 = vunpack.c.l.b16 %v2262
    %v2318 = vunpack.c.l.b16 %v2263
    %v2319 = vunpack.c.l.b16 %v2264
    %v2320 = vunpack.c.l.b16 %v2265
    %v2321 = vpack.c.b16 %v2298, %v2297
    %v2322 = vpack.c.b16 %v2300, %v2299
    %v2323 = vpack.c.b16 %v2302, %v2301
    %v2324 = vpack.c.b16 %v2304, %v2303
    %v2325 = vpack.c.b16 %v2306, %v2305
    %v2326 = vpack.c.b16 %v2308, %v2307
    %v2327 = vpack.c.b16 %v2310, %v2309
    %v2328 = vpack.c.b16 %v2312, %v2311
    %v2329 = vpack.c.b16 %v2314, %v2313
    %v2330 = vpack.c.b16 %v2316, %v2315
    %v2331 = vpack.c.b16 %v2318, %v2317
    %v2332 = vpack.c.b16 %v2320, %v2319
    %v2346 = vsel %vm690, %v2267, 0
    %2348 = vmatprep.subr.bf16.mxu0 0
    %2349 = vmatpush1.bf16.msra.mxu0 %v2321
    %2350 = vmatprep.subr.bf16.mxu0 0
    %2351 = vmatpush1.bf16.msra.mxu0 %v2322
    %2352 = vmatprep.subr.bf16.mxu0 0
    %2353 = vmatpush1.bf16.msra.mxu0 %v2323
    %2354 = vmatprep.subr.bf16.mxu0 0
    %2355 = vmatpush1.bf16.msra.mxu0 %v2324
    %2356 = vmatprep.subr.bf16.mxu0 0
    %2357 = vmatpush1.bf16.msra.mxu0 %v2325
    %2358 = vmatprep.subr.bf16.mxu0 0
    %2359 = vmatpush1.bf16.msra.mxu0 %v2326
    %2360 = vmatprep.subr.bf16.mxu0 0
    %2361 = vmatpush1.bf16.msra.mxu0 %v2327
    %2362 = vmatprep.subr.bf16.mxu0 0
    %2363 = vmatpush1.bf16.msra.mxu0 %v2328
    %2364 = vmatprep.subr.bf16.mxu0 0
    %2365 = vmatpush1.bf16.msra.mxu0 %v2329
    %2366 = vmatprep.subr.bf16.mxu0 0
    %2367 = vmatpush1.bf16.msra.mxu0 %v2330
    %2368 = vmatprep.subr.bf16.mxu0 0
    %2369 = vmatpush1.bf16.msra.mxu0 %v2331
    %2370 = vmatprep.subr.bf16.mxu0 0
    %2371 = vmatpush1.bf16.msra.mxu0 %v2332
    %2372 = vmatprep.subr.bf16.mxu0 0
    %2373 = vmatpush1.bf16.msra.mxu0 0
    %2374 = vmatprep.subr.bf16.mxu0 0
    %2375 = vmatpush1.bf16.msra.mxu0 0
    %2376 = vmatprep.subr.bf16.mxu0 0
    %2377 = vmatpush1.bf16.msra.mxu0 0
    %2378 = vmatprep.subr.bf16.mxu0 0
    %2379 = vmatpush1.bf16.msra.mxu0 0
    %2380 = vmatprep.mubr.bf16.mxu0 %v2346
    %2381 = vmatmul.mubr.bf16.gmra.mrb[0].mxu0 %v2266
    %v2382 = vpop.f32.mrb[0].mxu0
    %v2383 = vadd.f32 %v2272, %v2382
    %v2384 = vpop.f32.mrb[0].mxu0
    %v2385 = vpop.f32.mrb[0].mxu0
    %v2386 = vadd.f32 %v2272, %v2385
    %v2387 = vpop.f32.mrb[0].mxu0
    %2388 = vdwg.mxu0
    %v2389 = vmax.f32 %v2383, 0.0
    %v2390 = vmax.f32 %v2386, 0.0
    %v2391 = vld [vmem:[#allocation6 + $0xa0] sm:$0x1]
    %v2392 = vld [vmem:[#allocation6 + $0xa8] sm:$0x1]
    %v2393 = vmul.f32 %v2389, %v1986
    %v2394 = vmul.f32 %v2390, %v1986
    %v2395 = vsel %vm690, %v2393, 0.0
    %2396 = vadd.xlane.f32.xlu0 %v2395
    %v2397 = vpop.xlane.xlu0 %2396
    %v2398 = vsel %vm690, %v2394, 0.0
    %2399 = vadd.xlane.f32.xlu0 %v2398
    %v2400 = vpop.xlane.xlu0 %2399
    %v2401 = vmul.f32 %v2397, %v1986
    %v2402 = vmul.f32 %v2400, %v1986
    %v2403 = vmul.f32 %v2389, %v1987
    %v2404 = vmul.f32 %v2390, %v1987
    %v2405 = vsel %vm690, %v2403, 0.0
    %2406 = vadd.xlane.f32.xlu0 %v2405
    %v2407 = vpop.xlane.xlu0 %2406
    %v2408 = vsel %vm690, %v2404, 0.0
    %2409 = vadd.xlane.f32.xlu0 %v2408
    %v2410 = vpop.xlane.xlu0 %2409
    %v2411 = vmul.f32 %v2407, %v1987
    %v2412 = vmul.f32 %v2410, %v1987
    %v2413 = vadd.f32 %v2401, %v2411
    %v2414 = vadd.f32 %v2402, %v2412
    %v2415 = vmul.f32 %v2413, 0.03125
    %v2416 = vmul.f32 %v2414, 0.03125
    %v2417 = vsub.f32 %v2389, %v2415
    %v2418 = vsub.f32 %v2390, %v2416
    %v2419 = vmul.f32 %v2417, %v2417
    %v2420 = vmul.f32 %v2418, %v2418
    %v2421 = vmul.f32 %v2419, %v1986
    %v2422 = vmul.f32 %v2420, %v1986
    %v2423 = vsel %vm690, %v2421, 0.0
    %2424 = vadd.xlane.f32.xlu0 %v2423
    %v2425 = vpop.xlane.xlu0 %2424
    %v2426 = vsel %vm690, %v2422, 0.0
    %2427 = vadd.xlane.f32.xlu0 %v2426
    %v2428 = vpop.xlane.xlu0 %2427
    %v2429 = vmul.f32 %v2425, %v1986
    %v2430 = vmul.f32 %v2428, %v1986
    %v2431 = vmul.f32 %v2419, %v1987
    %v2432 = vmul.f32 %v2420, %v1987
    %v2433 = vsel %vm690, %v2431, 0.0
    %2434 = vadd.xlane.f32.xlu0 %v2433
    %v2435 = vpop.xlane.xlu0 %2434
    %v2436 = vsel %vm690, %v2432, 0.0
    %2437 = vadd.xlane.f32.xlu0 %v2436
    %v2438 = vpop.xlane.xlu0 %2437
    %v2439 = vmul.f32 %v2435, %v1987
    %v2440 = vmul.f32 %v2438, %v1987
    %v2441 = vadd.f32 %v2429, %v2439
    %v2442 = vadd.f32 %v2430, %v2440
    %v2443 = vmul.f32 %v2441, 0.03125
    %v2444 = vmul.f32 %v2442, 0.03125
    %v2445 = vadd.f32 %v2443, 1e-05
    %v2446 = vadd.f32 %v2444, 1e-05
    %v2447 = vrsqrt.pop %v2445
    %v2448 = vrsqrt.pop %v2446
    %v2449 = vmul.f32 %v2417, %v2447
    %v2450 = vmul.f32 %v2418, %v2448
    %v2451 = vlaneseq
    %v2452 = vshrl.u32 %v2451, 7
    %v2453 = vsub.s32 0, %v2452
    %v2454 = vrot.slane %v2391, %v2453
    %v2455 = vmul.f32 %v2449, %v2454
    %v2456 = vmul.f32 %v2450, %v2454
    %v2457 = vlaneseq
    %v2458 = vshrl.u32 %v2457, 7
    %v2459 = vsub.s32 0, %v2458
    %v2460 = vrot.slane %v2392, %v2459
    %v2461 = vadd.f32 %v2455, %v2460
    %v2462 = vadd.f32 %v2456, %v2460
    %v2463 = vld [vmem:[#allocation6 + $0xb0] sm:$0x1]
    %v2464 = vlaneseq
    %v2465 = vshrl.u32 %v2464, 7
    %v2466 = vsub.s32 0, %v2465
    %v2467 = vrot.slane %v2463, %v2466
    %v2468 = vmul.f32 %v2461, %v2467
    %v2469 = vmul.f32 %v2462, %v2467
    %v2470 = vmul.f32 %v2468, %v1986
    %v2471 = vmul.f32 %v2469, %v1986
    %v2472 = vsel %vm690, %v2470, 0.0
    %2473 = vadd.xlane.f32.xlu0 %v2472
    %v2474 = vpop.xlane.xlu0 %2473
    %v2475 = vsel %vm690, %v2471, 0.0
    %2476 = vadd.xlane.f32.xlu0 %v2475
    %v2477 = vpop.xlane.xlu0 %2476
    %v2478 = vld [vmem:[#allocation6 + $0xb8] sm:$0x1]
    %v2479 = vlaneseq
    %v2480 = vshrl.u32 %v2479, 7
    %v2481 = vsub.s32 0, %v2480
    %v2482 = vrot.slane %v2478, %v2481
    %v2483 = vadd.f32 %v2474, %v2482
    %v2484 = vadd.f32 %v2477, %v2482
    %2485 = vrot.lane.b32.xlu0 %v56, 48
    %v2486 = vpop.permute.xlu0 %2485
    %2487 = vrot.lane.b32.xlu0 %v57, 48
    %v2488 = vpop.permute.xlu0 %2487
    %v2491 = vmul.f32 %v2483, %v2486
    %v2492 = vmul.f32 %v2484, %v2488
    %v2493 = vmul.f32 %v2468, %v1987
    %v2494 = vmul.f32 %v2469, %v1987
    %v2495 = vsel %vm690, %v2493, 0.0
    %2496 = vadd.xlane.f32.xlu0 %v2495
    %v2497 = vpop.xlane.xlu0 %2496
    %v2498 = vsel %vm690, %v2494, 0.0
    %2499 = vadd.xlane.f32.xlu0 %v2498
    %v2500 = vpop.xlane.xlu0 %2499
    %v2501 = vld [vmem:[#allocation6 + $0xc0] sm:$0x1]
    %v2502 = vlaneseq
    %v2503 = vshrl.u32 %v2502, 7
    %v2504 = vsub.s32 0, %v2503
    %v2505 = vrot.slane %v2501, %v2504
    %v2506 = vadd.f32 %v2497, %v2505
    %v2507 = vadd.f32 %v2500, %v2505
    %v2508 = vmul.f32 %v2506, %v2486
    %v2509 = vmul.f32 %v2507, %v2488
    %v2510 = vld [vmem:[#allocation6 + $0x108] sm:$0x1]
    %2512 = vset.pattern.permute.xlu0 0
    %2513 = vperm.xlu0 %2512, %v2508
    %v2514 = vpop.permute.xlu0 %2513
    %2517 = vset.pattern.permute.xlu0 0
    %2518 = vperm.xlu0 %2517, %v2509
    %v2519 = vpop.permute.xlu0 %2518
    %v2521 = vlaneseq
    %v2522 = vshrl.u32 %v2521, 7
    %v2523 = vsub.s32 0, %v2522
    %v2524 = vrot.slane %v2510, %v2523
    %vm2525 = vcmp.gt.f32.partialorder %v2514, %v2524
    %vm2526 = vcmp.gt.f32.partialorder %v2519, %v2524
    %v2527 = vsel %vm2525, 1, 0
    %v2528 = vsel %vm2526, 1, 0
    %v2529 = vcvt.s32.f32 %v2527
    %v2530 = vcvt.s32.f32 %v2528
    %vm2531 = vcmask 121856
    %v2532 = vsel %vm2531, %v2529, 0.0
    %2533 = vadd.xlane.f32.xlu0 %v2532
    %v2534 = vpop.xlane.xlu0 %2533
    %v2535 = vsel %vm2531, %v2530, 0.0
    %2536 = vadd.xlane.f32.xlu0 %v2535
    %v2537 = vpop.xlane.xlu0 %2536
    %v2538 = vcvt.s32.f32 %v1983
    %vm2539 = vcmp.eq.f32.partialorder %v2538, %v2534
    %vm2540 = vcmp.eq.f32.partialorder %v2538, %v2537
    %v2541 = vld [vmem:[#allocation4 + $0x290] sm:$0xf]
    %v2542 = vld [vmem:[#allocation4 + $0x294] sm:$0xf]
    %v2543 = vsel %vm2539, 1, 0
    %v2544 = vsel %vm2540, 1, 0
    %v2545 = vcvt.s32.f32 %v2543
    %v2546 = vcvt.s32.f32 %v2544
    %v2547 = vpack.c.bf16 %v2546, %v2545
    %v2550 = vunpack.c.l.b16 %v2541
    %v2551 = vunpack.c.l.b16 %v2542
    %v2552 = vpack.c.b16 %v2551, %v2550
    %v2555 = vsel %vm129, %v2547, 0
    %2557 = vmatprep.subr.bf16.mxu0 0
    %2558 = vmatpush1.bf16.msra.mxu0 %v2552
    %2559 = vmatprep.subr.bf16.mxu0 0
    %2560 = vmatpush1.bf16.msra.mxu0 0
    %2561 = vmatprep.subr.bf16.mxu0 0
    %2562 = vmatpush1.bf16.msra.mxu0 0
    %2563 = vmatprep.subr.bf16.mxu0 0
    %2564 = vmatpush1.bf16.msra.mxu0 0
    %2565 = vmatprep.subr.bf16.mxu0 0
    %2566 = vmatpush1.bf16.msra.mxu0 0
    %2567 = vmatprep.subr.bf16.mxu0 0
    %2568 = vmatpush1.bf16.msra.mxu0 0
    %2569 = vmatprep.subr.bf16.mxu0 0
    %2570 = vmatpush1.bf16.msra.mxu0 0
    %2571 = vmatprep.subr.bf16.mxu0 0
    %2572 = vmatpush1.bf16.msra.mxu0 0
    %2573 = vmatprep.subr.bf16.mxu0 0
    %2574 = vmatpush1.bf16.msra.mxu0 0
    %2575 = vmatprep.subr.bf16.mxu0 0
    %2576 = vmatpush1.bf16.msra.mxu0 0
    %2577 = vmatprep.subr.bf16.mxu0 0
    %2578 = vmatpush1.bf16.msra.mxu0 0
    %2579 = vmatprep.subr.bf16.mxu0 0
    %2580 = vmatpush1.bf16.msra.mxu0 0
    %2581 = vmatprep.subr.bf16.mxu0 0
    %2582 = vmatpush1.bf16.msra.mxu0 0
    %2583 = vmatprep.subr.bf16.mxu0 0
    %2584 = vmatpush1.bf16.msra.mxu0 0
    %2585 = vmatprep.subr.bf16.mxu0 0
    %2586 = vmatpush1.bf16.msra.mxu0 0
    %2587 = vmatprep.subr.bf16.mxu0 0
    %2588 = vmatpush1.bf16.msra.mxu0 0
    %2589 = vmatprep.mubr.bf16.mxu0 0
    %2590 = vmatmul.mubr.bf16.gmra.mrb[0].mxu0 %v2555
    %v2591 = vpop.f32.mrb[0].mxu0
    %v2592 = vadd.f32 0.0, %v2591
    %v2593 = vpop.f32.mrb[0].mxu0
    %v2594 = vpop.f32.mrb[0].mxu0
    %v2595 = vadd.f32 0.0, %v2594
    %v2596 = vpop.f32.mrb[0].mxu0
    %2597 = vdwg.mxu0
    %v2598 = vadd.f32 %v1980, %v2592
    %v2599 = vadd.f32 %v1981, %v2595
    %v2600 = vrot.slane %v2598, 7
    %v2601 = vrot.slane %v2599, 7
    %v2602 = vsel %vm562, %v2600, %v2601
    %v2603 = vsel %vm562, %v2601, %v2600
    %v2604 = vmul.f32 %v2603, %v1994
    %v2605 = vmul.f32 %v2602, %v1998
    %v2606 = vmul.f32 %v2598, %v2004
    %v2607 = vmul.f32 %v2599, %v2008
    %v2608 = vrot.slane %v2598, 1
    %v2609 = vrot.slane %v2599, 1
    %v2610 = vsel %vm587, %v2608, %v2609
    %v2611 = vsel %vm587, %v2609, %v2608
    %v2612 = vmul.f32 %v2610, %v2018
    %v2613 = vmul.f32 %v2611, %v2022
    %2616 = vrot.lane.b32.xlu0 %v2606, 32
    %v2617 = vpop.permute.xlu0 %2616
    %2618 = vrot.lane.b32.xlu0 %v2607, 32
    %v2619 = vpop.permute.xlu0 %2618
    %2624 = vrot.lane.b32.xlu0 %v2612, 64
    %v2625 = vpop.permute.xlu0 %2624
    %2626 = vrot.lane.b32.xlu0 %v2613, 64
    %v2627 = vpop.permute.xlu0 %2626
    %v2630 = vsel %vm80, %v2604, %v2617
    %v2631 = vsel %vm80, %v2605, %v2619
    %v2632 = vsel %vm690, %v2630, %v2625
    %v2633 = vsel %vm690, %v2631, %v2627
    %v2634 = vld [vmem:[#allocation4 + $0x230] sm:$0xf]
    %v2635 = vld [vmem:[#allocation4 + $0x234] sm:$0xf]
    %v2636 = vld [vmem:[#allocation4 + $0x238] sm:$0xf]
    %v2637 = vld [vmem:[#allocation4 + $0x23c] sm:$0xf]
    %v2638 = vld [vmem:[#allocation4 + $0x240] sm:$0xf]
    %v2639 = vld [vmem:[#allocation4 + $0x244] sm:$0xf]
    %v2640 = vld [vmem:[#allocation4 + $0x248] sm:$0xf]
    %v2641 = vld [vmem:[#allocation4 + $0x24c] sm:$0xf]
    %v2642 = vld [vmem:[#allocation4 + $0x250] sm:$0xf]
    %v2643 = vld [vmem:[#allocation4 + $0x254] sm:$0xf]
    %v2644 = vld [vmem:[#allocation4 + $0x258] sm:$0xf]
    %v2645 = vld [vmem:[#allocation4 + $0x25c] sm:$0xf]
    %v2646 = vpack.c.bf16 %v2633, %v2632
    %v2647 = vld [vmem:[#allocation6 + $0xc8] sm:$0x1]
    %v2648 = vlaneseq
    %v2649 = vshrl.u32 %v2648, 7
    %v2650 = vsub.s32 0, %v2649
    %v2651 = vrot.slane %v2647, %v2650
    %v2664 = vunpack.c.l.b16 %v2634
    %v2665 = vunpack.c.l.b16 %v2635
    %v2666 = vunpack.c.l.b16 %v2636
    %v2667 = vunpack.c.l.b16 %v2637
    %v2668 = vunpack.c.l.b16 %v2638
    %v2669 = vunpack.c.l.b16 %v2639
    %v2670 = vunpack.c.l.b16 %v2640
    %v2671 = vunpack.c.l.b16 %v2641
    %v2672 = vunpack.c.l.b16 %v2642
    %v2673 = vunpack.c.l.b16 %v2643
    %v2674 = vunpack.c.l.b16 %v2644
    %v2675 = vunpack.c.l.b16 %v2645
    %v2676 = vpack.c.b16 %v2665, %v2664
    %v2677 = vpack.c.b16 %v2667, %v2666
    %v2678 = vpack.c.b16 %v2669, %v2668
    %v2679 = vpack.c.b16 %v2671, %v2670
    %v2680 = vpack.c.b16 %v2673, %v2672
    %v2681 = vpack.c.b16 %v2675, %v2674
    %v2689 = vsel %vm693, %v2646, 0
    %2691 = vmatprep.subr.bf16.mxu0 0
    %2692 = vmatpush1.bf16.msra.mxu0 %v2676
    %2693 = vmatprep.subr.bf16.mxu0 0
    %2694 = vmatpush1.bf16.msra.mxu0 %v2677
    %2695 = vmatprep.subr.bf16.mxu0 0
    %2696 = vmatpush1.bf16.msra.mxu0 %v2678
    %2697 = vmatprep.subr.bf16.mxu0 0
    %2698 = vmatpush1.bf16.msra.mxu0 %v2679
    %2699 = vmatprep.subr.bf16.mxu0 0
    %2700 = vmatpush1.bf16.msra.mxu0 %v2680
    %2701 = vmatprep.subr.bf16.mxu0 0
    %2702 = vmatpush1.bf16.msra.mxu0 %v2681
    %2703 = vmatprep.subr.bf16.mxu0 0
    %2704 = vmatpush1.bf16.msra.mxu0 0
    %2705 = vmatprep.subr.bf16.mxu0 0
    %2706 = vmatpush1.bf16.msra.mxu0 0
    %2707 = vmatprep.subr.bf16.mxu0 0
    %2708 = vmatpush1.bf16.msra.mxu0 0
    %2709 = vmatprep.subr.bf16.mxu0 0
    %2710 = vmatpush1.bf16.msra.mxu0 0
    %2711 = vmatprep.subr.bf16.mxu0 0
    %2712 = vmatpush1.bf16.msra.mxu0 0
    %2713 = vmatprep.subr.bf16.mxu0 0
    %2714 = vmatpush1.bf16.msra.mxu0 0
    %2715 = vmatprep.subr.bf16.mxu0 0
    %2716 = vmatpush1.bf16.msra.mxu0 0
    %2717 = vmatprep.subr.bf16.mxu0 0
    %2718 = vmatpush1.bf16.msra.mxu0 0
    %2719 = vmatprep.subr.bf16.mxu0 0
    %2720 = vmatpush1.bf16.msra.mxu0 0
    %2721 = vmatprep.subr.bf16.mxu0 0
    %2722 = vmatpush1.bf16.msra.mxu0 0
    %2723 = vmatprep.mubr.bf16.mxu0 0
    %2724 = vmatmul.mubr.bf16.gmra.mrb[0].mxu0 %v2689
    %v2725 = vpop.f32.mrb[0].mxu0
    %v2726 = vadd.f32 %v2651, %v2725
    %v2727 = vpop.f32.mrb[0].mxu0
    %v2728 = vpop.f32.mrb[0].mxu0
    %v2729 = vadd.f32 %v2651, %v2728
    %v2730 = vpop.f32.mrb[0].mxu0
    %2731 = vdwg.mxu0
    %v2732 = vmax.f32 %v2726, 0.0
    %v2733 = vmax.f32 %v2729, 0.0
    %v2734 = vld [vmem:[#allocation6 + $0xd0] sm:$0x1]
    %v2735 = vld [vmem:[#allocation6 + $0xd8] sm:$0x1]
    %v2736 = vsel %vm80, %v2732, 0.0
    %2737 = vadd.xlane.f32.xlu0 %v2736
    %v2738 = vpop.xlane.xlu0 %2737
    %v2739 = vsel %vm80, %v2733, 0.0
    %2740 = vadd.xlane.f32.xlu0 %v2739
    %v2741 = vpop.xlane.xlu0 %2740
    %v2742 = vmul.f32 %v2738, %v470
    %v2743 = vmul.f32 %v2741, %v470
    %v2744 = vsub.f32 %v2732, %v2742
    %v2745 = vsub.f32 %v2733, %v2743
    %v2746 = vmul.f32 %v2744, %v2744
    %v2747 = vmul.f32 %v2745, %v2745
    %v2748 = vsel %vm80, %v2746, 0.0
    %2749 = vadd.xlane.f32.xlu0 %v2748
    %v2750 = vpop.xlane.xlu0 %2749
    %v2751 = vsel %vm80, %v2747, 0.0
    %2752 = vadd.xlane.f32.xlu0 %v2751
    %v2753 = vpop.xlane.xlu0 %2752
    %v2754 = vmul.f32 %v2750, %v470
    %v2755 = vmul.f32 %v2753, %v470
    %v2756 = vadd.f32 %v2754, 1e-05
    %v2757 = vadd.f32 %v2755, 1e-05
    %v2758 = vrsqrt.pop %v2756
    %v2759 = vrsqrt.pop %v2757
    %v2760 = vmul.f32 %v2744, %v2758
    %v2761 = vmul.f32 %v2745, %v2759
    %v2762 = vlaneseq
    %v2763 = vshrl.u32 %v2762, 7
    %v2764 = vsub.s32 0, %v2763
    %v2765 = vrot.slane %v2734, %v2764
    %v2766 = vmul.f32 %v2760, %v2765
    %v2767 = vmul.f32 %v2761, %v2765
    %v2768 = vlaneseq
    %v2769 = vshrl.u32 %v2768, 7
    %v2770 = vsub.s32 0, %v2769
    %v2771 = vrot.slane %v2735, %v2770
    %v2772 = vadd.f32 %v2766, %v2771
    %v2773 = vadd.f32 %v2767, %v2771
    %v2774 = vrot.slane %v2772, 7
    %v2775 = vrot.slane %v2773, 7
    %v2776 = vsel %vm562, %v2774, %v2775
    %v2777 = vsel %vm562, %v2775, %v2774
    %v2778 = vmul.f32 %v2777, %v1994
    %v2779 = vmul.f32 %v2776, %v1998
    %v2780 = vmul.f32 %v2772, %v2004
    %v2781 = vmul.f32 %v2773, %v2008
    %v2782 = vrot.slane %v2772, 1
    %v2783 = vrot.slane %v2773, 1
    %v2784 = vsel %vm587, %v2782, %v2783
    %v2785 = vsel %vm587, %v2783, %v2782
    %v2786 = vmul.f32 %v2784, %v2018
    %v2787 = vmul.f32 %v2785, %v2022
    %2790 = vrot.lane.b32.xlu0 %v2780, 32
    %v2791 = vpop.permute.xlu0 %2790
    %2792 = vrot.lane.b32.xlu0 %v2781, 32
    %v2793 = vpop.permute.xlu0 %2792
    %2798 = vrot.lane.b32.xlu0 %v2786, 64
    %v2799 = vpop.permute.xlu0 %2798
    %2800 = vrot.lane.b32.xlu0 %v2787, 64
    %v2801 = vpop.permute.xlu0 %2800
    %v2804 = vsel %vm80, %v2778, %v2791
    %v2805 = vsel %vm80, %v2779, %v2793
    %v2806 = vsel %vm690, %v2804, %v2799
    %v2807 = vsel %vm690, %v2805, %v2801
    %v2808 = vld [vmem:[#allocation4 + $0x260] sm:$0xf]
    %v2809 = vld [vmem:[#allocation4 + $0x264] sm:$0xf]
    %v2810 = vld [vmem:[#allocation4 + $0x268] sm:$0xf]
    %v2811 = vld [vmem:[#allocation4 + $0x26c] sm:$0xf]
    %v2812 = vld [vmem:[#allocation4 + $0x270] sm:$0xf]
    %v2813 = vld [vmem:[#allocation4 + $0x274] sm:$0xf]
    %v2814 = vld [vmem:[#allocation4 + $0x278] sm:$0xf]
    %v2815 = vld [vmem:[#allocation4 + $0x27c] sm:$0xf]
    %v2816 = vld [vmem:[#allocation4 + $0x280] sm:$0xf]
    %v2817 = vld [vmem:[#allocation4 + $0x284] sm:$0xf]
    %v2818 = vld [vmem:[#allocation4 + $0x288] sm:$0xf]
    %v2819 = vld [vmem:[#allocation4 + $0x28c] sm:$0xf]
    %v2820 = vpack.c.bf16 %v2807, %v2806
    %v2821 = vld [vmem:[#allocation6 + $0xe0] sm:$0x1]
    %v2822 = vlaneseq
    %v2823 = vshrl.u32 %v2822, 7
    %v2824 = vsub.s32 0, %v2823
    %v2825 = vrot.slane %v2821, %v2824
    %v2838 = vunpack.c.l.b16 %v2808
    %v2839 = vunpack.c.l.b16 %v2809
    %v2840 = vunpack.c.l.b16 %v2810
    %v2841 = vunpack.c.l.b16 %v2811
    %v2842 = vunpack.c.l.b16 %v2812
    %v2843 = vunpack.c.l.b16 %v2813
    %v2844 = vunpack.c.l.b16 %v2814
    %v2845 = vunpack.c.l.b16 %v2815
    %v2846 = vunpack.c.l.b16 %v2816
    %v2847 = vunpack.c.l.b16 %v2817
    %v2848 = vunpack.c.l.b16 %v2818
    %v2849 = vunpack.c.l.b16 %v2819
    %v2850 = vpack.c.b16 %v2839, %v2838
    %v2851 = vpack.c.b16 %v2841, %v2840
    %v2852 = vpack.c.b16 %v2843, %v2842
    %v2853 = vpack.c.b16 %v2845, %v2844
    %v2854 = vpack.c.b16 %v2847, %v2846
    %v2855 = vpack.c.b16 %v2849, %v2848
    %v2863 = vsel %vm693, %v2820, 0
    %2865 = vmatprep.subr.bf16.mxu0 0
    %2866 = vmatpush1.bf16.msra.mxu0 %v2850
    %2867 = vmatprep.subr.bf16.mxu0 0
    %2868 = vmatpush1.bf16.msra.mxu0 %v2851
    %2869 = vmatprep.subr.bf16.mxu0 0
    %2870 = vmatpush1.bf16.msra.mxu0 %v2852
    %2871 = vmatprep.subr.bf16.mxu0 0
    %2872 = vmatpush1.bf16.msra.mxu0 %v2853
    %2873 = vmatprep.subr.bf16.mxu0 0
    %2874 = vmatpush1.bf16.msra.mxu0 %v2854
    %2875 = vmatprep.subr.bf16.mxu0 0
    %2876 = vmatpush1.bf16.msra.mxu0 %v2855
    %2877 = vmatprep.subr.bf16.mxu0 0
    %2878 = vmatpush1.bf16.msra.mxu0 0
    %2879 = vmatprep.subr.bf16.mxu0 0
    %2880 = vmatpush1.bf16.msra.mxu0 0
    %2881 = vmatprep.subr.bf16.mxu0 0
    %2882 = vmatpush1.bf16.msra.mxu0 0
    %2883 = vmatprep.subr.bf16.mxu0 0
    %2884 = vmatpush1.bf16.msra.mxu0 0
    %2885 = vmatprep.subr.bf16.mxu0 0
    %2886 = vmatpush1.bf16.msra.mxu0 0
    %2887 = vmatprep.subr.bf16.mxu0 0
    %2888 = vmatpush1.bf16.msra.mxu0 0
    %2889 = vmatprep.subr.bf16.mxu0 0
    %2890 = vmatpush1.bf16.msra.mxu0 0
    %2891 = vmatprep.subr.bf16.mxu0 0
    %2892 = vmatpush1.bf16.msra.mxu0 0
    %2893 = vmatprep.subr.bf16.mxu0 0
    %2894 = vmatpush1.bf16.msra.mxu0 0
    %2895 = vmatprep.subr.bf16.mxu0 0
    %2896 = vmatpush1.bf16.msra.mxu0 0
    %2897 = vmatprep.mubr.bf16.mxu0 0
    %2898 = vmatmul.mubr.bf16.gmra.mrb[0].mxu0 %v2863
    %v2899 = vpop.f32.mrb[0].mxu0
    %v2900 = vadd.f32 %v2825, %v2899
    %v2901 = vpop.f32.mrb[0].mxu0
    %v2902 = vpop.f32.mrb[0].mxu0
    %v2903 = vadd.f32 %v2825, %v2902
    %v2904 = vpop.f32.mrb[0].mxu0
    %2905 = vdwg.mxu0
    %v2906 = vmax.f32 %v2900, 0.0
    %v2907 = vmax.f32 %v2903, 0.0
    %v2908 = vld [vmem:[#allocation6 + $0xe8] sm:$0x1]
    %v2909 = vld [vmem:[#allocation6 + $0xf0] sm:$0x1]
    %v2910 = vsel %vm80, %v2906, 0.0
    %2911 = vadd.xlane.f32.xlu0 %v2910
    %v2912 = vpop.xlane.xlu0 %2911
    %v2913 = vsel %vm80, %v2907, 0.0
    %2914 = vadd.xlane.f32.xlu0 %v2913
    %v2915 = vpop.xlane.xlu0 %2914
    %v2916 = vmul.f32 %v2912, %v470
    %v2917 = vmul.f32 %v2915, %v470
    %v2918 = vsub.f32 %v2906, %v2916
    %v2919 = vsub.f32 %v2907, %v2917
    %v2920 = vmul.f32 %v2918, %v2918
    %v2921 = vmul.f32 %v2919, %v2919
    %v2922 = vsel %vm80, %v2920, 0.0
    %2923 = vadd.xlane.f32.xlu0 %v2922
    %v2924 = vpop.xlane.xlu0 %2923
    %v2925 = vsel %vm80, %v2921, 0.0
    %2926 = vadd.xlane.f32.xlu0 %v2925
    %v2927 = vpop.xlane.xlu0 %2926
    %v2928 = vmul.f32 %v2924, %v470
    %v2929 = vmul.f32 %v2927, %v470
    %v2930 = vadd.f32 %v2928, 1e-05
    %v2931 = vadd.f32 %v2929, 1e-05
    %v2932 = vrsqrt.pop %v2930
    %v2933 = vrsqrt.pop %v2931
    %v2934 = vmul.f32 %v2918, %v2932
    %v2935 = vmul.f32 %v2919, %v2933
    %v2936 = vlaneseq
    %v2937 = vshrl.u32 %v2936, 7
    %v2938 = vsub.s32 0, %v2937
    %v2939 = vrot.slane %v2908, %v2938
    %v2940 = vmul.f32 %v2934, %v2939
    %v2941 = vmul.f32 %v2935, %v2939
    %v2942 = vlaneseq
    %v2943 = vshrl.u32 %v2942, 7
    %v2944 = vsub.s32 0, %v2943
    %v2945 = vrot.slane %v2909, %v2944
    %v2946 = vadd.f32 %v2940, %v2945
    %v2947 = vadd.f32 %v2941, %v2945
    %v2948 = vld [vmem:[#allocation6 + $0xf8] sm:$0x1]
    %v2949 = vlaneseq
    %v2950 = vshrl.u32 %v2949, 7
    %v2951 = vsub.s32 0, %v2950
    %v2952 = vrot.slane %v2948, %v2951
    %v2953 = vmul.f32 %v2946, %v2952
    %v2954 = vmul.f32 %v2947, %v2952
    %v2955 = vsel %vm80, %v2953, 0.0
    %2956 = vadd.xlane.f32.xlu0 %v2955
    %v2957 = vpop.xlane.xlu0 %2956
    %v2958 = vsel %vm80, %v2954, 0.0
    %2959 = vadd.xlane.f32.xlu0 %v2958
    %v2960 = vpop.xlane.xlu0 %2959
    %v2961 = vld [vmem:[#allocation6 + $0x100] sm:$0x1]
    %v2962 = vlaneseq
    %v2963 = vshrl.u32 %v2962, 7
    %v2964 = vsub.s32 0, %v2963
    %v2965 = vrot.slane %v2961, %v2964
    %v2966 = vadd.f32 %v2957, %v2965
    %v2967 = vadd.f32 %v2960, %v2965
    %v2968 = vmul.f32 %v2966, %v2486
    %v2969 = vmul.f32 %v2967, %v2488
    %2970 = vrot.lane.b32.xlu0 %v2508, 1
    %v2971 = vpop.permute.xlu0 %2970
    %2972 = vrot.lane.b32.xlu0 %v2509, 1
    %v2973 = vpop.permute.xlu0 %2972
    %2978 = vrot.lane.b32.xlu0 %v2968, 2
    %v2979 = vpop.permute.xlu0 %2978
    %2980 = vrot.lane.b32.xlu0 %v2969, 2
    %v2981 = vpop.permute.xlu0 %2980
    %vm2984 = vcmask 7168
    %v2985 = vsel %vm2984, %v2491, %v2971
    %v2986 = vsel %vm2984, %v2492, %v2973
    %vm2987 = vcmask 15360
    %v2988 = vsel %vm2987, %v2985, %v2979
    %v2989 = vsel %vm2987, %v2986, %v2981
    %vm2990 = vcmask 23552
    %2991 = vst.msk [vmem:[%s3] sm:$0xff] %vm2990, %v2988
    %2992 = vst.msk [vmem:[%s3 + $0x8] sm:$0xff] %vm2990, %v2989
    // Predicated region
    $region26: #{tpu_custom_call.1} parent=1 // pred_check
      _
    $region27: #{tpu_custom_call.1} parent=1 // pred_check_branch
      %2994 = sbr.rel (0) target = $region29
    $region28: #{tpu_custom_call.1} parent=1 // pred_region
      _
    $region29: #{tpu_custom_call.1} parent=1 // pred_fallthru
      _
    // Predicated region
    $region30: #{tpu_custom_call.1} parent=1 // pred_check
      _
    $region31: #{tpu_custom_call.1} parent=1 // pred_check_branch
      %2996 = sbr.rel (0) target = $region33
    $region32: #{tpu_custom_call.1} parent=1 // pred_region
      _
    $region33: #{tpu_custom_call.1} parent=1 // pred_fallthru
      _
    %2997 = vsyncpa [#allocation3], 1
    %2998 = vsyncpa [#allocation5], 1

</llo_original>
